<compile_context>
chip_gen: v7x
topology: tpu7x:2x2x1
jax: 0.10.0
libtpu: 0.0.40
codegen_flags: <defaults>
</compile_context>

<pallas_src>
import functools
import jax
import jax.numpy as jnp
from jax.experimental import pallas as pl
from jax.experimental.pallas import tpu as pltpu

EPS = 1e-6  # JoeyNMT uses LayerNorm(eps=1e-6) both per-layer and for the final norm


def _layer_norm(v, g, b):
    # statistics kept in f32
    mu = jnp.mean(v, axis=-1, keepdims=True)
    var = jnp.mean((v - mu) ** 2, axis=-1, keepdims=True)
    return (v - mu) * jax.lax.rsqrt(var + EPS) * g + b


def _encoder_stack_kernel(x_ref, mask_ref, wqkv_ref, bqkv_ref, wo_ref, w1_ref, w2_ref,
                          small_ref, b1_ref, lnf_ref, o_ref, x_scr,
                          *, num_heads, bt, seq):
    """One grid step = one encoder layer for one batch tile of BT sequences.

    grid = (B // BT, L), layer innermost.  The running residual stream stays
    resident in VMEM scratch across the layer axis; the output block is only
    written at the last layer.
    """
    l = pl.program_id(1)
    nl = pl.num_programs(1)

    # load PE-added embeddings into the resident residual stream at layer 0
    @pl.when(l == 0)
    def _():
        x_scr[...] = x_ref[...].reshape(x_scr.shape)

    x = x_scr[...]                       # (M, H) f32, M = BT*S
    M, H = x.shape
    hd = H // num_heads

    # packed small per-layer params: rows = [ln1_g, ln1_b, bo, ln2_g, ln2_b, b2]
    small = small_ref[0]                 # (6, H) f32
    ln1_g, ln1_b = small[0:1], small[1:2]
    bo = small[2:3]
    ln2_g, ln2_b = small[3:4], small[4:5]
    b2 = small[5:6]

    mask = mask_ref[...]                 # (BT, 1, S) f32, >0 where key is valid

    # ---- multi-head self-attention (pre-LN); bf16 MXU matmuls, f32 accumulation ----
    xn = _layer_norm(x, ln1_g, ln1_b).astype(jnp.bfloat16)

    ctx_heads = []
    for n in range(num_heads):
        # Head-major weight layout: q/k/v per head come straight from 2-D matmuls,
        # no lane slicing of activations.  1/sqrt(hd) is folded into Wq / bq.
        def proj(c, _n=n):
            y = jnp.dot(xn, wqkv_ref[0, c, _n], preferred_element_type=jnp.float32)
            y = y + bqkv_ref[0, c, _n]                     # (M, hd) f32
            return y.astype(jnp.bfloat16).reshape(bt, seq, hd)

        q, k, v = proj(0), proj(1), proj(2)                # (BT, S, hd) bf16 each
        s = jnp.einsum('bqd,bkd->bqk', q, k,
                       preferred_element_type=jnp.float32)  # (BT, S, S) f32
        s = jnp.where(mask > 0.0, s, jnp.float32(-1e9))     # mask padded keys
        m = jnp.max(s, axis=-1, keepdims=True)
        e = jnp.exp(s - m)   # f32; TODO(synk): bf16 exp on v6e/v7x when softmax dominates
        p = e * pl.reciprocal(jnp.sum(e, axis=-1, keepdims=True), approx=True)
        c = jnp.einsum('bqk,bkd->bqd', p.astype(jnp.bfloat16), v,
                       preferred_element_type=jnp.float32)   # (BT, S, hd) f32
        ctx_heads.append(c.reshape(bt * seq, hd).astype(jnp.bfloat16))

    # heads concatenated along lanes (matches row order of Wo), single K=H matmul
    ctx = jnp.concatenate(ctx_heads, axis=-1)                # (M, H) bf16
    attn = jnp.dot(ctx, wo_ref[0], preferred_element_type=jnp.float32) + bo
    h1 = attn + x            # dropout = identity at inference

    # ---- position-wise feed-forward (pre-LN) ----
    hn = _layer_norm(h1, ln2_g, ln2_b).astype(jnp.bfloat16)
    f = jnp.maximum(jnp.dot(hn, w1_ref[0], preferred_element_type=jnp.float32)
                    + b1_ref[0], 0.0)
    x_new = jnp.dot(f.astype(jnp.bfloat16), w2_ref[0],
                    preferred_element_type=jnp.float32) + b2 + h1
    x_scr[...] = x_new

    # final encoder LayerNorm fused into the last layer step; bf16 writeback
    @pl.when(l == nl - 1)
    def _():
        lnf = lnf_ref[...]                                  # (2, H): [gamma, beta]
        y = _layer_norm(x_new, lnf[0:1], lnf[1:2])
        o_ref[...] = y.reshape(o_ref.shape).astype(o_ref.dtype)


def _vmem_bytes(bt, S, H, FFD, nh, out_bytes):
    """Rough per-core VMEM footprint for one batch tile (used to size BT / vmem limit)."""
    hd = H // nh
    w_layer = 2 * (4 * H * H + 2 * H * FFD)                 # bf16 weight tiles per layer
    small = 4 * (6 * H + 3 * nh * hd + FFD + 2 * H)         # f32 packed params + final LN
    dbuf = 2 * (w_layer + small)                            # double-buffered weight pipeline
    blocks = 2 * bt * S * (H * 4 + H * out_bytes + 4)       # x / out / mask blocks
    scratch = bt * S * H * 4                                # resident residual stream
    tmp = bt * S * (10 * H + 6 * FFD + 12 * hd) + 4 * bt * S * S * 4   # live temporaries
    return dbuf + blocks + scratch + tmp


def _choose_batch_tile(B, S, H, FFD, nh, out_bytes, budget_bytes=40 << 20):
    for bt in range(B, 0, -1):
        if B % bt == 0 and _vmem_bytes(bt, S, H, FFD, nh, out_bytes) <= budget_bytes:
            return bt
    return 1


def encoder_stack(x, mask, p, num_heads, *, batch_tile=None, out_dtype=jnp.bfloat16):
    B, S, H = x.shape
    L = p["wqkv"].shape[0]
    FFD = p["w1"].shape[2]
    nh = num_heads
    hd = H // nh
    assert H % nh == 0, "hidden size must split evenly across heads"
    assert S % 8 == 0, "sequence length must be sublane-aligned (multiple of 8)"

    out_bytes = jnp.dtype(out_dtype).itemsize
    BT = batch_tile if batch_tile is not None else _choose_batch_tile(B, S, H, FFD, nh, out_bytes)
    assert B % BT == 0

    # scoped VMEM limit derived from the actual tile footprint (not a fixed 48 MiB)
    est = _vmem_bytes(BT, S, H, FFD, nh, out_bytes)
    vmem_limit = int(max(min(1.35 * est + (2 << 20), 100 << 20), 16 << 20))

    # advisory cost estimate
    w_layer_bytes = 2 * (4 * H * H + 2 * H * FFD) + 4 * (6 * H + 3 * nh * hd + FFD)
    flops_layer_b = 2 * S * H * 3 * H + 4 * S * S * H + 2 * S * H * H + 4 * S * H * FFD
    cost = pl.CostEstimate(
        flops=int(B * L * flops_layer_b),
        transcendentals=int(B * L * nh * S * S),
        bytes_accessed=int((B // BT) * L * w_layer_bytes
                           + B * S * H * 4 + B * S * H * out_bytes + B * S * 4),
    )

    kernel = functools.partial(_encoder_stack_kernel, num_heads=nh, bt=BT, seq=S)
    return pl.pallas_call(
        kernel,
        out_shape=jax.ShapeDtypeStruct((B, S, H), out_dtype),
        grid=(B // BT, L),
        in_specs=[
            pl.BlockSpec((BT, S, H), lambda b, l: (b, 0, 0)),            # x (PE already added)
            pl.BlockSpec((BT, 1, S), lambda b, l: (b, 0, 0)),            # key padding mask
            pl.BlockSpec((1, 3, nh, H, hd), lambda b, l: (l, 0, 0, 0, 0)),   # head-major Wq/Wk/Wv
            pl.BlockSpec((1, 3, nh, 1, hd), lambda b, l: (l, 0, 0, 0, 0)),   # head-major bq/bk/bv
            pl.BlockSpec((1, H, H), lambda b, l: (l, 0, 0)),             # Wo
            pl.BlockSpec((1, H, FFD), lambda b, l: (l, 0, 0)),           # W1
            pl.BlockSpec((1, FFD, H), lambda b, l: (l, 0, 0)),           # W2
            pl.BlockSpec((1, 6, H), lambda b, l: (l, 0, 0)),             # packed small params
            pl.BlockSpec((1, 1, FFD), lambda b, l: (l, 0, 0)),           # b1
            pl.BlockSpec((2, H), lambda b, l: (0, 0)),                   # final LN gamma/beta
        ],
        out_specs=pl.BlockSpec((BT, S, H), lambda b, l: (b, 0, 0)),
        scratch_shapes=[pltpu.VMEM((BT * S, H), jnp.float32)],
        compiler_params=pltpu.CompilerParams(
            dimension_semantics=("parallel", "arbitrary"),
            vmem_limit_bytes=vmem_limit,
        ),
        cost_estimate=cost,
    )(x, mask, p["wqkv"], p["bqkv"], p["wo"], p["w1"], p["w2"],
      p["small"], p["b1"], p["ln_f"])


def positional_encoding(S, H):
    pos = jnp.arange(S, dtype=jnp.float32)[:, None]
    div = jnp.exp(jnp.arange(0, H, 2, dtype=jnp.float32) * (-jnp.log(10000.0) / H))
    pe = jnp.zeros((S, H), jnp.float32)
    pe = pe.at[:, 0::2].set(jnp.sin(pos * div))
    pe = pe.at[:, 1::2].set(jnp.cos(pos * div))
    return pe


def transformer_encoder_forward(embed_src, mask, padding_mask, params, num_heads,
                                out_dtype=jnp.bfloat16):
    """Mirrors TransformerEncoder.forward -> (output, None)."""
    # TODO(synk): padding_mask is accepted for API parity; padding is handled via
    # `mask` inside attention (the reference layer variant's use of it is unspecified).
    del padding_mask
    B, S, H = embed_src.shape
    x = embed_src.astype(jnp.float32) + positional_encoding(S, H)[None]   # self.pe(x)
    # self.emb_dropout(x): identity at inference
    out = encoder_stack(x, mask.astype(jnp.float32), params, num_heads, out_dtype=out_dtype)
    return out, None


def init_params(key, num_layers, H, FFD, num_heads):
    hd = H // num_heads
    L = num_layers
    scale = 1.0 / (hd ** 0.5)
    ks = jax.random.split(key, 4 * L)

    def rnd(k, shape):
        return jax.random.normal(k, shape, jnp.float32) * 0.05

    wqkv, wo, w1, w2 = [], [], [], []
    for i in range(L):
        k0, k1, k2, k3 = ks[4 * i:4 * i + 4]
        w = rnd(k0, (3, H, H))                       # [Wq; Wk; Wv], each (in=H, out=H)
        w = w.at[0].multiply(scale)                  # fold 1/sqrt(hd) into the Q weights
        # head-major split of the output dim: (3, H, nh, hd) -> (3, nh, H, hd)
        wqkv.append(jnp.transpose(w.reshape(3, H, num_heads, hd), (0, 2, 1, 3)))
        wo.append(rnd(k1, (H, H)))                   # rows n*hd:(n+1)*hd <-> head n (ctx concat order)
        w1.append(rnd(k2, (H, FFD)))
        w2.append(rnd(k3, (FFD, H)))

    # packed small per-layer params: rows = [ln1_g, ln1_b, bo, ln2_g, ln2_b, b2]
    small = jnp.concatenate([
        jnp.ones((L, 1, H)), jnp.zeros((L, 1, H)),   # ln1 gamma / beta
        jnp.zeros((L, 1, H)),                        # bo
        jnp.ones((L, 1, H)), jnp.zeros((L, 1, H)),   # ln2 gamma / beta
        jnp.zeros((L, 1, H)),                        # b2
    ], axis=1).astype(jnp.float32)

    return dict(
        wqkv=jnp.stack(wqkv).astype(jnp.bfloat16),                       # (L, 3, nh, H, hd)
        bqkv=jnp.zeros((L, 3, num_heads, 1, hd), jnp.float32),           # q-bias pre-scaled too
        wo=jnp.stack(wo).astype(jnp.bfloat16),                           # (L, H, H)
        w1=jnp.stack(w1).astype(jnp.bfloat16),                           # (L, H, FFD)
        b1=jnp.zeros((L, 1, FFD), jnp.float32),
        w2=jnp.stack(w2).astype(jnp.bfloat16),                           # (L, FFD, H)
        small=small,                                                     # (L, 6, H)
        ln_f=jnp.concatenate([jnp.ones((1, H)), jnp.zeros((1, H))],
                             axis=0).astype(jnp.float32),                # (2, H)
    )


if __name__ == "__main__":
    B, S, H, FFD, L, NH = 2, 8, 32, 64, 2, 4   # small shapes consistent with the module
    key = jax.random.PRNGKey(0)
    k_x, k_p = jax.random.split(key)

    embed_src = jax.random.normal(k_x, (B, S, H), jnp.float32)
    lengths = jnp.array([S, 5], dtype=jnp.int32)
    valid = jnp.arange(S)[None, :] < lengths[:, None]          # (B, S)
    mask = valid[:, None, :]                                   # (B, 1, S), zeros at padding
    padding_mask = valid                                       # (B, S) bool

    params = init_params(k_p, L, H, FFD, NH)
    out, hidden = transformer_encoder_forward(embed_src, mask, padding_mask, params, NH)
    out = jax.block_until_ready(out)
    assert out.shape == (B, S, H) and hidden is None
    assert bool(jnp.all(jnp.isfinite(out.astype(jnp.float32))))
    print("KERNEL_OK")
</pallas_src>

<mosaic_0001>
module attributes {stable_mosaic.version = 11 : i64} {
  func.func @_encoder_stack_kernel(%arg0: i32, %arg1: i32, %arg2: memref<2x8x32xf32, #tpu.memory_space<vmem>>, %arg3: memref<2x1x8xf32, #tpu.memory_space<vmem>>, %arg4: memref<1x3x4x32x8xbf16, #tpu.memory_space<vmem>>, %arg5: memref<1x3x4x1x8xf32, #tpu.memory_space<vmem>>, %arg6: memref<1x32x32xbf16, #tpu.memory_space<vmem>>, %arg7: memref<1x32x64xbf16, #tpu.memory_space<vmem>>, %arg8: memref<1x64x32xbf16, #tpu.memory_space<vmem>>, %arg9: memref<1x6x32xf32, #tpu.memory_space<vmem>>, %arg10: memref<1x1x64xf32, #tpu.memory_space<vmem>>, %arg11: memref<2x32xf32, #tpu.memory_space<vmem>>, %arg12: memref<2x8x32xbf16, #tpu.memory_space<vmem>>, %arg13: memref<16x32xf32, #tpu.memory_space<vmem>>) attributes {dimension_semantics = [#tpu.dimension_semantics<parallel>, #tpu.dimension_semantics<arbitrary>], iteration_bounds = array<i64: 1, 2>, scalar_prefetch = 0 : i64, scratch_operands = 1 : i64, tpu.core_type = #tpu.core_type<tc>, window_params = [{transform_indices = @transform_0, window_bounds = array<i64: 2, 8, 32>}, {transform_indices = @transform_1, window_bounds = array<i64: 2, 1, 8>}, {transform_indices = @transform_2, window_bounds = array<i64: 1, 3, 4, 32, 8>}, {transform_indices = @transform_3, window_bounds = array<i64: 1, 3, 4, 1, 8>}, {transform_indices = @transform_4, window_bounds = array<i64: 1, 32, 32>}, {transform_indices = @transform_5, window_bounds = array<i64: 1, 32, 64>}, {transform_indices = @transform_6, window_bounds = array<i64: 1, 64, 32>}, {transform_indices = @transform_7, window_bounds = array<i64: 1, 6, 32>}, {transform_indices = @transform_8, window_bounds = array<i64: 1, 1, 64>}, {pipeline_mode = #tpu.pipeline_mode<synchronous>, transform_indices = @transform_9, window_bounds = array<i64: 2, 32>}, {transform_indices = @transform_10, window_bounds = array<i64: 2, 8, 32>}]} {
    %c0_i32 = arith.constant 0 : i32
    %0 = arith.cmpi eq, %arg1, %c0_i32 : i32
    %1 = arith.extui %0 : i1 to i32
    %c0_i32_0 = arith.constant 0 : i32
    %2 = arith.cmpi ne, %1, %c0_i32_0 : i32
    scf.if %2 {
      %c0_189 = arith.constant 0 : index
      %c0_190 = arith.constant 0 : index
      %c0_191 = arith.constant 0 : index
      %278 = vector.load %arg2[%c0_189, %c0_190, %c0_191] : memref<2x8x32xf32, #tpu.memory_space<vmem>>, vector<2x8x32xf32>
      %279 = vector.shape_cast %278 : vector<2x8x32xf32> to vector<16x32xf32>
      %c0_192 = arith.constant 0 : index
      %c0_193 = arith.constant 0 : index
      %280 = vector.load %arg13[%c0_192, %c0_193] : memref<16x32xf32, #tpu.memory_space<vmem>>, vector<16x32xf32>
      tpu.vector_store %arg13[%c0_192, %c0_193], %279 {strides = array<i32>} : memref<16x32xf32, #tpu.memory_space<vmem>>, vector<16x32xf32>,
    } else {
    }
    %c0 = arith.constant 0 : index
    %c0_1 = arith.constant 0 : index
    %3 = vector.load %arg13[%c0, %c0_1] : memref<16x32xf32, #tpu.memory_space<vmem>>, vector<16x32xf32>
    %c0_2 = arith.constant 0 : index
    %c0_3 = arith.constant 0 : index
    %c0_4 = arith.constant 0 : index
    %4 = vector.load %arg9[%c0_2, %c0_3, %c0_4] : memref<1x6x32xf32, #tpu.memory_space<vmem>>, vector<1x6x32xf32>
    %5 = vector.shape_cast %4 : vector<1x6x32xf32> to vector<6x32xf32>
    %6 = vector.extract_strided_slice %5 {offsets = [0, 0], sizes = [1, 32], strides = [1, 1]} : vector<6x32xf32> to vector<1x32xf32>
    %7 = vector.extract_strided_slice %5 {offsets = [1, 0], sizes = [1, 32], strides = [1, 1]} : vector<6x32xf32> to vector<1x32xf32>
    %8 = vector.extract_strided_slice %5 {offsets = [2, 0], sizes = [1, 32], strides = [1, 1]} : vector<6x32xf32> to vector<1x32xf32>
    %9 = vector.extract_strided_slice %5 {offsets = [3, 0], sizes = [1, 32], strides = [1, 1]} : vector<6x32xf32> to vector<1x32xf32>
    %10 = vector.extract_strided_slice %5 {offsets = [4, 0], sizes = [1, 32], strides = [1, 1]} : vector<6x32xf32> to vector<1x32xf32>
    %11 = vector.extract_strided_slice %5 {offsets = [5, 0], sizes = [1, 32], strides = [1, 1]} : vector<6x32xf32> to vector<1x32xf32>
    %c0_5 = arith.constant 0 : index
    %c0_6 = arith.constant 0 : index
    %c0_7 = arith.constant 0 : index
    %12 = vector.load %arg3[%c0_5, %c0_6, %c0_7] : memref<2x1x8xf32, #tpu.memory_space<vmem>>, vector<2x1x8xf32>
    %cst = arith.constant dense<0.000000e+00> : vector<16xf32>
    %13 = vector.multi_reduction <add>, %3, %cst [1] : vector<16x32xf32> to vector<16xf32>
    %14 = vector.shape_cast %13 : vector<16xf32> to vector<16x1xf32>
    %cst_8 = arith.constant 3.200000e+01 : f32
    %15 = vector.broadcast %cst_8 : f32 to vector<16x1xf32>
    %16 = arith.divf %14, %15 : vector<16x1xf32>
    %17 = vector.broadcast %16 : vector<16x1xf32> to vector<16x32xf32>
    %18 = arith.subf %3, %17 : vector<16x32xf32>
    %19 = arith.mulf %18, %18 : vector<16x32xf32>
    %cst_9 = arith.constant dense<0.000000e+00> : vector<16xf32>
    %20 = vector.multi_reduction <add>, %19, %cst_9 [1] : vector<16x32xf32> to vector<16xf32>
    %21 = vector.shape_cast %20 : vector<16xf32> to vector<16x1xf32>
    %cst_10 = arith.constant 3.200000e+01 : f32
    %22 = vector.broadcast %cst_10 : f32 to vector<16x1xf32>
    %23 = arith.divf %21, %22 : vector<16x1xf32>
    %24 = vector.broadcast %16 : vector<16x1xf32> to vector<16x32xf32>
    %25 = arith.subf %3, %24 : vector<16x32xf32>
    %cst_11 = arith.constant 9.99999997E-7 : f32
    %26 = vector.broadcast %cst_11 : f32 to vector<16x1xf32>
    %27 = arith.addf %23, %26 : vector<16x1xf32>
    %28 = math.rsqrt %27 : vector<16x1xf32>
    %29 = vector.broadcast %28 : vector<16x1xf32> to vector<16x32xf32>
    %30 = arith.mulf %25, %29 : vector<16x32xf32>
    %31 = vector.broadcast %6 : vector<1x32xf32> to vector<16x32xf32>
    %32 = arith.mulf %30, %31 : vector<16x32xf32>
    %33 = vector.broadcast %7 : vector<1x32xf32> to vector<16x32xf32>
    %34 = arith.addf %32, %33 : vector<16x32xf32>
    %35 = arith.truncf %34 : vector<16x32xf32> to vector<16x32xbf16>
    %c0_12 = arith.constant 0 : index
    %c0_13 = arith.constant 0 : index
    %c0_14 = arith.constant 0 : index
    %c0_15 = arith.constant 0 : index
    %c0_16 = arith.constant 0 : index
    %36 = vector.load %arg4[%c0_12, %c0_13, %c0_14, %c0_15, %c0_16] : memref<1x3x4x32x8xbf16, #tpu.memory_space<vmem>>, vector<1x1x1x32x8xbf16>
    %37 = vector.shape_cast %36 : vector<1x1x1x32x8xbf16> to vector<32x8xbf16>
    %cst_17 = arith.constant dense<0.000000e+00> : vector<16x8xf32>
    %38 = tpu.matmul %35, %37, %cst_17 {dimension_numbers = #tpu.dot_dimension_numbers<[1], [0], [0], [1], [0, 0, 1, 1], [], []>} : vector<16x32xbf16>, vector<32x8xbf16>, vector<16x8xf32> -> vector<16x8xf32>
    %c0_18 = arith.constant 0 : index
    %c0_19 = arith.constant 0 : index
    %c0_20 = arith.constant 0 : index
    %c0_21 = arith.constant 0 : index
    %c0_22 = arith.constant 0 : index
    %39 = vector.load %arg5[%c0_18, %c0_19, %c0_20, %c0_21, %c0_22] : memref<1x3x4x1x8xf32, #tpu.memory_space<vmem>>, vector<1x1x1x1x8xf32>
    %40 = vector.shape_cast %39 : vector<1x1x1x1x8xf32> to vector<1x8xf32>
    %41 = vector.broadcast %40 : vector<1x8xf32> to vector<16x8xf32>
    %42 = arith.addf %38, %41 : vector<16x8xf32>
    %43 = arith.truncf %42 : vector<16x8xf32> to vector<16x8xbf16>
    %44 = vector.shape_cast %43 : vector<16x8xbf16> to vector<2x8x8xbf16>
    %c0_23 = arith.constant 0 : index
    %c1 = arith.constant 1 : index
    %c0_24 = arith.constant 0 : index
    %c0_25 = arith.constant 0 : index
    %c0_26 = arith.constant 0 : index
    %45 = vector.load %arg4[%c0_23, %c1, %c0_24, %c0_25, %c0_26] : memref<1x3x4x32x8xbf16, #tpu.memory_space<vmem>>, vector<1x1x1x32x8xbf16>
    %46 = vector.shape_cast %45 : vector<1x1x1x32x8xbf16> to vector<32x8xbf16>
    %cst_27 = arith.constant dense<0.000000e+00> : vector<16x8xf32>
    %47 = tpu.matmul %35, %46, %cst_27 {dimension_numbers = #tpu.dot_dimension_numbers<[1], [0], [0], [1], [0, 0, 1, 1], [], []>} : vector<16x32xbf16>, vector<32x8xbf16>, vector<16x8xf32> -> vector<16x8xf32>
    %c0_28 = arith.constant 0 : index
    %c1_29 = arith.constant 1 : index
    %c0_30 = arith.constant 0 : index
    %c0_31 = arith.constant 0 : index
    %c0_32 = arith.constant 0 : index
    %48 = vector.load %arg5[%c0_28, %c1_29, %c0_30, %c0_31, %c0_32] : memref<1x3x4x1x8xf32, #tpu.memory_space<vmem>>, vector<1x1x1x1x8xf32>
    %49 = vector.shape_cast %48 : vector<1x1x1x1x8xf32> to vector<1x8xf32>
    %50 = vector.broadcast %49 : vector<1x8xf32> to vector<16x8xf32>
    %51 = arith.addf %47, %50 : vector<16x8xf32>
    %52 = arith.truncf %51 : vector<16x8xf32> to vector<16x8xbf16>
    %53 = vector.shape_cast %52 : vector<16x8xbf16> to vector<2x8x8xbf16>
    %c0_33 = arith.constant 0 : index
    %c2 = arith.constant 2 : index
    %c0_34 = arith.constant 0 : index
    %c0_35 = arith.constant 0 : index
    %c0_36 = arith.constant 0 : index
    %54 = vector.load %arg4[%c0_33, %c2, %c0_34, %c0_35, %c0_36] : memref<1x3x4x32x8xbf16, #tpu.memory_space<vmem>>, vector<1x1x1x32x8xbf16>
    %55 = vector.shape_cast %54 : vector<1x1x1x32x8xbf16> to vector<32x8xbf16>
    %cst_37 = arith.constant dense<0.000000e+00> : vector<16x8xf32>
    %56 = tpu.matmul %35, %55, %cst_37 {dimension_numbers = #tpu.dot_dimension_numbers<[1], [0], [0], [1], [0, 0, 1, 1], [], []>} : vector<16x32xbf16>, vector<32x8xbf16>, vector<16x8xf32> -> vector<16x8xf32>
    %c0_38 = arith.constant 0 : index
    %c2_39 = arith.constant 2 : index
    %c0_40 = arith.constant 0 : index
    %c0_41 = arith.constant 0 : index
    %c0_42 = arith.constant 0 : index
    %57 = vector.load %arg5[%c0_38, %c2_39, %c0_40, %c0_41, %c0_42] : memref<1x3x4x1x8xf32, #tpu.memory_space<vmem>>, vector<1x1x1x1x8xf32>
    %58 = vector.shape_cast %57 : vector<1x1x1x1x8xf32> to vector<1x8xf32>
    %59 = vector.broadcast %58 : vector<1x8xf32> to vector<16x8xf32>
    %60 = arith.addf %56, %59 : vector<16x8xf32>
    %61 = arith.truncf %60 : vector<16x8xf32> to vector<16x8xbf16>
    %62 = vector.shape_cast %61 : vector<16x8xbf16> to vector<2x8x8xbf16>
    "tpu.trace_start"() <{level = 10 : i32, message = "bqd,bkd->bqk"}> : () -> ()
    %cst_43 = arith.constant dense<0.000000e+00> : vector<2x8x8xf32>
    %63 = tpu.matmul %44, %53, %cst_43 {dimension_numbers = #tpu.dot_dimension_numbers<[2], [2], [1], [1], [0, 0, 0, 1, 1, 1], [0], [0]>} : vector<2x8x8xbf16>, vector<2x8x8xbf16>, vector<2x8x8xf32> -> vector<2x8x8xf32>
    %cst_44 = arith.constant 0.000000e+00 : f32
    "tpu.trace_stop"() : () -> ()
    %64 = vector.broadcast %cst_44 : f32 to vector<2x1x8xf32>
    %65 = arith.cmpf ogt, %12, %64 : vector<2x1x8xf32>
    %cst_45 = arith.constant -1.000000e+09 : f32
    %66 = vector.shape_cast %65 : vector<2x1x8xi1> to vector<2x1x8xi1>
    %67 = vector.broadcast %66 : vector<2x1x8xi1> to vector<2x8x8xi1>
    %68 = vector.broadcast %cst_45 : f32 to vector<2x8x8xf32>
    %69 = arith.select %67, %63, %68 : vector<2x8x8xi1>, vector<2x8x8xf32>
    %cst_46 = arith.constant dense<0xFF800000> : vector<2x8xf32>
    %70 = vector.multi_reduction <maximumf>, %69, %cst_46 [2] : vector<2x8x8xf32> to vector<2x8xf32>
    %71 = vector.shape_cast %70 : vector<2x8xf32> to vector<2x8x1xf32>
    %72 = vector.broadcast %71 : vector<2x8x1xf32> to vector<2x8x8xf32>
    %73 = arith.subf %69, %72 : vector<2x8x8xf32>
    %74 = math.exp %73 : vector<2x8x8xf32>
    %cst_47 = arith.constant dense<0.000000e+00> : vector<2x8xf32>
    %75 = vector.multi_reduction <add>, %74, %cst_47 [2] : vector<2x8x8xf32> to vector<2x8xf32>
    %76 = vector.shape_cast %75 : vector<2x8xf32> to vector<2x8x1xf32>
    %77 = tpu.reciprocal %76 {approx = true} : vector<2x8x1xf32> -> vector<2x8x1xf32>
    %78 = vector.broadcast %77 : vector<2x8x1xf32> to vector<2x8x8xf32>
    %79 = arith.mulf %74, %78 : vector<2x8x8xf32>
    %80 = arith.truncf %79 : vector<2x8x8xf32> to vector<2x8x8xbf16>
    "tpu.trace_start"() <{level = 10 : i32, message = "bqk,bkd->bqd"}> : () -> ()
    %cst_48 = arith.constant dense<0.000000e+00> : vector<2x8x8xf32>
    %81 = tpu.matmul %80, %62, %cst_48 {dimension_numbers = #tpu.dot_dimension_numbers<[2], [1], [1], [2], [0, 0, 0, 1, 1, 2], [0], [0]>} : vector<2x8x8xbf16>, vector<2x8x8xbf16>, vector<2x8x8xf32> -> vector<2x8x8xf32>
    "tpu.trace_stop"() : () -> ()
    %82 = vector.shape_cast %81 : vector<2x8x8xf32> to vector<16x8xf32>
    %83 = arith.truncf %82 : vector<16x8xf32> to vector<16x8xbf16>
    %c0_49 = arith.constant 0 : index
    %c0_50 = arith.constant 0 : index
    %c1_51 = arith.constant 1 : index
    %c0_52 = arith.constant 0 : index
    %c0_53 = arith.constant 0 : index
    %84 = vector.load %arg4[%c0_49, %c0_50, %c1_51, %c0_52, %c0_53] : memref<1x3x4x32x8xbf16, #tpu.memory_space<vmem>>, vector<1x1x1x32x8xbf16>
    %85 = vector.shape_cast %84 : vector<1x1x1x32x8xbf16> to vector<32x8xbf16>
    %cst_54 = arith.constant dense<0.000000e+00> : vector<16x8xf32>
    %86 = tpu.matmul %35, %85, %cst_54 {dimension_numbers = #tpu.dot_dimension_numbers<[1], [0], [0], [1], [0, 0, 1, 1], [], []>} : vector<16x32xbf16>, vector<32x8xbf16>, vector<16x8xf32> -> vector<16x8xf32>
    %c0_55 = arith.constant 0 : index
    %c0_56 = arith.constant 0 : index
    %c1_57 = arith.constant 1 : index
    %c0_58 = arith.constant 0 : index
    %c0_59 = arith.constant 0 : index
    %87 = vector.load %arg5[%c0_55, %c0_56, %c1_57, %c0_58, %c0_59] : memref<1x3x4x1x8xf32, #tpu.memory_space<vmem>>, vector<1x1x1x1x8xf32>
    %88 = vector.shape_cast %87 : vector<1x1x1x1x8xf32> to vector<1x8xf32>
    %89 = vector.broadcast %88 : vector<1x8xf32> to vector<16x8xf32>
    %90 = arith.addf %86, %89 : vector<16x8xf32>
    %91 = arith.truncf %90 : vector<16x8xf32> to vector<16x8xbf16>
    %92 = vector.shape_cast %91 : vector<16x8xbf16> to vector<2x8x8xbf16>
    %c0_60 = arith.constant 0 : index
    %c1_61 = arith.constant 1 : index
    %c1_62 = arith.constant 1 : index
    %c0_63 = arith.constant 0 : index
    %c0_64 = arith.constant 0 : index
    %93 = vector.load %arg4[%c0_60, %c1_61, %c1_62, %c0_63, %c0_64] : memref<1x3x4x32x8xbf16, #tpu.memory_space<vmem>>, vector<1x1x1x32x8xbf16>
    %94 = vector.shape_cast %93 : vector<1x1x1x32x8xbf16> to vector<32x8xbf16>
    %cst_65 = arith.constant dense<0.000000e+00> : vector<16x8xf32>
    %95 = tpu.matmul %35, %94, %cst_65 {dimension_numbers = #tpu.dot_dimension_numbers<[1], [0], [0], [1], [0, 0, 1, 1], [], []>} : vector<16x32xbf16>, vector<32x8xbf16>, vector<16x8xf32> -> vector<16x8xf32>
    %c0_66 = arith.constant 0 : index
    %c1_67 = arith.constant 1 : index
    %c1_68 = arith.constant 1 : index
    %c0_69 = arith.constant 0 : index
    %c0_70 = arith.constant 0 : index
    %96 = vector.load %arg5[%c0_66, %c1_67, %c1_68, %c0_69, %c0_70] : memref<1x3x4x1x8xf32, #tpu.memory_space<vmem>>, vector<1x1x1x1x8xf32>
    %97 = vector.shape_cast %96 : vector<1x1x1x1x8xf32> to vector<1x8xf32>
    %98 = vector.broadcast %97 : vector<1x8xf32> to vector<16x8xf32>
    %99 = arith.addf %95, %98 : vector<16x8xf32>
    %100 = arith.truncf %99 : vector<16x8xf32> to vector<16x8xbf16>
    %101 = vector.shape_cast %100 : vector<16x8xbf16> to vector<2x8x8xbf16>
    %c0_71 = arith.constant 0 : index
    %c2_72 = arith.constant 2 : index
    %c1_73 = arith.constant 1 : index
    %c0_74 = arith.constant 0 : index
    %c0_75 = arith.constant 0 : index
    %102 = vector.load %arg4[%c0_71, %c2_72, %c1_73, %c0_74, %c0_75] : memref<1x3x4x32x8xbf16, #tpu.memory_space<vmem>>, vector<1x1x1x32x8xbf16>
    %103 = vector.shape_cast %102 : vector<1x1x1x32x8xbf16> to vector<32x8xbf16>
    %cst_76 = arith.constant dense<0.000000e+00> : vector<16x8xf32>
    %104 = tpu.matmul %35, %103, %cst_76 {dimension_numbers = #tpu.dot_dimension_numbers<[1], [0], [0], [1], [0, 0, 1, 1], [], []>} : vector<16x32xbf16>, vector<32x8xbf16>, vector<16x8xf32> -> vector<16x8xf32>
    %c0_77 = arith.constant 0 : index
    %c2_78 = arith.constant 2 : index
    %c1_79 = arith.constant 1 : index
    %c0_80 = arith.constant 0 : index
    %c0_81 = arith.constant 0 : index
    %105 = vector.load %arg5[%c0_77, %c2_78, %c1_79, %c0_80, %c0_81] : memref<1x3x4x1x8xf32, #tpu.memory_space<vmem>>, vector<1x1x1x1x8xf32>
    %106 = vector.shape_cast %105 : vector<1x1x1x1x8xf32> to vector<1x8xf32>
    %107 = vector.broadcast %106 : vector<1x8xf32> to vector<16x8xf32>
    %108 = arith.addf %104, %107 : vector<16x8xf32>
    %109 = arith.truncf %108 : vector<16x8xf32> to vector<16x8xbf16>
    %110 = vector.shape_cast %109 : vector<16x8xbf16> to vector<2x8x8xbf16>
    "tpu.trace_start"() <{level = 10 : i32, message = "bqd,bkd->bqk"}> : () -> ()
    %cst_82 = arith.constant dense<0.000000e+00> : vector<2x8x8xf32>
    %111 = tpu.matmul %92, %101, %cst_82 {dimension_numbers = #tpu.dot_dimension_numbers<[2], [2], [1], [1], [0, 0, 0, 1, 1, 1], [0], [0]>} : vector<2x8x8xbf16>, vector<2x8x8xbf16>, vector<2x8x8xf32> -> vector<2x8x8xf32>
    %cst_83 = arith.constant 0.000000e+00 : f32
    "tpu.trace_stop"() : () -> ()
    %112 = vector.broadcast %cst_83 : f32 to vector<2x1x8xf32>
    %113 = arith.cmpf ogt, %12, %112 : vector<2x1x8xf32>
    %cst_84 = arith.constant -1.000000e+09 : f32
    %114 = vector.shape_cast %113 : vector<2x1x8xi1> to vector<2x1x8xi1>
    %115 = vector.broadcast %114 : vector<2x1x8xi1> to vector<2x8x8xi1>
    %116 = vector.broadcast %cst_84 : f32 to vector<2x8x8xf32>
    %117 = arith.select %115, %111, %116 : vector<2x8x8xi1>, vector<2x8x8xf32>
    %cst_85 = arith.constant dense<0xFF800000> : vector<2x8xf32>
    %118 = vector.multi_reduction <maximumf>, %117, %cst_85 [2] : vector<2x8x8xf32> to vector<2x8xf32>
    %119 = vector.shape_cast %118 : vector<2x8xf32> to vector<2x8x1xf32>
    %120 = vector.broadcast %119 : vector<2x8x1xf32> to vector<2x8x8xf32>
    %121 = arith.subf %117, %120 : vector<2x8x8xf32>
    %122 = math.exp %121 : vector<2x8x8xf32>
    %cst_86 = arith.constant dense<0.000000e+00> : vector<2x8xf32>
    %123 = vector.multi_reduction <add>, %122, %cst_86 [2] : vector<2x8x8xf32> to vector<2x8xf32>
    %124 = vector.shape_cast %123 : vector<2x8xf32> to vector<2x8x1xf32>
    %125 = tpu.reciprocal %124 {approx = true} : vector<2x8x1xf32> -> vector<2x8x1xf32>
    %126 = vector.broadcast %125 : vector<2x8x1xf32> to vector<2x8x8xf32>
    %127 = arith.mulf %122, %126 : vector<2x8x8xf32>
    %128 = arith.truncf %127 : vector<2x8x8xf32> to vector<2x8x8xbf16>
    "tpu.trace_start"() <{level = 10 : i32, message = "bqk,bkd->bqd"}> : () -> ()
    %cst_87 = arith.constant dense<0.000000e+00> : vector<2x8x8xf32>
    %129 = tpu.matmul %128, %110, %cst_87 {dimension_numbers = #tpu.dot_dimension_numbers<[2], [1], [1], [2], [0, 0, 0, 1, 1, 2], [0], [0]>} : vector<2x8x8xbf16>, vector<2x8x8xbf16>, vector<2x8x8xf32> -> vector<2x8x8xf32>
    "tpu.trace_stop"() : () -> ()
    %130 = vector.shape_cast %129 : vector<2x8x8xf32> to vector<16x8xf32>
    %131 = arith.truncf %130 : vector<16x8xf32> to vector<16x8xbf16>
    %c0_88 = arith.constant 0 : index
    %c0_89 = arith.constant 0 : index
    %c2_90 = arith.constant 2 : index
    %c0_91 = arith.constant 0 : index
    %c0_92 = arith.constant 0 : index
    %132 = vector.load %arg4[%c0_88, %c0_89, %c2_90, %c0_91, %c0_92] : memref<1x3x4x32x8xbf16, #tpu.memory_space<vmem>>, vector<1x1x1x32x8xbf16>
    %133 = vector.shape_cast %132 : vector<1x1x1x32x8xbf16> to vector<32x8xbf16>
    %cst_93 = arith.constant dense<0.000000e+00> : vector<16x8xf32>
    %134 = tpu.matmul %35, %133, %cst_93 {dimension_numbers = #tpu.dot_dimension_numbers<[1], [0], [0], [1], [0, 0, 1, 1], [], []>} : vector<16x32xbf16>, vector<32x8xbf16>, vector<16x8xf32> -> vector<16x8xf32>
    %c0_94 = arith.constant 0 : index
    %c0_95 = arith.constant 0 : index
    %c2_96 = arith.constant 2 : index
    %c0_97 = arith.constant 0 : index
    %c0_98 = arith.constant 0 : index
    %135 = vector.load %arg5[%c0_94, %c0_95, %c2_96, %c0_97, %c0_98] : memref<1x3x4x1x8xf32, #tpu.memory_space<vmem>>, vector<1x1x1x1x8xf32>
    %136 = vector.shape_cast %135 : vector<1x1x1x1x8xf32> to vector<1x8xf32>
    %137 = vector.broadcast %136 : vector<1x8xf32> to vector<16x8xf32>
    %138 = arith.addf %134, %137 : vector<16x8xf32>
    %139 = arith.truncf %138 : vector<16x8xf32> to vector<16x8xbf16>
    %140 = vector.shape_cast %139 : vector<16x8xbf16> to vector<2x8x8xbf16>
    %c0_99 = arith.constant 0 : index
    %c1_100 = arith.constant 1 : index
    %c2_101 = arith.constant 2 : index
    %c0_102 = arith.constant 0 : index
    %c0_103 = arith.constant 0 : index
    %141 = vector.load %arg4[%c0_99, %c1_100, %c2_101, %c0_102, %c0_103] : memref<1x3x4x32x8xbf16, #tpu.memory_space<vmem>>, vector<1x1x1x32x8xbf16>
    %142 = vector.shape_cast %141 : vector<1x1x1x32x8xbf16> to vector<32x8xbf16>
    %cst_104 = arith.constant dense<0.000000e+00> : vector<16x8xf32>
    %143 = tpu.matmul %35, %142, %cst_104 {dimension_numbers = #tpu.dot_dimension_numbers<[1], [0], [0], [1], [0, 0, 1, 1], [], []>} : vector<16x32xbf16>, vector<32x8xbf16>, vector<16x8xf32> -> vector<16x8xf32>
    %c0_105 = arith.constant 0 : index
    %c1_106 = arith.constant 1 : index
    %c2_107 = arith.constant 2 : index
    %c0_108 = arith.constant 0 : index
    %c0_109 = arith.constant 0 : index
    %144 = vector.load %arg5[%c0_105, %c1_106, %c2_107, %c0_108, %c0_109] : memref<1x3x4x1x8xf32, #tpu.memory_space<vmem>>, vector<1x1x1x1x8xf32>
    %145 = vector.shape_cast %144 : vector<1x1x1x1x8xf32> to vector<1x8xf32>
    %146 = vector.broadcast %145 : vector<1x8xf32> to vector<16x8xf32>
    %147 = arith.addf %143, %146 : vector<16x8xf32>
    %148 = arith.truncf %147 : vector<16x8xf32> to vector<16x8xbf16>
    %149 = vector.shape_cast %148 : vector<16x8xbf16> to vector<2x8x8xbf16>
    %c0_110 = arith.constant 0 : index
    %c2_111 = arith.constant 2 : index
    %c2_112 = arith.constant 2 : index
    %c0_113 = arith.constant 0 : index
    %c0_114 = arith.constant 0 : index
    %150 = vector.load %arg4[%c0_110, %c2_111, %c2_112, %c0_113, %c0_114] : memref<1x3x4x32x8xbf16, #tpu.memory_space<vmem>>, vector<1x1x1x32x8xbf16>
    %151 = vector.shape_cast %150 : vector<1x1x1x32x8xbf16> to vector<32x8xbf16>
    %cst_115 = arith.constant dense<0.000000e+00> : vector<16x8xf32>
    %152 = tpu.matmul %35, %151, %cst_115 {dimension_numbers = #tpu.dot_dimension_numbers<[1], [0], [0], [1], [0, 0, 1, 1], [], []>} : vector<16x32xbf16>, vector<32x8xbf16>, vector<16x8xf32> -> vector<16x8xf32>
    %c0_116 = arith.constant 0 : index
    %c2_117 = arith.constant 2 : index
    %c2_118 = arith.constant 2 : index
    %c0_119 = arith.constant 0 : index
    %c0_120 = arith.constant 0 : index
    %153 = vector.load %arg5[%c0_116, %c2_117, %c2_118, %c0_119, %c0_120] : memref<1x3x4x1x8xf32, #tpu.memory_space<vmem>>, vector<1x1x1x1x8xf32>
    %154 = vector.shape_cast %153 : vector<1x1x1x1x8xf32> to vector<1x8xf32>
    %155 = vector.broadcast %154 : vector<1x8xf32> to vector<16x8xf32>
    %156 = arith.addf %152, %155 : vector<16x8xf32>
    %157 = arith.truncf %156 : vector<16x8xf32> to vector<16x8xbf16>
    %158 = vector.shape_cast %157 : vector<16x8xbf16> to vector<2x8x8xbf16>
    "tpu.trace_start"() <{level = 10 : i32, message = "bqd,bkd->bqk"}> : () -> ()
    %cst_121 = arith.constant dense<0.000000e+00> : vector<2x8x8xf32>
    %159 = tpu.matmul %140, %149, %cst_121 {dimension_numbers = #tpu.dot_dimension_numbers<[2], [2], [1], [1], [0, 0, 0, 1, 1, 1], [0], [0]>} : vector<2x8x8xbf16>, vector<2x8x8xbf16>, vector<2x8x8xf32> -> vector<2x8x8xf32>
    %cst_122 = arith.constant 0.000000e+00 : f32
    "tpu.trace_stop"() : () -> ()
    %160 = vector.broadcast %cst_122 : f32 to vector<2x1x8xf32>
    %161 = arith.cmpf ogt, %12, %160 : vector<2x1x8xf32>
    %cst_123 = arith.constant -1.000000e+09 : f32
    %162 = vector.shape_cast %161 : vector<2x1x8xi1> to vector<2x1x8xi1>
    %163 = vector.broadcast %162 : vector<2x1x8xi1> to vector<2x8x8xi1>
    %164 = vector.broadcast %cst_123 : f32 to vector<2x8x8xf32>
    %165 = arith.select %163, %159, %164 : vector<2x8x8xi1>, vector<2x8x8xf32>
    %cst_124 = arith.constant dense<0xFF800000> : vector<2x8xf32>
    %166 = vector.multi_reduction <maximumf>, %165, %cst_124 [2] : vector<2x8x8xf32> to vector<2x8xf32>
    %167 = vector.shape_cast %166 : vector<2x8xf32> to vector<2x8x1xf32>
    %168 = vector.broadcast %167 : vector<2x8x1xf32> to vector<2x8x8xf32>
    %169 = arith.subf %165, %168 : vector<2x8x8xf32>
    %170 = math.exp %169 : vector<2x8x8xf32>
    %cst_125 = arith.constant dense<0.000000e+00> : vector<2x8xf32>
    %171 = vector.multi_reduction <add>, %170, %cst_125 [2] : vector<2x8x8xf32> to vector<2x8xf32>
    %172 = vector.shape_cast %171 : vector<2x8xf32> to vector<2x8x1xf32>
    %173 = tpu.reciprocal %172 {approx = true} : vector<2x8x1xf32> -> vector<2x8x1xf32>
    %174 = vector.broadcast %173 : vector<2x8x1xf32> to vector<2x8x8xf32>
    %175 = arith.mulf %170, %174 : vector<2x8x8xf32>
    %176 = arith.truncf %175 : vector<2x8x8xf32> to vector<2x8x8xbf16>
    "tpu.trace_start"() <{level = 10 : i32, message = "bqk,bkd->bqd"}> : () -> ()
    %cst_126 = arith.constant dense<0.000000e+00> : vector<2x8x8xf32>
    %177 = tpu.matmul %176, %158, %cst_126 {dimension_numbers = #tpu.dot_dimension_numbers<[2], [1], [1], [2], [0, 0, 0, 1, 1, 2], [0], [0]>} : vector<2x8x8xbf16>, vector<2x8x8xbf16>, vector<2x8x8xf32> -> vector<2x8x8xf32>
    "tpu.trace_stop"() : () -> ()
    %178 = vector.shape_cast %177 : vector<2x8x8xf32> to vector<16x8xf32>
    %179 = arith.truncf %178 : vector<16x8xf32> to vector<16x8xbf16>
    %c0_127 = arith.constant 0 : index
    %c0_128 = arith.constant 0 : index
    %c3 = arith.constant 3 : index
    %c0_129 = arith.constant 0 : index
    %c0_130 = arith.constant 0 : index
    %180 = vector.load %arg4[%c0_127, %c0_128, %c3, %c0_129, %c0_130] : memref<1x3x4x32x8xbf16, #tpu.memory_space<vmem>>, vector<1x1x1x32x8xbf16>
    %181 = vector.shape_cast %180 : vector<1x1x1x32x8xbf16> to vector<32x8xbf16>
    %cst_131 = arith.constant dense<0.000000e+00> : vector<16x8xf32>
    %182 = tpu.matmul %35, %181, %cst_131 {dimension_numbers = #tpu.dot_dimension_numbers<[1], [0], [0], [1], [0, 0, 1, 1], [], []>} : vector<16x32xbf16>, vector<32x8xbf16>, vector<16x8xf32> -> vector<16x8xf32>
    %c0_132 = arith.constant 0 : index
    %c0_133 = arith.constant 0 : index
    %c3_134 = arith.constant 3 : index
    %c0_135 = arith.constant 0 : index
    %c0_136 = arith.constant 0 : index
    %183 = vector.load %arg5[%c0_132, %c0_133, %c3_134, %c0_135, %c0_136] : memref<1x3x4x1x8xf32, #tpu.memory_space<vmem>>, vector<1x1x1x1x8xf32>
    %184 = vector.shape_cast %183 : vector<1x1x1x1x8xf32> to vector<1x8xf32>
    %185 = vector.broadcast %184 : vector<1x8xf32> to vector<16x8xf32>
    %186 = arith.addf %182, %185 : vector<16x8xf32>
    %187 = arith.truncf %186 : vector<16x8xf32> to vector<16x8xbf16>
    %188 = vector.shape_cast %187 : vector<16x8xbf16> to vector<2x8x8xbf16>
    %c0_137 = arith.constant 0 : index
    %c1_138 = arith.constant 1 : index
    %c3_139 = arith.constant 3 : index
    %c0_140 = arith.constant 0 : index
    %c0_141 = arith.constant 0 : index
    %189 = vector.load %arg4[%c0_137, %c1_138, %c3_139, %c0_140, %c0_141] : memref<1x3x4x32x8xbf16, #tpu.memory_space<vmem>>, vector<1x1x1x32x8xbf16>
    %190 = vector.shape_cast %189 : vector<1x1x1x32x8xbf16> to vector<32x8xbf16>
    %cst_142 = arith.constant dense<0.000000e+00> : vector<16x8xf32>
    %191 = tpu.matmul %35, %190, %cst_142 {dimension_numbers = #tpu.dot_dimension_numbers<[1], [0], [0], [1], [0, 0, 1, 1], [], []>} : vector<16x32xbf16>, vector<32x8xbf16>, vector<16x8xf32> -> vector<16x8xf32>
    %c0_143 = arith.constant 0 : index
    %c1_144 = arith.constant 1 : index
    %c3_145 = arith.constant 3 : index
    %c0_146 = arith.constant 0 : index
    %c0_147 = arith.constant 0 : index
    %192 = vector.load %arg5[%c0_143, %c1_144, %c3_145, %c0_146, %c0_147] : memref<1x3x4x1x8xf32, #tpu.memory_space<vmem>>, vector<1x1x1x1x8xf32>
    %193 = vector.shape_cast %192 : vector<1x1x1x1x8xf32> to vector<1x8xf32>
    %194 = vector.broadcast %193 : vector<1x8xf32> to vector<16x8xf32>
    %195 = arith.addf %191, %194 : vector<16x8xf32>
    %196 = arith.truncf %195 : vector<16x8xf32> to vector<16x8xbf16>
    %197 = vector.shape_cast %196 : vector<16x8xbf16> to vector<2x8x8xbf16>
    %c0_148 = arith.constant 0 : index
    %c2_149 = arith.constant 2 : index
    %c3_150 = arith.constant 3 : index
    %c0_151 = arith.constant 0 : index
    %c0_152 = arith.constant 0 : index
    %198 = vector.load %arg4[%c0_148, %c2_149, %c3_150, %c0_151, %c0_152] : memref<1x3x4x32x8xbf16, #tpu.memory_space<vmem>>, vector<1x1x1x32x8xbf16>
    %199 = vector.shape_cast %198 : vector<1x1x1x32x8xbf16> to vector<32x8xbf16>
    %cst_153 = arith.constant dense<0.000000e+00> : vector<16x8xf32>
    %200 = tpu.matmul %35, %199, %cst_153 {dimension_numbers = #tpu.dot_dimension_numbers<[1], [0], [0], [1], [0, 0, 1, 1], [], []>} : vector<16x32xbf16>, vector<32x8xbf16>, vector<16x8xf32> -> vector<16x8xf32>
    %c0_154 = arith.constant 0 : index
    %c2_155 = arith.constant 2 : index
    %c3_156 = arith.constant 3 : index
    %c0_157 = arith.constant 0 : index
    %c0_158 = arith.constant 0 : index
    %201 = vector.load %arg5[%c0_154, %c2_155, %c3_156, %c0_157, %c0_158] : memref<1x3x4x1x8xf32, #tpu.memory_space<vmem>>, vector<1x1x1x1x8xf32>
    %202 = vector.shape_cast %201 : vector<1x1x1x1x8xf32> to vector<1x8xf32>
    %203 = vector.broadcast %202 : vector<1x8xf32> to vector<16x8xf32>
    %204 = arith.addf %200, %203 : vector<16x8xf32>
    %205 = arith.truncf %204 : vector<16x8xf32> to vector<16x8xbf16>
    %206 = vector.shape_cast %205 : vector<16x8xbf16> to vector<2x8x8xbf16>
    "tpu.trace_start"() <{level = 10 : i32, message = "bqd,bkd->bqk"}> : () -> ()
    %cst_159 = arith.constant dense<0.000000e+00> : vector<2x8x8xf32>
    %207 = tpu.matmul %188, %197, %cst_159 {dimension_numbers = #tpu.dot_dimension_numbers<[2], [2], [1], [1], [0, 0, 0, 1, 1, 1], [0], [0]>} : vector<2x8x8xbf16>, vector<2x8x8xbf16>, vector<2x8x8xf32> -> vector<2x8x8xf32>
    %cst_160 = arith.constant 0.000000e+00 : f32
    "tpu.trace_stop"() : () -> ()
    %208 = vector.broadcast %cst_160 : f32 to vector<2x1x8xf32>
    %209 = arith.cmpf ogt, %12, %208 : vector<2x1x8xf32>
    %cst_161 = arith.constant -1.000000e+09 : f32
    %210 = vector.shape_cast %209 : vector<2x1x8xi1> to vector<2x1x8xi1>
    %211 = vector.broadcast %210 : vector<2x1x8xi1> to vector<2x8x8xi1>
    %212 = vector.broadcast %cst_161 : f32 to vector<2x8x8xf32>
    %213 = arith.select %211, %207, %212 : vector<2x8x8xi1>, vector<2x8x8xf32>
    %cst_162 = arith.constant dense<0xFF800000> : vector<2x8xf32>
    %214 = vector.multi_reduction <maximumf>, %213, %cst_162 [2] : vector<2x8x8xf32> to vector<2x8xf32>
    %215 = vector.shape_cast %214 : vector<2x8xf32> to vector<2x8x1xf32>
    %216 = vector.broadcast %215 : vector<2x8x1xf32> to vector<2x8x8xf32>
    %217 = arith.subf %213, %216 : vector<2x8x8xf32>
    %218 = math.exp %217 : vector<2x8x8xf32>
    %cst_163 = arith.constant dense<0.000000e+00> : vector<2x8xf32>
    %219 = vector.multi_reduction <add>, %218, %cst_163 [2] : vector<2x8x8xf32> to vector<2x8xf32>
    %220 = vector.shape_cast %219 : vector<2x8xf32> to vector<2x8x1xf32>
    %221 = tpu.reciprocal %220 {approx = true} : vector<2x8x1xf32> -> vector<2x8x1xf32>
    %222 = vector.broadcast %221 : vector<2x8x1xf32> to vector<2x8x8xf32>
    %223 = arith.mulf %218, %222 : vector<2x8x8xf32>
    %224 = arith.truncf %223 : vector<2x8x8xf32> to vector<2x8x8xbf16>
    "tpu.trace_start"() <{level = 10 : i32, message = "bqk,bkd->bqd"}> : () -> ()
    %cst_164 = arith.constant dense<0.000000e+00> : vector<2x8x8xf32>
    %225 = tpu.matmul %224, %206, %cst_164 {dimension_numbers = #tpu.dot_dimension_numbers<[2], [1], [1], [2], [0, 0, 0, 1, 1, 2], [0], [0]>} : vector<2x8x8xbf16>, vector<2x8x8xbf16>, vector<2x8x8xf32> -> vector<2x8x8xf32>
    "tpu.trace_stop"() : () -> ()
    %226 = vector.shape_cast %225 : vector<2x8x8xf32> to vector<16x8xf32>
    %227 = arith.truncf %226 : vector<16x8xf32> to vector<16x8xbf16>
    %228 = tpu.concatenate %83, %131, %179, %227 in 1 : vector<16x8xbf16>, vector<16x8xbf16>, vector<16x8xbf16>, vector<16x8xbf16> -> vector<16x32xbf16>
    %c0_165 = arith.constant 0 : index
    %c0_166 = arith.constant 0 : index
    %c0_167 = arith.constant 0 : index
    %229 = vector.load %arg6[%c0_165, %c0_166, %c0_167] : memref<1x32x32xbf16, #tpu.memory_space<vmem>>, vector<1x32x32xbf16>
    %230 = vector.shape_cast %229 : vector<1x32x32xbf16> to vector<32x32xbf16>
    %cst_168 = arith.constant dense<0.000000e+00> : vector<16x32xf32>
    %231 = tpu.matmul %228, %230, %cst_168 {dimension_numbers = #tpu.dot_dimension_numbers<[1], [0], [0], [1], [0, 0, 1, 1], [], []>} : vector<16x32xbf16>, vector<32x32xbf16>, vector<16x32xf32> -> vector<16x32xf32>
    %232 = vector.broadcast %8 : vector<1x32xf32> to vector<16x32xf32>
    %233 = arith.addf %231, %232 : vector<16x32xf32>
    %234 = arith.addf %233, %3 : vector<16x32xf32>
    %cst_169 = arith.constant dense<0.000000e+00> : vector<16xf32>
    %235 = vector.multi_reduction <add>, %234, %cst_169 [1] : vector<16x32xf32> to vector<16xf32>
    %236 = vector.shape_cast %235 : vector<16xf32> to vector<16x1xf32>
    %cst_170 = arith.constant 3.200000e+01 : f32
    %237 = vector.broadcast %cst_170 : f32 to vector<16x1xf32>
    %238 = arith.divf %236, %237 : vector<16x1xf32>
    %239 = vector.broadcast %238 : vector<16x1xf32> to vector<16x32xf32>
    %240 = arith.subf %234, %239 : vector<16x32xf32>
    %241 = arith.mulf %240, %240 : vector<16x32xf32>
    %cst_171 = arith.constant dense<0.000000e+00> : vector<16xf32>
    %242 = vector.multi_reduction <add>, %241, %cst_171 [1] : vector<16x32xf32> to vector<16xf32>
    %243 = vector.shape_cast %242 : vector<16xf32> to vector<16x1xf32>
    %cst_172 = arith.constant 3.200000e+01 : f32
    %244 = vector.broadcast %cst_172 : f32 to vector<16x1xf32>
    %245 = arith.divf %243, %244 : vector<16x1xf32>
    %246 = vector.broadcast %238 : vector<16x1xf32> to vector<16x32xf32>
    %247 = arith.subf %234, %246 : vector<16x32xf32>
    %cst_173 = arith.constant 9.99999997E-7 : f32
    %248 = vector.broadcast %cst_173 : f32 to vector<16x1xf32>
    %249 = arith.addf %245, %248 : vector<16x1xf32>
    %250 = math.rsqrt %249 : vector<16x1xf32>
    %251 = vector.broadcast %250 : vector<16x1xf32> to vector<16x32xf32>
    %252 = arith.mulf %247, %251 : vector<16x32xf32>
    %253 = vector.broadcast %9 : vector<1x32xf32> to vector<16x32xf32>
    %254 = arith.mulf %252, %253 : vector<16x32xf32>
    %255 = vector.broadcast %10 : vector<1x32xf32> to vector<16x32xf32>
    %256 = arith.addf %254, %255 : vector<16x32xf32>
    %257 = arith.truncf %256 : vector<16x32xf32> to vector<16x32xbf16>
    %c0_174 = arith.constant 0 : index
    %c0_175 = arith.constant 0 : index
    %c0_176 = arith.constant 0 : index
    %258 = vector.load %arg7[%c0_174, %c0_175, %c0_176] : memref<1x32x64xbf16, #tpu.memory_space<vmem>>, vector<1x32x64xbf16>
    %259 = vector.shape_cast %258 : vector<1x32x64xbf16> to vector<32x64xbf16>
    %cst_177 = arith.constant dense<0.000000e+00> : vector<16x64xf32>
    %260 = tpu.matmul %257, %259, %cst_177 {dimension_numbers = #tpu.dot_dimension_numbers<[1], [0], [0], [1], [0, 0, 1, 1], [], []>} : vector<16x32xbf16>, vector<32x64xbf16>, vector<16x64xf32> -> vector<16x64xf32>
    %c0_178 = arith.constant 0 : index
    %c0_179 = arith.constant 0 : index
    %c0_180 = arith.constant 0 : index
    %261 = vector.load %arg10[%c0_178, %c0_179, %c0_180] : memref<1x1x64xf32, #tpu.memory_space<vmem>>, vector<1x1x64xf32>
    %262 = vector.shape_cast %261 : vector<1x1x64xf32> to vector<1x64xf32>
    %263 = vector.broadcast %262 : vector<1x64xf32> to vector<16x64xf32>
    %264 = arith.addf %260, %263 : vector<16x64xf32>
    %cst_181 = arith.constant 0.000000e+00 : f32
    %265 = vector.broadcast %cst_181 : f32 to vector<16x64xf32>
    %266 = arith.maximumf %264, %265 : vector<16x64xf32>
    %267 = arith.truncf %266 : vector<16x64xf32> to vector<16x64xbf16>
    %c0_182 = arith.constant 0 : index
    %c0_183 = arith.constant 0 : index
    %c0_184 = arith.constant 0 : index
    %268 = vector.load %arg8[%c0_182, %c0_183, %c0_184] : memref<1x64x32xbf16, #tpu.memory_space<vmem>>, vector<1x64x32xbf16>
    %269 = vector.shape_cast %268 : vector<1x64x32xbf16> to vector<64x32xbf16>
    %cst_185 = arith.constant dense<0.000000e+00> : vector<16x32xf32>
    %270 = tpu.matmul %267, %269, %cst_185 {dimension_numbers = #tpu.dot_dimension_numbers<[1], [0], [0], [1], [0, 0, 1, 1], [], []>} : vector<16x64xbf16>, vector<64x32xbf16>, vector<16x32xf32> -> vector<16x32xf32>
    %271 = vector.broadcast %11 : vector<1x32xf32> to vector<16x32xf32>
    %272 = arith.addf %270, %271 : vector<16x32xf32>
    %273 = arith.addf %272, %234 : vector<16x32xf32>
    %c0_186 = arith.constant 0 : index
    %c0_187 = arith.constant 0 : index
    %274 = vector.load %arg13[%c0_186, %c0_187] : memref<16x32xf32, #tpu.memory_space<vmem>>, vector<16x32xf32>
    tpu.vector_store %arg13[%c0_186, %c0_187], %273 {strides = array<i32>} : memref<16x32xf32, #tpu.memory_space<vmem>>, vector<16x32xf32>,
    %c1_i32 = arith.constant 1 : i32
    %275 = arith.cmpi eq, %arg1, %c1_i32 : i32
    %276 = arith.extui %275 : i1 to i32
    %c0_i32_188 = arith.constant 0 : i32
    %277 = arith.cmpi ne, %276, %c0_i32_188 : i32
    scf.if %277 {
      %c0_189 = arith.constant 0 : index
      %c0_190 = arith.constant 0 : index
      %278 = vector.load %arg11[%c0_189, %c0_190] : memref<2x32xf32, #tpu.memory_space<vmem>>, vector<2x32xf32>
      %279 = vector.extract_strided_slice %278 {offsets = [0, 0], sizes = [1, 32], strides = [1, 1]} : vector<2x32xf32> to vector<1x32xf32>
      %280 = vector.extract_strided_slice %278 {offsets = [1, 0], sizes = [1, 32], strides = [1, 1]} : vector<2x32xf32> to vector<1x32xf32>
      %cst_191 = arith.constant dense<0.000000e+00> : vector<16xf32>
      %281 = vector.multi_reduction <add>, %273, %cst_191 [1] : vector<16x32xf32> to vector<16xf32>
      %282 = vector.shape_cast %281 : vector<16xf32> to vector<16x1xf32>
      %cst_192 = arith.constant 3.200000e+01 : f32
      %283 = vector.broadcast %cst_192 : f32 to vector<16x1xf32>
      %284 = arith.divf %282, %283 : vector<16x1xf32>
      %285 = vector.broadcast %284 : vector<16x1xf32> to vector<16x32xf32>
      %286 = arith.subf %273, %285 : vector<16x32xf32>
      %287 = arith.mulf %286, %286 : vector<16x32xf32>
      %cst_193 = arith.constant dense<0.000000e+00> : vector<16xf32>
      %288 = vector.multi_reduction <add>, %287, %cst_193 [1] : vector<16x32xf32> to vector<16xf32>
      %289 = vector.shape_cast %288 : vector<16xf32> to vector<16x1xf32>
      %cst_194 = arith.constant 3.200000e+01 : f32
      %290 = vector.broadcast %cst_194 : f32 to vector<16x1xf32>
      %291 = arith.divf %289, %290 : vector<16x1xf32>
      %292 = vector.broadcast %284 : vector<16x1xf32> to vector<16x32xf32>
      %293 = arith.subf %273, %292 : vector<16x32xf32>
      %cst_195 = arith.constant 9.99999997E-7 : f32
      %294 = vector.broadcast %cst_195 : f32 to vector<16x1xf32>
      %295 = arith.addf %291, %294 : vector<16x1xf32>
      %296 = math.rsqrt %295 : vector<16x1xf32>
      %297 = vector.broadcast %296 : vector<16x1xf32> to vector<16x32xf32>
      %298 = arith.mulf %293, %297 : vector<16x32xf32>
      %299 = vector.broadcast %279 : vector<1x32xf32> to vector<16x32xf32>
      %300 = arith.mulf %298, %299 : vector<16x32xf32>
      %301 = vector.broadcast %280 : vector<1x32xf32> to vector<16x32xf32>
      %302 = arith.addf %300, %301 : vector<16x32xf32>
      %303 = vector.shape_cast %302 : vector<16x32xf32> to vector<2x8x32xf32>
      %304 = arith.truncf %303 : vector<2x8x32xf32> to vector<2x8x32xbf16>
      %c0_196 = arith.constant 0 : index
      %c0_197 = arith.constant 0 : index
      %c0_198 = arith.constant 0 : index
      %305 = vector.load %arg12[%c0_196, %c0_197, %c0_198] : memref<2x8x32xbf16, #tpu.memory_space<vmem>>, vector<2x8x32xbf16>
      tpu.vector_store %arg12[%c0_196, %c0_197, %c0_198], %304 {strides = array<i32>} : memref<2x8x32xbf16, #tpu.memory_space<vmem>>, vector<2x8x32xbf16>,
    } else {
    }
    return
  }
  func.func @transform_0(%arg0: i32, %arg1: i32) -> (i32, i32, i32) {
    %c0_i32 = arith.constant 0 : i32
    %c0_i32_0 = arith.constant 0 : i32
    %c0_i32_1 = arith.constant 0 : i32
    return %arg0, %c0_i32, %c0_i32_0 : i32, i32, i32
  }
  func.func @transform_1(%arg0: i32, %arg1: i32) -> (i32, i32, i32) {
    %c0_i32 = arith.constant 0 : i32
    %c0_i32_0 = arith.constant 0 : i32
    %c0_i32_1 = arith.constant 0 : i32
    return %arg0, %c0_i32, %c0_i32_0 : i32, i32, i32
  }
  func.func @transform_2(%arg0: i32, %arg1: i32) -> (i32, i32, i32, i32, i32) {
    %c0_i32 = arith.constant 0 : i32
    %c0_i32_0 = arith.constant 0 : i32
    %c0_i32_1 = arith.constant 0 : i32
    %c0_i32_2 = arith.constant 0 : i32
    %c0_i32_3 = arith.constant 0 : i32
    return %arg1, %c0_i32, %c0_i32_0, %c0_i32_1, %c0_i32_2 : i32, i32, i32, i32, i32
  }
  func.func @transform_3(%arg0: i32, %arg1: i32) -> (i32, i32, i32, i32, i32) {
    %c0_i32 = arith.constant 0 : i32
    %c0_i32_0 = arith.constant 0 : i32
    %c0_i32_1 = arith.constant 0 : i32
    %c0_i32_2 = arith.constant 0 : i32
    %c0_i32_3 = arith.constant 0 : i32
    return %arg1, %c0_i32, %c0_i32_0, %c0_i32_1, %c0_i32_2 : i32, i32, i32, i32, i32
  }
  func.func @transform_4(%arg0: i32, %arg1: i32) -> (i32, i32, i32) {
    %c0_i32 = arith.constant 0 : i32
    %c0_i32_0 = arith.constant 0 : i32
    %c0_i32_1 = arith.constant 0 : i32
    return %arg1, %c0_i32, %c0_i32_0 : i32, i32, i32
  }
  func.func @transform_5(%arg0: i32, %arg1: i32) -> (i32, i32, i32) {
    %c0_i32 = arith.constant 0 : i32
    %c0_i32_0 = arith.constant 0 : i32
    %c0_i32_1 = arith.constant 0 : i32
    return %arg1, %c0_i32, %c0_i32_0 : i32, i32, i32
  }
  func.func @transform_6(%arg0: i32, %arg1: i32) -> (i32, i32, i32) {
    %c0_i32 = arith.constant 0 : i32
    %c0_i32_0 = arith.constant 0 : i32
    %c0_i32_1 = arith.constant 0 : i32
    return %arg1, %c0_i32, %c0_i32_0 : i32, i32, i32
  }
  func.func @transform_7(%arg0: i32, %arg1: i32) -> (i32, i32, i32) {
    %c0_i32 = arith.constant 0 : i32
    %c0_i32_0 = arith.constant 0 : i32
    %c0_i32_1 = arith.constant 0 : i32
    return %arg1, %c0_i32, %c0_i32_0 : i32, i32, i32
  }
  func.func @transform_8(%arg0: i32, %arg1: i32) -> (i32, i32, i32) {
    %c0_i32 = arith.constant 0 : i32
    %c0_i32_0 = arith.constant 0 : i32
    %c0_i32_1 = arith.constant 0 : i32
    return %arg1, %c0_i32, %c0_i32_0 : i32, i32, i32
  }
  func.func @transform_9(%arg0: i32, %arg1: i32) -> (i32, i32) {
    %c0_i32 = arith.constant 0 : i32
    %c0_i32_0 = arith.constant 0 : i32
    %c0_i32_1 = arith.constant 0 : i32
    return %c0_i32, %c0_i32_0 : i32, i32
  }
  func.func @transform_10(%arg0: i32, %arg1: i32) -> (i32, i32, i32) {
    %c0_i32 = arith.constant 0 : i32
    %c0_i32_0 = arith.constant 0 : i32
    %c0_i32_1 = arith.constant 0 : i32
    return %arg0, %c0_i32, %c0_i32_0 : i32, i32, i32
  }
}

</mosaic_0001>

<llo_original>
// kernel: tpu_custom_call.1
$region0: #{tpu_custom_call.1}
  #allocation0 [shape = 'u32[]', space=smem, size = 0x4, offset = 0x4, fixed_abs, tag = 'smem constant byte address 0x4 - core index']
  #allocation1 [shape = 'u32[144,128]{1,0:T(1,128)}', space=vmem, size = 0x12000, scoped, tag = 'internal scratch']
  #allocation2 [shape = 'f32[16,32]{1,0:T(8,128)}', space=vmem, size = 0x2000, scoped, tag = 'scratch operand']
  %s0 = inlined_call_operand.vmem [shape: f32[2,8,32], index: 0, kind: input, shape index: {}]
  %s1 = inlined_call_operand.vmem [shape: f32[2,1,8], index: 1, kind: input, shape index: {}]
  %s2 = inlined_call_operand.vmem [shape: bf16[2,3,4,32,8], index: 2, kind: input, shape index: {}]
  %s3 = inlined_call_operand.vmem [shape: f32[2,3,4,1,8], index: 3, kind: input, shape index: {}]
  %s4 = inlined_call_operand.vmem [shape: bf16[2,32,32], index: 4, kind: input, shape index: {}]
  %s5 = inlined_call_operand.vmem [shape: bf16[2,32,64], index: 5, kind: input, shape index: {}]
  %s6 = inlined_call_operand.vmem [shape: bf16[2,64,32], index: 6, kind: input, shape index: {}]
  %s7 = inlined_call_operand.vmem [shape: f32[2,6,32], index: 7, kind: input, shape index: {}]
  %s8 = inlined_call_operand.vmem [shape: f32[2,1,64], index: 8, kind: input, shape index: {}]
  %s9 = inlined_call_operand.vmem [shape: f32[2,32], index: 9, kind: input, shape index: {}]
  %s10 = inlined_call_operand.hbm [shape: bf16[2,8,32], index: 10, kind: output, shape index: {}]
  %s11 = sld [smem:[#allocation0]]
  $region81: #{tpu_custom_call.1} parent=0
    _
  %s13 = ssub.s32 1, %s11
  %s14 = scalar_select 0, %s13, %s11
  $region1: #{tpu_custom_call.1} parent=0
    #allocation3 [shape = 'u8[4096]{0}', space=vmem, size = 0x1000, scoped, tag = 'output window, operand 0, single buffered']
    #allocation4 [shape = 's32[2]{0}', space=sflag, size = 0x8, scoped, tag = 'scoped memory for tpu_custom_call.1']
    %15 = vsyncpa [#allocation4], 0
    loop: start=0, step=1, limit=4
    $region2: #{tpu_custom_call.1} parent=1 // loop_pre_header
      _
    $region3: #{tpu_custom_call.1} parent=1 // loop_header
      %s17 = sphi 0, %s21
      %p18 = scmp.ge.s32.totalorder %s17, 4
      %s24 = sphi 0, %s36
      %s25 = sphi 0, %s32
      %s26 = sphi 0, %s24
      %s27 = sphi 0, %s25
      %s28 = sphi 0, %s26
      %s29 = sphi 0, %s27
      %s39 = sphi 0, %s41
      %s42 = sphi 0, %s39
      %s43 = sphi 0, %s42
      %s59 = sphi 0, %s43
      %s65 = sphi 0, %s67
      %s68 = sphi 0, %s65
      %s69 = sphi 0, %s68
      %s85 = sphi 0, %s69
      %s91 = sphi 0, %s93
      %s94 = sphi 0, %s91
      %s95 = sphi 0, %s94
      %s111 = sphi 0, %s95
      %s117 = sphi 0, %s119
      %s120 = sphi 0, %s117
      %s121 = sphi 0, %s120
      %s137 = sphi 0, %s121
      %s143 = sphi 0, %s145
      %s146 = sphi 0, %s143
      %s147 = sphi 0, %s146
      %s163 = sphi 0, %s147
      %s169 = sphi 0, %s171
      %s172 = sphi 0, %s169
      %s173 = sphi 0, %s172
      %s189 = sphi 0, %s173
      %s195 = sphi 0, %s197
      %s198 = sphi 0, %s195
      %s199 = sphi 0, %s198
      %s215 = sphi 0, %s199
      %s221 = sphi 0, %s223
      %s224 = sphi 0, %s221
      %s225 = sphi 0, %s224
      %s241 = sphi 0, %s225
      %s247 = sphi 0, %s249
      %s250 = sphi 0, %s247
      %s251 = sphi 0, %s250
      %s267 = sphi 0, %s251
      %s271 = sphi 0, %s271
      %s273 = sphi 0, %s271
      %s274 = sphi 0, %s273
      %s288 = sphi 0, %s274
      %s294 = sphi 0, %s296
      %s297 = sphi 0, %s294
      %s298 = sphi 0, %s297
      %s314 = sphi 0, %s298
    $region4: #{tpu_custom_call.1} parent=1 // loop_header_branch
      %20 = sbr.rel (%p18) target = $region8
    $region5: #{tpu_custom_call.1} parent=1 // loop_body
      %s22 = ssub.s32 %s17, 1
      %s23 = ssub.s32 %s17, 2
      %s30 = sadd.s32 1, %s25
      %p31 = scmp.ge.s32.totalorder %s30, 2
      %s32 = scalar_select %p31, 0, %s30
      %s33 = sadd.s32 1, %s24
      %s34 = scalar_select %p31, %s33, %s24
      %p35 = scmp.ge.s32.totalorder %s34, 1
      %s36 = scalar_select %p35, 0, %s34
      %s37 = ssub.s32 %s24, %s36
      %p38 = scmp.eq.s32.totalorder %s37, 0
      %s40 = sadd.s32 %s39, 1
      %s41 = scalar_select %p38, %s39, %s40
      %p44 = pneg %p38
      %p45 = scmp.eq.s32.totalorder %s17, 1
      %p46 = por %p44, %p45
      %p47 = scmp.ne.s32.totalorder %s39, %s42
      %p48 = scmp.eq.s32.totalorder %s17, 0
      %p49 = por %p47, %p48
      %p50 = scmp.ne.s32.totalorder %s39, %s42
      %p51 = scmp.eq.s32.totalorder %s22, 1
      %p52 = por %p50, %p51
      %p53 = scmp.ne.s32.totalorder %s42, %s43
      %p54 = scmp.eq.s32.totalorder %s22, 0
      %p55 = por %p53, %p54
      %p56 = scmp.ne.s32.totalorder %s42, %s43
      %p57 = scmp.eq.s32.totalorder %s23, 1
      %p58 = por %p56, %p57
      %p60 = scmp.ne.s32.totalorder %s43, %s59
      %p61 = scmp.eq.s32.totalorder %s23, 0
      %p62 = por %p60, %p61
      %s63 = ssub.s32 %s24, %s36
      %p64 = scmp.eq.s32.totalorder %s63, 0
      %s66 = sadd.s32 %s65, 1
      %s67 = scalar_select %p64, %s65, %s66
      %p70 = pneg %p64
      %p71 = scmp.eq.s32.totalorder %s17, 1
      %p72 = por %p70, %p71
      %p73 = scmp.ne.s32.totalorder %s65, %s68
      %p74 = scmp.eq.s32.totalorder %s17, 0
      %p75 = por %p73, %p74
      %p76 = scmp.ne.s32.totalorder %s65, %s68
      %p77 = scmp.eq.s32.totalorder %s22, 1
      %p78 = por %p76, %p77
      %p79 = scmp.ne.s32.totalorder %s68, %s69
      %p80 = scmp.eq.s32.totalorder %s22, 0
      %p81 = por %p79, %p80
      %p82 = scmp.ne.s32.totalorder %s68, %s69
      %p83 = scmp.eq.s32.totalorder %s23, 1
      %p84 = por %p82, %p83
      %p86 = scmp.ne.s32.totalorder %s69, %s85
      %p87 = scmp.eq.s32.totalorder %s23, 0
      %p88 = por %p86, %p87
      %s89 = ssub.s32 %s25, %s32
      %p90 = scmp.eq.s32.totalorder %s89, 0
      %s92 = sadd.s32 %s91, 1
      %s93 = scalar_select %p90, %s91, %s92
      %p96 = pneg %p90
      %p97 = scmp.eq.s32.totalorder %s17, 1
      %p98 = por %p96, %p97
      %p99 = scmp.ne.s32.totalorder %s91, %s94
      %p100 = scmp.eq.s32.totalorder %s17, 0
      %p101 = por %p99, %p100
      %p102 = scmp.ne.s32.totalorder %s91, %s94
      %p103 = scmp.eq.s32.totalorder %s22, 1
      %p104 = por %p102, %p103
      %p105 = scmp.ne.s32.totalorder %s94, %s95
      %p106 = scmp.eq.s32.totalorder %s22, 0
      %p107 = por %p105, %p106
      %p108 = scmp.ne.s32.totalorder %s94, %s95
      %p109 = scmp.eq.s32.totalorder %s23, 1
      %p110 = por %p108, %p109
      %p112 = scmp.ne.s32.totalorder %s95, %s111
      %p113 = scmp.eq.s32.totalorder %s23, 0
      %p114 = por %p112, %p113
      %s115 = ssub.s32 %s25, %s32
      %p116 = scmp.eq.s32.totalorder %s115, 0
      %s118 = sadd.s32 %s117, 1
      %s119 = scalar_select %p116, %s117, %s118
      %p122 = pneg %p116
      %p123 = scmp.eq.s32.totalorder %s17, 1
      %p124 = por %p122, %p123
      %p125 = scmp.ne.s32.totalorder %s117, %s120
      %p126 = scmp.eq.s32.totalorder %s17, 0
      %p127 = por %p125, %p126
      %p128 = scmp.ne.s32.totalorder %s117, %s120
      %p129 = scmp.eq.s32.totalorder %s22, 1
      %p130 = por %p128, %p129
      %p131 = scmp.ne.s32.totalorder %s120, %s121
      %p132 = scmp.eq.s32.totalorder %s22, 0
      %p133 = por %p131, %p132
      %p134 = scmp.ne.s32.totalorder %s120, %s121
      %p135 = scmp.eq.s32.totalorder %s23, 1
      %p136 = por %p134, %p135
      %p138 = scmp.ne.s32.totalorder %s121, %s137
      %p139 = scmp.eq.s32.totalorder %s23, 0
      %p140 = por %p138, %p139
      %s141 = ssub.s32 %s25, %s32
      %p142 = scmp.eq.s32.totalorder %s141, 0
      %s144 = sadd.s32 %s143, 1
      %s145 = scalar_select %p142, %s143, %s144
      %p148 = pneg %p142
      %p149 = scmp.eq.s32.totalorder %s17, 1
      %p150 = por %p148, %p149
      %p151 = scmp.ne.s32.totalorder %s143, %s146
      %p152 = scmp.eq.s32.totalorder %s17, 0
      %p153 = por %p151, %p152
      %p154 = scmp.ne.s32.totalorder %s143, %s146
      %p155 = scmp.eq.s32.totalorder %s22, 1
      %p156 = por %p154, %p155
      %p157 = scmp.ne.s32.totalorder %s146, %s147
      %p158 = scmp.eq.s32.totalorder %s22, 0
      %p159 = por %p157, %p158
      %p160 = scmp.ne.s32.totalorder %s146, %s147
      %p161 = scmp.eq.s32.totalorder %s23, 1
      %p162 = por %p160, %p161
      %p164 = scmp.ne.s32.totalorder %s147, %s163
      %p165 = scmp.eq.s32.totalorder %s23, 0
      %p166 = por %p164, %p165
      %s167 = ssub.s32 %s25, %s32
      %p168 = scmp.eq.s32.totalorder %s167, 0
      %s170 = sadd.s32 %s169, 1
      %s171 = scalar_select %p168, %s169, %s170
      %p174 = pneg %p168
      %p175 = scmp.eq.s32.totalorder %s17, 1
      %p176 = por %p174, %p175
      %p177 = scmp.ne.s32.totalorder %s169, %s172
      %p178 = scmp.eq.s32.totalorder %s17, 0
      %p179 = por %p177, %p178
      %p180 = scmp.ne.s32.totalorder %s169, %s172
      %p181 = scmp.eq.s32.totalorder %s22, 1
      %p182 = por %p180, %p181
      %p183 = scmp.ne.s32.totalorder %s172, %s173
      %p184 = scmp.eq.s32.totalorder %s22, 0
      %p185 = por %p183, %p184
      %p186 = scmp.ne.s32.totalorder %s172, %s173
      %p187 = scmp.eq.s32.totalorder %s23, 1
      %p188 = por %p186, %p187
      %p190 = scmp.ne.s32.totalorder %s173, %s189
      %p191 = scmp.eq.s32.totalorder %s23, 0
      %p192 = por %p190, %p191
      %s193 = ssub.s32 %s25, %s32
      %p194 = scmp.eq.s32.totalorder %s193, 0
      %s196 = sadd.s32 %s195, 1
      %s197 = scalar_select %p194, %s195, %s196
      %p200 = pneg %p194
      %p201 = scmp.eq.s32.totalorder %s17, 1
      %p202 = por %p200, %p201
      %p203 = scmp.ne.s32.totalorder %s195, %s198
      %p204 = scmp.eq.s32.totalorder %s17, 0
      %p205 = por %p203, %p204
      %p206 = scmp.ne.s32.totalorder %s195, %s198
      %p207 = scmp.eq.s32.totalorder %s22, 1
      %p208 = por %p206, %p207
      %p209 = scmp.ne.s32.totalorder %s198, %s199
      %p210 = scmp.eq.s32.totalorder %s22, 0
      %p211 = por %p209, %p210
      %p212 = scmp.ne.s32.totalorder %s198, %s199
      %p213 = scmp.eq.s32.totalorder %s23, 1
      %p214 = por %p212, %p213
      %p216 = scmp.ne.s32.totalorder %s199, %s215
      %p217 = scmp.eq.s32.totalorder %s23, 0
      %p218 = por %p216, %p217
      %s219 = ssub.s32 %s25, %s32
      %p220 = scmp.eq.s32.totalorder %s219, 0
      %s222 = sadd.s32 %s221, 1
      %s223 = scalar_select %p220, %s221, %s222
      %p226 = pneg %p220
      %p227 = scmp.eq.s32.totalorder %s17, 1
      %p228 = por %p226, %p227
      %p229 = scmp.ne.s32.totalorder %s221, %s224
      %p230 = scmp.eq.s32.totalorder %s17, 0
      %p231 = por %p229, %p230
      %p232 = scmp.ne.s32.totalorder %s221, %s224
      %p233 = scmp.eq.s32.totalorder %s22, 1
      %p234 = por %p232, %p233
      %p235 = scmp.ne.s32.totalorder %s224, %s225
      %p236 = scmp.eq.s32.totalorder %s22, 0
      %p237 = por %p235, %p236
      %p238 = scmp.ne.s32.totalorder %s224, %s225
      %p239 = scmp.eq.s32.totalorder %s23, 1
      %p240 = por %p238, %p239
      %p242 = scmp.ne.s32.totalorder %s225, %s241
      %p243 = scmp.eq.s32.totalorder %s23, 0
      %p244 = por %p242, %p243
      %s245 = ssub.s32 %s25, %s32
      %p246 = scmp.eq.s32.totalorder %s245, 0
      %s248 = sadd.s32 %s247, 1
      %s249 = scalar_select %p246, %s247, %s248
      %p252 = pneg %p246
      %p253 = scmp.eq.s32.totalorder %s17, 1
      %p254 = por %p252, %p253
      %p255 = scmp.ne.s32.totalorder %s247, %s250
      %p256 = scmp.eq.s32.totalorder %s17, 0
      %p257 = por %p255, %p256
      %p258 = scmp.ne.s32.totalorder %s247, %s250
      %p259 = scmp.eq.s32.totalorder %s22, 1
      %p260 = por %p258, %p259
      %p261 = scmp.ne.s32.totalorder %s250, %s251
      %p262 = scmp.eq.s32.totalorder %s22, 0
      %p263 = por %p261, %p262
      %p264 = scmp.ne.s32.totalorder %s250, %s251
      %p265 = scmp.eq.s32.totalorder %s23, 1
      %p266 = por %p264, %p265
      %p268 = scmp.ne.s32.totalorder %s251, %s267
      %p269 = scmp.eq.s32.totalorder %s23, 0
      %p270 = por %p268, %p269
      %s272 = sadd.s32 %s271, 1
      %p275 = scmp.eq.s32.totalorder %s17, 1
      %p276 = scmp.ne.s32.totalorder %s271, %s273
      %p277 = scmp.eq.s32.totalorder %s17, 0
      %p278 = por %p276, %p277
      %p279 = scmp.ne.s32.totalorder %s271, %s273
      %p280 = scmp.eq.s32.totalorder %s22, 1
      %p281 = por %p279, %p280
      %p282 = scmp.ne.s32.totalorder %s273, %s274
      %p283 = scmp.eq.s32.totalorder %s22, 0
      %p284 = por %p282, %p283
      %p285 = scmp.ne.s32.totalorder %s273, %s274
      %p286 = scmp.eq.s32.totalorder %s23, 1
      %p287 = por %p285, %p286
      %p289 = scmp.ne.s32.totalorder %s274, %s288
      %p290 = scmp.eq.s32.totalorder %s23, 0
      %p291 = por %p289, %p290
      %s292 = ssub.s32 %s24, %s36
      %p293 = scmp.eq.s32.totalorder %s292, 0
      %s295 = sadd.s32 %s294, 1
      %s296 = scalar_select %p293, %s294, %s295
      %p299 = pneg %p293
      %p300 = scmp.eq.s32.totalorder %s17, 1
      %p301 = por %p299, %p300
      %p302 = scmp.ne.s32.totalorder %s294, %s297
      %p303 = scmp.eq.s32.totalorder %s17, 0
      %p304 = por %p302, %p303
      %p305 = scmp.ne.s32.totalorder %s294, %s297
      %p306 = scmp.eq.s32.totalorder %s22, 1
      %p307 = por %p305, %p306
      %p308 = scmp.ne.s32.totalorder %s297, %s298
      %p309 = scmp.eq.s32.totalorder %s22, 0
      %p310 = por %p308, %p309
      %p311 = scmp.ne.s32.totalorder %s297, %s298
      %p312 = scmp.eq.s32.totalorder %s23, 1
      %p313 = por %p311, %p312
      %p315 = scmp.ne.s32.totalorder %s298, %s314
      %p316 = scmp.eq.s32.totalorder %s23, 0
      %p317 = por %p315, %p316
      %p318 = scmp.le.s32.totalorder 1, %s17
      %p319 = scmp.lt.s32.totalorder %s17, 3
      %p320 = pnand %p318, %p319
      %p321 = pneg %p320
      // Predicated region
      $region9: #{tpu_custom_call.1} parent=5 // pred_check
        _
      $region10: #{tpu_custom_call.1} parent=5 // pred_check_branch
        %323 = sbr.rel (%p320) target = $region12
      $region11: #{tpu_custom_call.1} parent=5 // pred_region
        %s324 = ssub.s32 %s17, 1
        // Predicated region
        $region13: #{tpu_custom_call.1} parent=11 // pred_check
          %p325 = pneg %p55
        $region14: #{tpu_custom_call.1} parent=11 // pred_check_branch
          %327 = sbr.rel (%p325) target = $region16
        $region15: #{tpu_custom_call.1} parent=11 // pred_region
          %s328 = smul.u32 2, %s26
          %p329 = scmp.lt.s32.totalorder %s328, 1
          %s330 = scalar_select %p329, %s328, 1
          %s331 = smul.addr %s330, 8
          %s332 = scalar_lea.vmem %s0, %s331
          %s333 = smul.u32 2, %s26
        $region16: #{tpu_custom_call.1} parent=11 // pred_fallthru
          _
        // Predicated region
        $region17: #{tpu_custom_call.1} parent=11 // pred_check
          %p334 = pneg %p81
        $region18: #{tpu_custom_call.1} parent=11 // pred_check_branch
          %336 = sbr.rel (%p334) target = $region20
        $region19: #{tpu_custom_call.1} parent=11 // pred_region
          %s337 = smul.u32 2, %s26
          %p338 = scmp.lt.s32.totalorder %s337, 1
          %s339 = scalar_select %p338, %s337, 1
          %s340 = scalar_lea.vmem %s1, %s339
          %s341 = smul.u32 2, %s26
        $region20: #{tpu_custom_call.1} parent=11 // pred_fallthru
          _
        // Predicated region
        $region21: #{tpu_custom_call.1} parent=11 // pred_check
          %p342 = pneg %p284
        $region22: #{tpu_custom_call.1} parent=11 // pred_check_branch
          %344 = sbr.rel (%p342) target = $region24
        $region23: #{tpu_custom_call.1} parent=11 // pred_region
          _
        $region24: #{tpu_custom_call.1} parent=11 // pred_fallthru
          _
      $region12: #{tpu_custom_call.1} parent=5 // pred_fallthru
        _
      %p345 = scmp.lt.s32.totalorder %s17, 2
      // Predicated region
      $region25: #{tpu_custom_call.1} parent=5 // pred_check
        %p346 = pneg %p345
      $region26: #{tpu_custom_call.1} parent=5 // pred_check_branch
        %348 = sbr.rel (%p346) target = $region28
      $region27: #{tpu_custom_call.1} parent=5 // pred_region
        // Predicated region
        $region29: #{tpu_custom_call.1} parent=27 // pred_check
          %p349 = pneg %p101
        $region30: #{tpu_custom_call.1} parent=27 // pred_check_branch
          %351 = sbr.rel (%p349) target = $region32
        $region31: #{tpu_custom_call.1} parent=27 // pred_region
          %p352 = scmp.lt.s32.totalorder %s25, 1
          %s353 = scalar_select %p352, %s25, 1
          %s354 = smul.addr %s353, 48
          %s355 = smul.addr %s354, 4
          %s356 = scalar_lea.vmem %s2, %s355
        $region32: #{tpu_custom_call.1} parent=27 // pred_fallthru
          _
        // Predicated region
        $region33: #{tpu_custom_call.1} parent=27 // pred_check
          %p357 = pneg %p127
        $region34: #{tpu_custom_call.1} parent=27 // pred_check_branch
          %359 = sbr.rel (%p357) target = $region36
        $region35: #{tpu_custom_call.1} parent=27 // pred_region
          %p360 = scmp.lt.s32.totalorder %s25, 1
          %s361 = scalar_select %p360, %s25, 1
          %s362 = smul.addr %s361, 12
          %s363 = scalar_lea.vmem %s3, %s362
        $region36: #{tpu_custom_call.1} parent=27 // pred_fallthru
          _
        // Predicated region
        $region37: #{tpu_custom_call.1} parent=27 // pred_check
          %p364 = pneg %p153
        $region38: #{tpu_custom_call.1} parent=27 // pred_check_branch
          %366 = sbr.rel (%p364) target = $region40
        $region39: #{tpu_custom_call.1} parent=27 // pred_region
          %p367 = scmp.lt.s32.totalorder %s25, 1
          %s368 = scalar_select %p367, %s25, 1
          %s369 = smul.addr %s368, 4
          %s370 = smul.addr %s369, 4
          %s371 = scalar_lea.vmem %s4, %s370
        $region40: #{tpu_custom_call.1} parent=27 // pred_fallthru
          _
        // Predicated region
        $region41: #{tpu_custom_call.1} parent=27 // pred_check
          %p372 = pneg %p179
        $region42: #{tpu_custom_call.1} parent=27 // pred_check_branch
          %374 = sbr.rel (%p372) target = $region44
        $region43: #{tpu_custom_call.1} parent=27 // pred_region
          %p375 = scmp.lt.s32.totalorder %s25, 1
          %s376 = scalar_select %p375, %s25, 1
          %s377 = smul.addr %s376, 4
          %s378 = smul.addr %s377, 4
          %s379 = scalar_lea.vmem %s5, %s378
        $region44: #{tpu_custom_call.1} parent=27 // pred_fallthru
          _
        // Predicated region
        $region45: #{tpu_custom_call.1} parent=27 // pred_check
          %p380 = pneg %p205
        $region46: #{tpu_custom_call.1} parent=27 // pred_check_branch
          %382 = sbr.rel (%p380) target = $region48
        $region47: #{tpu_custom_call.1} parent=27 // pred_region
          %p383 = scmp.lt.s32.totalorder %s25, 1
          %s384 = scalar_select %p383, %s25, 1
          %s385 = smul.addr %s384, 8
          %s386 = smul.addr %s385, 4
          %s387 = scalar_lea.vmem %s6, %s386
        $region48: #{tpu_custom_call.1} parent=27 // pred_fallthru
          _
        // Predicated region
        $region49: #{tpu_custom_call.1} parent=27 // pred_check
          %p388 = pneg %p231
        $region50: #{tpu_custom_call.1} parent=27 // pred_check_branch
          %390 = sbr.rel (%p388) target = $region52
        $region51: #{tpu_custom_call.1} parent=27 // pred_region
          %p391 = scmp.lt.s32.totalorder %s25, 1
          %s392 = scalar_select %p391, %s25, 1
          %s393 = smul.addr %s392, 8
          %s394 = scalar_lea.vmem %s7, %s393
        $region52: #{tpu_custom_call.1} parent=27 // pred_fallthru
          _
        // Predicated region
        $region53: #{tpu_custom_call.1} parent=27 // pred_check
          %p395 = pneg %p257
        $region54: #{tpu_custom_call.1} parent=27 // pred_check_branch
          %397 = sbr.rel (%p395) target = $region56
        $region55: #{tpu_custom_call.1} parent=27 // pred_region
          %p398 = scmp.lt.s32.totalorder %s25, 1
          %s399 = scalar_select %p398, %s25, 1
          %s400 = scalar_lea.vmem %s8, %s399
        $region56: #{tpu_custom_call.1} parent=27 // pred_fallthru
          _
      $region28: #{tpu_custom_call.1} parent=5 // pred_fallthru
        _
      %p401 = scmp.le.s32.totalorder 1, %s17
      %p402 = scmp.lt.s32.totalorder %s17, 3
      %p403 = pnand %p401, %p402
      %p404 = pneg %p403
      // Predicated region
      $region57: #{tpu_custom_call.1} parent=5 // pred_check
        _
      $region58: #{tpu_custom_call.1} parent=5 // pred_check_branch
        %406 = sbr.rel (%p403) target = $region60
      $region59: #{tpu_custom_call.1} parent=5 // pred_region
        %s407 = ssub.s32 %s17, 1
        %s408 = smul.u32 2, %s26
        %p409 = scmp.lt.s32.totalorder %s408, 1
        %s410 = scalar_select %p409, %s408, 1
        %s411 = smul.addr %s410, 8
        %s412 = scalar_lea.vmem %s0, %s411
        %p413 = pneg %p55
        %p414 = pneg %p52
        %s415 = smul.u32 2, %s26
        %p416 = scmp.lt.s32.totalorder %s415, 1
        %s417 = scalar_select %p416, %s415, 1
        %s418 = scalar_lea.vmem %s1, %s417
        %p419 = pneg %p81
        %p420 = pneg %p78
        %p421 = scmp.lt.s32.totalorder %s27, 1
        %s422 = scalar_select %p421, %s27, 1
        %s423 = smul.addr %s422, 48
        %s424 = smul.addr %s423, 4
        %s425 = scalar_lea.vmem %s2, %s424
        %p426 = pneg %p107
        %p427 = pneg %p104
        %p428 = scmp.lt.s32.totalorder %s27, 1
        %s429 = scalar_select %p428, %s27, 1
        %s430 = smul.addr %s429, 12
        %s431 = scalar_lea.vmem %s3, %s430
        %p432 = pneg %p133
        %p433 = pneg %p130
        %p434 = scmp.lt.s32.totalorder %s27, 1
        %s435 = scalar_select %p434, %s27, 1
        %s436 = smul.addr %s435, 4
        %s437 = smul.addr %s436, 4
        %s438 = scalar_lea.vmem %s4, %s437
        %p439 = pneg %p159
        %p440 = pneg %p156
        %p441 = scmp.lt.s32.totalorder %s27, 1
        %s442 = scalar_select %p441, %s27, 1
        %s443 = smul.addr %s442, 4
        %s444 = smul.addr %s443, 4
        %s445 = scalar_lea.vmem %s5, %s444
        %p446 = pneg %p185
        %p447 = pneg %p182
        %p448 = scmp.lt.s32.totalorder %s27, 1
        %s449 = scalar_select %p448, %s27, 1
        %s450 = smul.addr %s449, 8
        %s451 = smul.addr %s450, 4
        %s452 = scalar_lea.vmem %s6, %s451
        %p453 = pneg %p211
        %p454 = pneg %p208
        %p455 = scmp.lt.s32.totalorder %s27, 1
        %s456 = scalar_select %p455, %s27, 1
        %s457 = smul.addr %s456, 8
        %s458 = scalar_lea.vmem %s7, %s457
        %p459 = pneg %p237
        %p460 = pneg %p234
        %p461 = scmp.lt.s32.totalorder %s27, 1
        %s462 = scalar_select %p461, %s27, 1
        %s463 = scalar_lea.vmem %s8, %s462
        %p464 = pneg %p263
        %p465 = pneg %p260
        %p466 = pneg %p284
        %p467 = pneg %p281
        %p468 = pneg %p310
        %p469 = pneg %p307
        %s470 = smul.u32 2, %s26
        %p471 = scmp.lt.s32.totalorder %s470, 1
        %s472 = scalar_select %p471, %s470, 1
        %s473 = smul.addr %s472, 8
        %s474 = scalar_lea.vmem %s0, %s473
        %s475 = smul.u32 2, %s26
        %s476 = smul.u32 2, %s26
        %p477 = scmp.lt.s32.totalorder %s476, 1
        %s478 = scalar_select %p477, %s476, 1
        %s479 = scalar_lea.vmem %s1, %s478
        %s480 = smul.u32 2, %s26
        %p481 = scmp.lt.s32.totalorder %s27, 1
        %s482 = scalar_select %p481, %s27, 1
        %s483 = smul.addr %s482, 48
        %s484 = smul.addr %s483, 4
        %s485 = scalar_lea.vmem %s2, %s484
        %p486 = scmp.lt.s32.totalorder %s27, 1
        %s487 = scalar_select %p486, %s27, 1
        %s488 = smul.addr %s487, 12
        %s489 = scalar_lea.vmem %s3, %s488
        %p490 = scmp.lt.s32.totalorder %s27, 1
        %s491 = scalar_select %p490, %s27, 1
        %s492 = smul.addr %s491, 4
        %s493 = smul.addr %s492, 4
        %s494 = scalar_lea.vmem %s4, %s493
        %p495 = scmp.lt.s32.totalorder %s27, 1
        %s496 = scalar_select %p495, %s27, 1
        %s497 = smul.addr %s496, 4
        %s498 = smul.addr %s497, 4
        %s499 = scalar_lea.vmem %s5, %s498
        %p500 = scmp.lt.s32.totalorder %s27, 1
        %s501 = scalar_select %p500, %s27, 1
        %s502 = smul.addr %s501, 8
        %s503 = smul.addr %s502, 4
        %s504 = scalar_lea.vmem %s6, %s503
        %p505 = scmp.lt.s32.totalorder %s27, 1
        %s506 = scalar_select %p505, %s27, 1
        %s507 = smul.addr %s506, 8
        %s508 = scalar_lea.vmem %s7, %s507
        %p509 = scmp.lt.s32.totalorder %s27, 1
        %s510 = scalar_select %p509, %s27, 1
        %s511 = scalar_lea.vmem %s8, %s510
        %s512 = smul.u32 2, %s26
        %p514 = scmp.eq.s32.totalorder %s27, 0
        // Predicated region
        $region61: #{tpu_custom_call.1} parent=59 // pred_check
          %p515 = pneg %p514
        $region62: #{tpu_custom_call.1} parent=59 // pred_check_branch
          %517 = sbr.rel (%p515) target = $region64
        $region63: #{tpu_custom_call.1} parent=59 // pred_region
          %v518 = vld [vmem:[%s474] sm:$0xff]
          %v519 = vld [vmem:[%s474 + $0x8] sm:$0xff]
          %vm520 = vcmask 261120
          %521 = vst.msk [vmem:[#allocation2] sm:$0xff] %vm520, %v518
          %522 = vst.msk [vmem:[#allocation2 + $0x8] sm:$0xff] %vm520, %v519
        $region64: #{tpu_custom_call.1} parent=59 // pred_fallthru
          _
        %v523 = vld [vmem:[#allocation2] sm:$0xff]
        %v524 = vld [vmem:[#allocation2 + $0x8] sm:$0xff]
        %v525 = vld [vmem:[%s508] sm:$0x3f]
        %v526 = vld [vmem:[%s479] sm:$0x1]
        %v527 = vld [vmem:[%s479 + $0x1] sm:$0x1]
        %vm528 = vcmask 261120
        %v529 = vsel %vm528, %v523, 0.0
        %530 = vadd.xlane.f32.xlu0 %v529
        %v531 = vpop.xlane.xlu0 %530
        %v532 = vsel %vm528, %v524, 0.0
        %533 = vadd.xlane.f32.xlu0 %v532
        %v534 = vpop.xlane.xlu0 %533
        %v535 = vrcp.pop 32.0
        %v536 = vmul.f32 %v531, %v535
        %v537 = vmul.f32 %v534, %v535
        %v538 = vsub.f32 %v523, %v536
        %v539 = vsub.f32 %v524, %v537
        %v540 = vmul.f32 %v538, %v538
        %v541 = vmul.f32 %v539, %v539
        %v542 = vsel %vm528, %v540, 0.0
        %543 = vadd.xlane.f32.xlu0 %v542
        %v544 = vpop.xlane.xlu0 %543
        %v545 = vsel %vm528, %v541, 0.0
        %546 = vadd.xlane.f32.xlu0 %v545
        %v547 = vpop.xlane.xlu0 %546
        %v548 = vmul.f32 %v544, %v535
        %v549 = vmul.f32 %v547, %v535
        %v550 = vadd.f32 %v548, 1e-06
        %v551 = vadd.f32 %v549, 1e-06
        %v552 = vrsqrt.pop %v550
        %v553 = vrsqrt.pop %v551
        %v554 = vmul.f32 %v538, %v552
        %v555 = vmul.f32 %v539, %v553
        %v556 = vlaneseq
        %v557 = vshrl.u32 %v556, 7
        %v558 = vsub.s32 0, %v557
        %v559 = vrot.slane %v525, %v558
        %v560 = vmul.f32 %v554, %v559
        %v561 = vmul.f32 %v555, %v559
        %v562 = vlaneseq
        %v563 = vshrl.u32 %v562, 7
        %v564 = vsub.s32 1, %v563
        %v565 = vrot.slane %v525, %v564
        %v566 = vadd.f32 %v560, %v565
        %v567 = vadd.f32 %v561, %v565
        %v568 = vpack.c.bf16 %v567, %v566
        %v569 = vld [vmem:[%s485] sm:$0xf]
        %v570 = vld [vmem:[%s485 + $0x4] sm:$0xf]
        %v571 = vld [vmem:[%s485 + $0x8] sm:$0xf]
        %v572 = vld [vmem:[%s485 + $0xc] sm:$0xf]
        %v573 = vld [vmem:[%s489] sm:$0x1]
        %v575 = vlaneseq
        %v576 = vshrl.u32 %v575, 7
        %v577 = vsub.s32 0, %v576
        %v578 = vrot.slane %v573, %v577
        %v584 = vunpack.c.l.b16 %v569
        %v585 = vunpack.c.l.b16 %v570
        %v586 = vunpack.c.l.b16 %v571
        %v587 = vunpack.c.l.b16 %v572
        %v588 = vpack.c.b16 %v585, %v584
        %v589 = vpack.c.b16 %v587, %v586
        %v593 = vsel %vm528, %v568, 0
        %595 = vmatprep.subr.bf16.mxu0 0
        %596 = vmatpush1.bf16.msra.mxu0 %v588
        %597 = vmatprep.subr.bf16.mxu0 0
        %598 = vmatpush1.bf16.msra.mxu0 %v589
        %599 = vmatprep.subr.bf16.mxu0 0
        %600 = vmatpush1.bf16.msra.mxu0 0
        %601 = vmatprep.subr.bf16.mxu0 0
        %602 = vmatpush1.bf16.msra.mxu0 0
        %603 = vmatprep.subr.bf16.mxu0 0
        %604 = vmatpush1.bf16.msra.mxu0 0
        %605 = vmatprep.subr.bf16.mxu0 0
        %606 = vmatpush1.bf16.msra.mxu0 0
        %607 = vmatprep.subr.bf16.mxu0 0
        %608 = vmatpush1.bf16.msra.mxu0 0
        %609 = vmatprep.subr.bf16.mxu0 0
        %610 = vmatpush1.bf16.msra.mxu0 0
        %611 = vmatprep.subr.bf16.mxu0 0
        %612 = vmatpush1.bf16.msra.mxu0 0
        %613 = vmatprep.subr.bf16.mxu0 0
        %614 = vmatpush1.bf16.msra.mxu0 0
        %615 = vmatprep.subr.bf16.mxu0 0
        %616 = vmatpush1.bf16.msra.mxu0 0
        %617 = vmatprep.subr.bf16.mxu0 0
        %618 = vmatpush1.bf16.msra.mxu0 0
        %619 = vmatprep.subr.bf16.mxu0 0
        %620 = vmatpush1.bf16.msra.mxu0 0
        %621 = vmatprep.subr.bf16.mxu0 0
        %622 = vmatpush1.bf16.msra.mxu0 0
        %623 = vmatprep.subr.bf16.mxu0 0
        %624 = vmatpush1.bf16.msra.mxu0 0
        %625 = vmatprep.subr.bf16.mxu0 0
        %626 = vmatpush1.bf16.msra.mxu0 0
        %627 = vmatprep.mubr.bf16.mxu0 0
        %628 = vmatmul.mubr.bf16.gmra.mrb[0].mxu0 %v593
        %v629 = vpop.f32.mrb[0].mxu0
        %v630 = vadd.f32 %v578, %v629
        %v631 = vpop.f32.mrb[0].mxu0
        %v632 = vpop.f32.mrb[0].mxu0
        %v633 = vadd.f32 %v578, %v632
        %v634 = vpop.f32.mrb[0].mxu0
        %635 = vdwg.mxu0
        %v636 = vpack.c.bf16 %v633, %v630
        %v638 = vunpack.c.l.b16 %v636
        %v639 = vunpack.c.h.b16 %v636
        %v640 = vpack.c.b16 %v638, %v638
        %v641 = vpack.c.b16 %v639, %v639
        %s642 = scalar_lea.vmem %s485, 64
        %v643 = vld [vmem:[%s642] sm:$0xf]
        %v644 = vld [vmem:[%s642 + $0x4] sm:$0xf]
        %v645 = vld [vmem:[%s642 + $0x8] sm:$0xf]
        %v646 = vld [vmem:[%s642 + $0xc] sm:$0xf]
        %s647 = scalar_lea.vmem %s489, 4
        %v648 = vld [vmem:[%s647] sm:$0x1]
        %v650 = vlaneseq
        %v651 = vshrl.u32 %v650, 7
        %v652 = vsub.s32 0, %v651
        %v653 = vrot.slane %v648, %v652
        %v659 = vunpack.c.l.b16 %v643
        %v660 = vunpack.c.l.b16 %v644
        %v661 = vunpack.c.l.b16 %v645
        %v662 = vunpack.c.l.b16 %v646
        %v663 = vpack.c.b16 %v660, %v659
        %v664 = vpack.c.b16 %v662, %v661
        %667 = vmatprep.subr.bf16.mxu0 0
        %668 = vmatpush1.bf16.msra.mxu0 %v663
        %669 = vmatprep.subr.bf16.mxu0 0
        %670 = vmatpush1.bf16.msra.mxu0 %v664
        %671 = vmatprep.subr.bf16.mxu0 0
        %672 = vmatpush1.bf16.msra.mxu0 0
        %673 = vmatprep.subr.bf16.mxu0 0
        %674 = vmatpush1.bf16.msra.mxu0 0
        %675 = vmatprep.subr.bf16.mxu0 0
        %676 = vmatpush1.bf16.msra.mxu0 0
        %677 = vmatprep.subr.bf16.mxu0 0
        %678 = vmatpush1.bf16.msra.mxu0 0
        %679 = vmatprep.subr.bf16.mxu0 0
        %680 = vmatpush1.bf16.msra.mxu0 0
        %681 = vmatprep.subr.bf16.mxu0 0
        %682 = vmatpush1.bf16.msra.mxu0 0
        %683 = vmatprep.subr.bf16.mxu0 0
        %684 = vmatpush1.bf16.msra.mxu0 0
        %685 = vmatprep.subr.bf16.mxu0 0
        %686 = vmatpush1.bf16.msra.mxu0 0
        %687 = vmatprep.subr.bf16.mxu0 0
        %688 = vmatpush1.bf16.msra.mxu0 0
        %689 = vmatprep.subr.bf16.mxu0 0
        %690 = vmatpush1.bf16.msra.mxu0 0
        %691 = vmatprep.subr.bf16.mxu0 0
        %692 = vmatpush1.bf16.msra.mxu0 0
        %693 = vmatprep.subr.bf16.mxu0 0
        %694 = vmatpush1.bf16.msra.mxu0 0
        %695 = vmatprep.subr.bf16.mxu0 0
        %696 = vmatpush1.bf16.msra.mxu0 0
        %697 = vmatprep.subr.bf16.mxu0 0
        %698 = vmatpush1.bf16.msra.mxu0 0
        %699 = vmatprep.mubr.bf16.mxu0 0
        %700 = vmatmul.mubr.bf16.gmra.mrb[0].mxu0 %v593
        %v701 = vpop.f32.mrb[0].mxu0
        %v702 = vadd.f32 %v653, %v701
        %v703 = vpop.f32.mrb[0].mxu0
        %v704 = vpop.f32.mrb[0].mxu0
        %v705 = vadd.f32 %v653, %v704
        %v706 = vpop.f32.mrb[0].mxu0
        %707 = vdwg.mxu0
        %v708 = vpack.c.bf16 %v705, %v702
        %v710 = vunpack.c.l.b16 %v708
        %v711 = vunpack.c.h.b16 %v708
        %v712 = vpack.c.b16 %v710, %v710
        %v713 = vpack.c.b16 %v711, %v711
        %s714 = scalar_lea.vmem %s485, 128
        %v715 = vld [vmem:[%s714] sm:$0xf]
        %v716 = vld [vmem:[%s714 + $0x4] sm:$0xf]
        %v717 = vld [vmem:[%s714 + $0x8] sm:$0xf]
        %v718 = vld [vmem:[%s714 + $0xc] sm:$0xf]
        %s719 = scalar_lea.vmem %s489, 8
        %v720 = vld [vmem:[%s719] sm:$0x1]
        %v722 = vlaneseq
        %v723 = vshrl.u32 %v722, 7
        %v724 = vsub.s32 0, %v723
        %v725 = vrot.slane %v720, %v724
        %v731 = vunpack.c.l.b16 %v715
        %v732 = vunpack.c.l.b16 %v716
        %v733 = vunpack.c.l.b16 %v717
        %v734 = vunpack.c.l.b16 %v718
        %v735 = vpack.c.b16 %v732, %v731
        %v736 = vpack.c.b16 %v734, %v733
        %739 = vmatprep.subr.bf16.mxu0 0
        %740 = vmatpush1.bf16.msra.mxu0 %v735
        %741 = vmatprep.subr.bf16.mxu0 0
        %742 = vmatpush1.bf16.msra.mxu0 %v736
        %743 = vmatprep.subr.bf16.mxu0 0
        %744 = vmatpush1.bf16.msra.mxu0 0
        %745 = vmatprep.subr.bf16.mxu0 0
        %746 = vmatpush1.bf16.msra.mxu0 0
        %747 = vmatprep.subr.bf16.mxu0 0
        %748 = vmatpush1.bf16.msra.mxu0 0
        %749 = vmatprep.subr.bf16.mxu0 0
        %750 = vmatpush1.bf16.msra.mxu0 0
        %751 = vmatprep.subr.bf16.mxu0 0
        %752 = vmatpush1.bf16.msra.mxu0 0
        %753 = vmatprep.subr.bf16.mxu0 0
        %754 = vmatpush1.bf16.msra.mxu0 0
        %755 = vmatprep.subr.bf16.mxu0 0
        %756 = vmatpush1.bf16.msra.mxu0 0
        %757 = vmatprep.subr.bf16.mxu0 0
        %758 = vmatpush1.bf16.msra.mxu0 0
        %759 = vmatprep.subr.bf16.mxu0 0
        %760 = vmatpush1.bf16.msra.mxu0 0
        %761 = vmatprep.subr.bf16.mxu0 0
        %762 = vmatpush1.bf16.msra.mxu0 0
        %763 = vmatprep.subr.bf16.mxu0 0
        %764 = vmatpush1.bf16.msra.mxu0 0
        %765 = vmatprep.subr.bf16.mxu0 0
        %766 = vmatpush1.bf16.msra.mxu0 0
        %767 = vmatprep.subr.bf16.mxu0 0
        %768 = vmatpush1.bf16.msra.mxu0 0
        %769 = vmatprep.subr.bf16.mxu0 0
        %770 = vmatpush1.bf16.msra.mxu0 0
        %771 = vmatprep.mubr.bf16.mxu0 0
        %772 = vmatmul.mubr.bf16.gmra.mrb[0].mxu0 %v593
        %v773 = vpop.f32.mrb[0].mxu0
        %v774 = vadd.f32 %v725, %v773
        %v775 = vpop.f32.mrb[0].mxu0
        %v776 = vpop.f32.mrb[0].mxu0
        %v777 = vadd.f32 %v725, %v776
        %v778 = vpop.f32.mrb[0].mxu0
        %779 = vdwg.mxu0
        %v780 = vpack.c.bf16 %v777, %v774
        %v782 = vunpack.c.l.b16 %v780
        %v783 = vunpack.c.h.b16 %v780
        %v784 = vpack.c.b16 %v782, %v782
        %v785 = vpack.c.b16 %v783, %v783
        %vm786 = vcmask 64512
        %v788 = vsel %vm786, %v640, 0
        %v791 = vsel %vm786, %v712, 0
        %793 = vmatprep.subr.bf16.mxu0 0
        %794 = vmatpush1.bf16.xpose.msra.mxu0 %v791
        %795 = vmatprep.subr.bf16.mxu0 0
        %796 = vmatpush1.bf16.xpose.msra.mxu0 0
        %797 = vmatprep.subr.bf16.mxu0 0
        %798 = vmatpush1.bf16.xpose.msra.mxu0 0
        %799 = vmatprep.subr.bf16.mxu0 0
        %800 = vmatpush1.bf16.xpose.msra.mxu0 0
        %801 = vmatprep.subr.bf16.mxu0 0
        %802 = vmatpush1.bf16.xpose.msra.mxu0 0
        %803 = vmatprep.subr.bf16.mxu0 0
        %804 = vmatpush1.bf16.xpose.msra.mxu0 0
        %805 = vmatprep.subr.bf16.mxu0 0
        %806 = vmatpush1.bf16.xpose.msra.mxu0 0
        %807 = vmatprep.subr.bf16.mxu0 0
        %808 = vmatpush1.bf16.xpose.msra.mxu0 0
        %809 = vmatprep.subr.bf16.mxu0 0
        %810 = vmatpush1.bf16.xpose.msra.mxu0 0
        %811 = vmatprep.subr.bf16.mxu0 0
        %812 = vmatpush1.bf16.xpose.msra.mxu0 0
        %813 = vmatprep.subr.bf16.mxu0 0
        %814 = vmatpush1.bf16.xpose.msra.mxu0 0
        %815 = vmatprep.subr.bf16.mxu0 0
        %816 = vmatpush1.bf16.xpose.msra.mxu0 0
        %817 = vmatprep.subr.bf16.mxu0 0
        %818 = vmatpush1.bf16.xpose.msra.mxu0 0
        %819 = vmatprep.subr.bf16.mxu0 0
        %820 = vmatpush1.bf16.xpose.msra.mxu0 0
        %821 = vmatprep.subr.bf16.mxu0 0
        %822 = vmatpush1.bf16.xpose.msra.mxu0 0
        %823 = vmatprep.subr.bf16.mxu0 0
        %824 = vmatpush1.bf16.xpose.msra.mxu0 0
        %825 = vmatprep.mubr.bf16.mxu0 0
        %826 = vmatmul.mubr.bf16.gmra.mrb[0].mxu0 %v788
        %v827 = vpop.f32.mrb[0].mxu0
        %v828 = vadd.f32 0.0, %v827
        %v829 = vpop.f32.mrb[0].mxu0
        %v830 = vpop.f32.mrb[0].mxu0
        %v831 = vpop.f32.mrb[0].mxu0
        %832 = vdwg.mxu0
        %v834 = vsel %vm786, %v641, 0
        %v837 = vsel %vm786, %v713, 0
        %839 = vmatprep.subr.bf16.mxu0 0
        %840 = vmatpush1.bf16.xpose.msra.mxu0 %v837
        %841 = vmatprep.subr.bf16.mxu0 0
        %842 = vmatpush1.bf16.xpose.msra.mxu0 0
        %843 = vmatprep.subr.bf16.mxu0 0
        %844 = vmatpush1.bf16.xpose.msra.mxu0 0
        %845 = vmatprep.subr.bf16.mxu0 0
        %846 = vmatpush1.bf16.xpose.msra.mxu0 0
        %847 = vmatprep.subr.bf16.mxu0 0
        %848 = vmatpush1.bf16.xpose.msra.mxu0 0
        %849 = vmatprep.subr.bf16.mxu0 0
        %850 = vmatpush1.bf16.xpose.msra.mxu0 0
        %851 = vmatprep.subr.bf16.mxu0 0
        %852 = vmatpush1.bf16.xpose.msra.mxu0 0
        %853 = vmatprep.subr.bf16.mxu0 0
        %854 = vmatpush1.bf16.xpose.msra.mxu0 0
        %855 = vmatprep.subr.bf16.mxu0 0
        %856 = vmatpush1.bf16.xpose.msra.mxu0 0
        %857 = vmatprep.subr.bf16.mxu0 0
        %858 = vmatpush1.bf16.xpose.msra.mxu0 0
        %859 = vmatprep.subr.bf16.mxu0 0
        %860 = vmatpush1.bf16.xpose.msra.mxu0 0
        %861 = vmatprep.subr.bf16.mxu0 0
        %862 = vmatpush1.bf16.xpose.msra.mxu0 0
        %863 = vmatprep.subr.bf16.mxu0 0
        %864 = vmatpush1.bf16.xpose.msra.mxu0 0
        %865 = vmatprep.subr.bf16.mxu0 0
        %866 = vmatpush1.bf16.xpose.msra.mxu0 0
        %867 = vmatprep.subr.bf16.mxu0 0
        %868 = vmatpush1.bf16.xpose.msra.mxu0 0
        %869 = vmatprep.subr.bf16.mxu0 0
        %870 = vmatpush1.bf16.xpose.msra.mxu0 0
        %871 = vmatprep.mubr.bf16.mxu0 0
        %872 = vmatmul.mubr.bf16.gmra.mrb[0].mxu0 %v834
        %v873 = vpop.f32.mrb[0].mxu0
        %v874 = vadd.f32 0.0, %v873
        %v875 = vpop.f32.mrb[0].mxu0
        %v876 = vpop.f32.mrb[0].mxu0
        %v877 = vpop.f32.mrb[0].mxu0
        %878 = vdwg.mxu0
        %vm879 = vcmp.gt.f32.partialorder %v526, 0.0
        %vm880 = vcmp.gt.f32.partialorder %v527, 0.0
        %v881 = vsel %vm879, 1, 0
        %v882 = vsel %vm880, 1, 0
        %v883 = vlaneseq
        %v884 = vshrl.u32 %v883, 7
        %v885 = vsub.s32 0, %v884
        %v886 = vrot.slane %v881, %v885
        %v887 = vlaneseq
        %v888 = vshrl.u32 %v887, 7
        %v889 = vsub.s32 0, %v888
        %v890 = vrot.slane %v882, %v889
        %vm891 = vcmp.eq.s32.totalorder %v886, 1
        %vm892 = vcmp.eq.s32.totalorder %v890, 1
        %v893 = vsel %vm891, %v828, -1e+09
        %v894 = vsel %vm892, %v874, -1e+09
        %v895 = vsel %vm786, %v893, -inf
        %896 = vmax.xlane.f32.xlu0 %v895
        %v897 = vpop.xlane.xlu0 %896
        %v898 = vsel %vm786, %v894, -inf
        %899 = vmax.xlane.f32.xlu0 %v898
        %v900 = vpop.xlane.xlu0 %899
        %v901 = vsub.f32 %v893, %v897
        %v902 = vsub.f32 %v894, %v900
        %v903 = vmul.f32 %v901, 1.442695
        %v904 = vpow.pop %v903
        %v905 = vmul.f32 %v902, 1.442695
        %v906 = vpow.pop %v905
        %v907 = vsel %vm786, %v904, 0.0
        %908 = vadd.xlane.f32.xlu0 %v907
        %v909 = vpop.xlane.xlu0 %908
        %v910 = vsel %vm786, %v906, 0.0
        %911 = vadd.xlane.f32.xlu0 %v910
        %v912 = vpop.xlane.xlu0 %911
        %v913 = vrcp.pop %v909
        %v914 = vrcp.pop %v912
        %v915 = vmul.f32 %v904, %v913
        %v916 = vmul.f32 %v906, %v914
        %v917 = vpack.c.bf16 %v915, %v915
        %v918 = vpack.c.bf16 %v916, %v916
        %v920 = vsel %vm786, %v917, 0
        %vm922 = vcmask 1043456
        %v924 = vsel %vm922, %v784, 0
        %926 = vmatprep.subr.bf16.mxu0 0
        %927 = vmatpush1.bf16.msra.mxu0 %v924
        %928 = vmatprep.subr.bf16.mxu0 0
        %929 = vmatpush1.bf16.msra.mxu0 0
        %930 = vmatprep.subr.bf16.mxu0 0
        %931 = vmatpush1.bf16.msra.mxu0 0
        %932 = vmatprep.subr.bf16.mxu0 0
        %933 = vmatpush1.bf16.msra.mxu0 0
        %934 = vmatprep.subr.bf16.mxu0 0
        %935 = vmatpush1.bf16.msra.mxu0 0
        %936 = vmatprep.subr.bf16.mxu0 0
        %937 = vmatpush1.bf16.msra.mxu0 0
        %938 = vmatprep.subr.bf16.mxu0 0
        %939 = vmatpush1.bf16.msra.mxu0 0
        %940 = vmatprep.subr.bf16.mxu0 0
        %941 = vmatpush1.bf16.msra.mxu0 0
        %942 = vmatprep.subr.bf16.mxu0 0
        %943 = vmatpush1.bf16.msra.mxu0 0
        %944 = vmatprep.subr.bf16.mxu0 0
        %945 = vmatpush1.bf16.msra.mxu0 0
        %946 = vmatprep.subr.bf16.mxu0 0
        %947 = vmatpush1.bf16.msra.mxu0 0
        %948 = vmatprep.subr.bf16.mxu0 0
        %949 = vmatpush1.bf16.msra.mxu0 0
        %950 = vmatprep.subr.bf16.mxu0 0
        %951 = vmatpush1.bf16.msra.mxu0 0
        %952 = vmatprep.subr.bf16.mxu0 0
        %953 = vmatpush1.bf16.msra.mxu0 0
        %954 = vmatprep.subr.bf16.mxu0 0
        %955 = vmatpush1.bf16.msra.mxu0 0
        %956 = vmatprep.subr.bf16.mxu0 0
        %957 = vmatpush1.bf16.msra.mxu0 0
        %958 = vmatprep.mubr.bf16.mxu0 0
        %959 = vmatmul.mubr.bf16.gmra.mrb[0].mxu0 %v920
        %v960 = vpop.f32.mrb[0].mxu0
        %v961 = vadd.f32 0.0, %v960
        %v962 = vpop.f32.mrb[0].mxu0
        %v963 = vpop.f32.mrb[0].mxu0
        %v964 = vpop.f32.mrb[0].mxu0
        %965 = vdwg.mxu0
        %v967 = vsel %vm786, %v918, 0
        %v970 = vsel %vm922, %v785, 0
        %972 = vmatprep.subr.bf16.mxu0 0
        %973 = vmatpush1.bf16.msra.mxu0 %v970
        %974 = vmatprep.subr.bf16.mxu0 0
        %975 = vmatpush1.bf16.msra.mxu0 0
        %976 = vmatprep.subr.bf16.mxu0 0
        %977 = vmatpush1.bf16.msra.mxu0 0
        %978 = vmatprep.subr.bf16.mxu0 0
        %979 = vmatpush1.bf16.msra.mxu0 0
        %980 = vmatprep.subr.bf16.mxu0 0
        %981 = vmatpush1.bf16.msra.mxu0 0
        %982 = vmatprep.subr.bf16.mxu0 0
        %983 = vmatpush1.bf16.msra.mxu0 0
        %984 = vmatprep.subr.bf16.mxu0 0
        %985 = vmatpush1.bf16.msra.mxu0 0
        %986 = vmatprep.subr.bf16.mxu0 0
        %987 = vmatpush1.bf16.msra.mxu0 0
        %988 = vmatprep.subr.bf16.mxu0 0
        %989 = vmatpush1.bf16.msra.mxu0 0
        %990 = vmatprep.subr.bf16.mxu0 0
        %991 = vmatpush1.bf16.msra.mxu0 0
        %992 = vmatprep.subr.bf16.mxu0 0
        %993 = vmatpush1.bf16.msra.mxu0 0
        %994 = vmatprep.subr.bf16.mxu0 0
        %995 = vmatpush1.bf16.msra.mxu0 0
        %996 = vmatprep.subr.bf16.mxu0 0
        %997 = vmatpush1.bf16.msra.mxu0 0
        %998 = vmatprep.subr.bf16.mxu0 0
        %999 = vmatpush1.bf16.msra.mxu0 0
        %1000 = vmatprep.subr.bf16.mxu0 0
        %1001 = vmatpush1.bf16.msra.mxu0 0
        %1002 = vmatprep.subr.bf16.mxu0 0
        %1003 = vmatpush1.bf16.msra.mxu0 0
        %1004 = vmatprep.mubr.bf16.mxu0 0
        %1005 = vmatmul.mubr.bf16.gmra.mrb[0].mxu0 %v967
        %v1006 = vpop.f32.mrb[0].mxu0
        %v1007 = vadd.f32 0.0, %v1006
        %v1008 = vpop.f32.mrb[0].mxu0
        %v1009 = vpop.f32.mrb[0].mxu0
        %v1010 = vpop.f32.mrb[0].mxu0
        %1011 = vdwg.mxu0
        %v1012 = vpack.c.bf16 %v1007, %v961
        %s1013 = scalar_lea.vmem %s485, 16
        %v1014 = vld [vmem:[%s1013] sm:$0xf]
        %v1015 = vld [vmem:[%s1013 + $0x4] sm:$0xf]
        %v1016 = vld [vmem:[%s1013 + $0x8] sm:$0xf]
        %v1017 = vld [vmem:[%s1013 + $0xc] sm:$0xf]
        %s1018 = scalar_lea.vmem %s489, 1
        %v1019 = vld [vmem:[%s1018] sm:$0x1]
        %v1021 = vlaneseq
        %v1022 = vshrl.u32 %v1021, 7
        %v1023 = vsub.s32 0, %v1022
        %v1024 = vrot.slane %v1019, %v1023
        %v1030 = vunpack.c.l.b16 %v1014
        %v1031 = vunpack.c.l.b16 %v1015
        %v1032 = vunpack.c.l.b16 %v1016
        %v1033 = vunpack.c.l.b16 %v1017
        %v1034 = vpack.c.b16 %v1031, %v1030
        %v1035 = vpack.c.b16 %v1033, %v1032
        %1038 = vmatprep.subr.bf16.mxu0 0
        %1039 = vmatpush1.bf16.msra.mxu0 %v1034
        %1040 = vmatprep.subr.bf16.mxu0 0
        %1041 = vmatpush1.bf16.msra.mxu0 %v1035
        %1042 = vmatprep.subr.bf16.mxu0 0
        %1043 = vmatpush1.bf16.msra.mxu0 0
        %1044 = vmatprep.subr.bf16.mxu0 0
        %1045 = vmatpush1.bf16.msra.mxu0 0
        %1046 = vmatprep.subr.bf16.mxu0 0
        %1047 = vmatpush1.bf16.msra.mxu0 0
        %1048 = vmatprep.subr.bf16.mxu0 0
        %1049 = vmatpush1.bf16.msra.mxu0 0
        %1050 = vmatprep.subr.bf16.mxu0 0
        %1051 = vmatpush1.bf16.msra.mxu0 0
        %1052 = vmatprep.subr.bf16.mxu0 0
        %1053 = vmatpush1.bf16.msra.mxu0 0
        %1054 = vmatprep.subr.bf16.mxu0 0
        %1055 = vmatpush1.bf16.msra.mxu0 0
        %1056 = vmatprep.subr.bf16.mxu0 0
        %1057 = vmatpush1.bf16.msra.mxu0 0
        %1058 = vmatprep.subr.bf16.mxu0 0
        %1059 = vmatpush1.bf16.msra.mxu0 0
        %1060 = vmatprep.subr.bf16.mxu0 0
        %1061 = vmatpush1.bf16.msra.mxu0 0
        %1062 = vmatprep.subr.bf16.mxu0 0
        %1063 = vmatpush1.bf16.msra.mxu0 0
        %1064 = vmatprep.subr.bf16.mxu0 0
        %1065 = vmatpush1.bf16.msra.mxu0 0
        %1066 = vmatprep.subr.bf16.mxu0 0
        %1067 = vmatpush1.bf16.msra.mxu0 0
        %1068 = vmatprep.subr.bf16.mxu0 0
        %1069 = vmatpush1.bf16.msra.mxu0 0
        %1070 = vmatprep.mubr.bf16.mxu0 0
        %1071 = vmatmul.mubr.bf16.gmra.mrb[0].mxu0 %v593
        %v1072 = vpop.f32.mrb[0].mxu0
        %v1073 = vadd.f32 %v1024, %v1072
        %v1074 = vpop.f32.mrb[0].mxu0
        %v1075 = vpop.f32.mrb[0].mxu0
        %v1076 = vadd.f32 %v1024, %v1075
        %v1077 = vpop.f32.mrb[0].mxu0
        %1078 = vdwg.mxu0
        %v1079 = vpack.c.bf16 %v1076, %v1073
        %v1081 = vunpack.c.l.b16 %v1079
        %v1082 = vunpack.c.h.b16 %v1079
        %v1083 = vpack.c.b16 %v1081, %v1081
        %v1084 = vpack.c.b16 %v1082, %v1082
        %s1085 = scalar_lea.vmem %s485, 80
        %v1086 = vld [vmem:[%s1085] sm:$0xf]
        %v1087 = vld [vmem:[%s1085 + $0x4] sm:$0xf]
        %v1088 = vld [vmem:[%s1085 + $0x8] sm:$0xf]
        %v1089 = vld [vmem:[%s1085 + $0xc] sm:$0xf]
        %s1090 = scalar_lea.vmem %s489, 5
        %v1091 = vld [vmem:[%s1090] sm:$0x1]
        %v1093 = vlaneseq
        %v1094 = vshrl.u32 %v1093, 7
        %v1095 = vsub.s32 0, %v1094
        %v1096 = vrot.slane %v1091, %v1095
        %v1102 = vunpack.c.l.b16 %v1086
        %v1103 = vunpack.c.l.b16 %v1087
        %v1104 = vunpack.c.l.b16 %v1088
        %v1105 = vunpack.c.l.b16 %v1089
        %v1106 = vpack.c.b16 %v1103, %v1102
        %v1107 = vpack.c.b16 %v1105, %v1104
        %1110 = vmatprep.subr.bf16.mxu0 0
        %1111 = vmatpush1.bf16.msra.mxu0 %v1106
        %1112 = vmatprep.subr.bf16.mxu0 0
        %1113 = vmatpush1.bf16.msra.mxu0 %v1107
        %1114 = vmatprep.subr.bf16.mxu0 0
        %1115 = vmatpush1.bf16.msra.mxu0 0
        %1116 = vmatprep.subr.bf16.mxu0 0
        %1117 = vmatpush1.bf16.msra.mxu0 0
        %1118 = vmatprep.subr.bf16.mxu0 0
        %1119 = vmatpush1.bf16.msra.mxu0 0
        %1120 = vmatprep.subr.bf16.mxu0 0
        %1121 = vmatpush1.bf16.msra.mxu0 0
        %1122 = vmatprep.subr.bf16.mxu0 0
        %1123 = vmatpush1.bf16.msra.mxu0 0
        %1124 = vmatprep.subr.bf16.mxu0 0
        %1125 = vmatpush1.bf16.msra.mxu0 0
        %1126 = vmatprep.subr.bf16.mxu0 0
        %1127 = vmatpush1.bf16.msra.mxu0 0
        %1128 = vmatprep.subr.bf16.mxu0 0
        %1129 = vmatpush1.bf16.msra.mxu0 0
        %1130 = vmatprep.subr.bf16.mxu0 0
        %1131 = vmatpush1.bf16.msra.mxu0 0
        %1132 = vmatprep.subr.bf16.mxu0 0
        %1133 = vmatpush1.bf16.msra.mxu0 0
        %1134 = vmatprep.subr.bf16.mxu0 0
        %1135 = vmatpush1.bf16.msra.mxu0 0
        %1136 = vmatprep.subr.bf16.mxu0 0
        %1137 = vmatpush1.bf16.msra.mxu0 0
        %1138 = vmatprep.subr.bf16.mxu0 0
        %1139 = vmatpush1.bf16.msra.mxu0 0
        %1140 = vmatprep.subr.bf16.mxu0 0
        %1141 = vmatpush1.bf16.msra.mxu0 0
        %1142 = vmatprep.mubr.bf16.mxu0 0
        %1143 = vmatmul.mubr.bf16.gmra.mrb[0].mxu0 %v593
        %v1144 = vpop.f32.mrb[0].mxu0
        %v1145 = vadd.f32 %v1096, %v1144
        %v1146 = vpop.f32.mrb[0].mxu0
        %v1147 = vpop.f32.mrb[0].mxu0
        %v1148 = vadd.f32 %v1096, %v1147
        %v1149 = vpop.f32.mrb[0].mxu0
        %1150 = vdwg.mxu0
        %v1151 = vpack.c.bf16 %v1148, %v1145
        %v1153 = vunpack.c.l.b16 %v1151
        %v1154 = vunpack.c.h.b16 %v1151
        %v1155 = vpack.c.b16 %v1153, %v1153
        %v1156 = vpack.c.b16 %v1154, %v1154
        %s1157 = scalar_lea.vmem %s485, 144
        %v1158 = vld [vmem:[%s1157] sm:$0xf]
        %v1159 = vld [vmem:[%s1157 + $0x4] sm:$0xf]
        %v1160 = vld [vmem:[%s1157 + $0x8] sm:$0xf]
        %v1161 = vld [vmem:[%s1157 + $0xc] sm:$0xf]
        %s1162 = scalar_lea.vmem %s489, 9
        %v1163 = vld [vmem:[%s1162] sm:$0x1]
        %v1165 = vlaneseq
        %v1166 = vshrl.u32 %v1165, 7
        %v1167 = vsub.s32 0, %v1166
        %v1168 = vrot.slane %v1163, %v1167
        %v1174 = vunpack.c.l.b16 %v1158
        %v1175 = vunpack.c.l.b16 %v1159
        %v1176 = vunpack.c.l.b16 %v1160
        %v1177 = vunpack.c.l.b16 %v1161
        %v1178 = vpack.c.b16 %v1175, %v1174
        %v1179 = vpack.c.b16 %v1177, %v1176
        %1182 = vmatprep.subr.bf16.mxu0 0
        %1183 = vmatpush1.bf16.msra.mxu0 %v1178
        %1184 = vmatprep.subr.bf16.mxu0 0
        %1185 = vmatpush1.bf16.msra.mxu0 %v1179
        %1186 = vmatprep.subr.bf16.mxu0 0
        %1187 = vmatpush1.bf16.msra.mxu0 0
        %1188 = vmatprep.subr.bf16.mxu0 0
        %1189 = vmatpush1.bf16.msra.mxu0 0
        %1190 = vmatprep.subr.bf16.mxu0 0
        %1191 = vmatpush1.bf16.msra.mxu0 0
        %1192 = vmatprep.subr.bf16.mxu0 0
        %1193 = vmatpush1.bf16.msra.mxu0 0
        %1194 = vmatprep.subr.bf16.mxu0 0
        %1195 = vmatpush1.bf16.msra.mxu0 0
        %1196 = vmatprep.subr.bf16.mxu0 0
        %1197 = vmatpush1.bf16.msra.mxu0 0
        %1198 = vmatprep.subr.bf16.mxu0 0
        %1199 = vmatpush1.bf16.msra.mxu0 0
        %1200 = vmatprep.subr.bf16.mxu0 0
        %1201 = vmatpush1.bf16.msra.mxu0 0
        %1202 = vmatprep.subr.bf16.mxu0 0
        %1203 = vmatpush1.bf16.msra.mxu0 0
        %1204 = vmatprep.subr.bf16.mxu0 0
        %1205 = vmatpush1.bf16.msra.mxu0 0
        %1206 = vmatprep.subr.bf16.mxu0 0
        %1207 = vmatpush1.bf16.msra.mxu0 0
        %1208 = vmatprep.subr.bf16.mxu0 0
        %1209 = vmatpush1.bf16.msra.mxu0 0
        %1210 = vmatprep.subr.bf16.mxu0 0
        %1211 = vmatpush1.bf16.msra.mxu0 0
        %1212 = vmatprep.subr.bf16.mxu0 0
        %1213 = vmatpush1.bf16.msra.mxu0 0
        %1214 = vmatprep.mubr.bf16.mxu0 0
        %1215 = vmatmul.mubr.bf16.gmra.mrb[0].mxu0 %v593
        %v1216 = vpop.f32.mrb[0].mxu0
        %v1217 = vadd.f32 %v1168, %v1216
        %v1218 = vpop.f32.mrb[0].mxu0
        %v1219 = vpop.f32.mrb[0].mxu0
        %v1220 = vadd.f32 %v1168, %v1219
        %v1221 = vpop.f32.mrb[0].mxu0
        %1222 = vdwg.mxu0
        %v1223 = vpack.c.bf16 %v1220, %v1217
        %v1225 = vunpack.c.l.b16 %v1223
        %v1226 = vunpack.c.h.b16 %v1223
        %v1227 = vpack.c.b16 %v1225, %v1225
        %v1228 = vpack.c.b16 %v1226, %v1226
        %v1230 = vsel %vm786, %v1083, 0
        %v1233 = vsel %vm786, %v1155, 0
        %1235 = vmatprep.subr.bf16.mxu0 0
        %1236 = vmatpush1.bf16.xpose.msra.mxu0 %v1233
        %1237 = vmatprep.subr.bf16.mxu0 0
        %1238 = vmatpush1.bf16.xpose.msra.mxu0 0
        %1239 = vmatprep.subr.bf16.mxu0 0
        %1240 = vmatpush1.bf16.xpose.msra.mxu0 0
        %1241 = vmatprep.subr.bf16.mxu0 0
        %1242 = vmatpush1.bf16.xpose.msra.mxu0 0
        %1243 = vmatprep.subr.bf16.mxu0 0
        %1244 = vmatpush1.bf16.xpose.msra.mxu0 0
        %1245 = vmatprep.subr.bf16.mxu0 0
        %1246 = vmatpush1.bf16.xpose.msra.mxu0 0
        %1247 = vmatprep.subr.bf16.mxu0 0
        %1248 = vmatpush1.bf16.xpose.msra.mxu0 0
        %1249 = vmatprep.subr.bf16.mxu0 0
        %1250 = vmatpush1.bf16.xpose.msra.mxu0 0
        %1251 = vmatprep.subr.bf16.mxu0 0
        %1252 = vmatpush1.bf16.xpose.msra.mxu0 0
        %1253 = vmatprep.subr.bf16.mxu0 0
        %1254 = vmatpush1.bf16.xpose.msra.mxu0 0
        %1255 = vmatprep.subr.bf16.mxu0 0
        %1256 = vmatpush1.bf16.xpose.msra.mxu0 0
        %1257 = vmatprep.subr.bf16.mxu0 0
        %1258 = vmatpush1.bf16.xpose.msra.mxu0 0
        %1259 = vmatprep.subr.bf16.mxu0 0
        %1260 = vmatpush1.bf16.xpose.msra.mxu0 0
        %1261 = vmatprep.subr.bf16.mxu0 0
        %1262 = vmatpush1.bf16.xpose.msra.mxu0 0
        %1263 = vmatprep.subr.bf16.mxu0 0
        %1264 = vmatpush1.bf16.xpose.msra.mxu0 0
        %1265 = vmatprep.subr.bf16.mxu0 0
        %1266 = vmatpush1.bf16.xpose.msra.mxu0 0
        %1267 = vmatprep.mubr.bf16.mxu0 0
        %1268 = vmatmul.mubr.bf16.gmra.mrb[0].mxu0 %v1230
        %v1269 = vpop.f32.mrb[0].mxu0
        %v1270 = vadd.f32 0.0, %v1269
        %v1271 = vpop.f32.mrb[0].mxu0
        %v1272 = vpop.f32.mrb[0].mxu0
        %v1273 = vpop.f32.mrb[0].mxu0
        %1274 = vdwg.mxu0
        %v1276 = vsel %vm786, %v1084, 0
        %v1279 = vsel %vm786, %v1156, 0
        %1281 = vmatprep.subr.bf16.mxu0 0
        %1282 = vmatpush1.bf16.xpose.msra.mxu0 %v1279
        %1283 = vmatprep.subr.bf16.mxu0 0
        %1284 = vmatpush1.bf16.xpose.msra.mxu0 0
        %1285 = vmatprep.subr.bf16.mxu0 0
        %1286 = vmatpush1.bf16.xpose.msra.mxu0 0
        %1287 = vmatprep.subr.bf16.mxu0 0
        %1288 = vmatpush1.bf16.xpose.msra.mxu0 0
        %1289 = vmatprep.subr.bf16.mxu0 0
        %1290 = vmatpush1.bf16.xpose.msra.mxu0 0
        %1291 = vmatprep.subr.bf16.mxu0 0
        %1292 = vmatpush1.bf16.xpose.msra.mxu0 0
        %1293 = vmatprep.subr.bf16.mxu0 0
        %1294 = vmatpush1.bf16.xpose.msra.mxu0 0
        %1295 = vmatprep.subr.bf16.mxu0 0
        %1296 = vmatpush1.bf16.xpose.msra.mxu0 0
        %1297 = vmatprep.subr.bf16.mxu0 0
        %1298 = vmatpush1.bf16.xpose.msra.mxu0 0
        %1299 = vmatprep.subr.bf16.mxu0 0
        %1300 = vmatpush1.bf16.xpose.msra.mxu0 0
        %1301 = vmatprep.subr.bf16.mxu0 0
        %1302 = vmatpush1.bf16.xpose.msra.mxu0 0
        %1303 = vmatprep.subr.bf16.mxu0 0
        %1304 = vmatpush1.bf16.xpose.msra.mxu0 0
        %1305 = vmatprep.subr.bf16.mxu0 0
        %1306 = vmatpush1.bf16.xpose.msra.mxu0 0
        %1307 = vmatprep.subr.bf16.mxu0 0
        %1308 = vmatpush1.bf16.xpose.msra.mxu0 0
        %1309 = vmatprep.subr.bf16.mxu0 0
        %1310 = vmatpush1.bf16.xpose.msra.mxu0 0
        %1311 = vmatprep.subr.bf16.mxu0 0
        %1312 = vmatpush1.bf16.xpose.msra.mxu0 0
        %1313 = vmatprep.mubr.bf16.mxu0 0
        %1314 = vmatmul.mubr.bf16.gmra.mrb[0].mxu0 %v1276
        %v1315 = vpop.f32.mrb[0].mxu0
        %v1316 = vadd.f32 0.0, %v1315
        %v1317 = vpop.f32.mrb[0].mxu0
        %v1318 = vpop.f32.mrb[0].mxu0
        %v1319 = vpop.f32.mrb[0].mxu0
        %1320 = vdwg.mxu0
        %v1321 = vsel %vm891, %v1270, -1e+09
        %v1322 = vsel %vm892, %v1316, -1e+09
        %v1323 = vsel %vm786, %v1321, -inf
        %1324 = vmax.xlane.f32.xlu0 %v1323
        %v1325 = vpop.xlane.xlu0 %1324
        %v1326 = vsel %vm786, %v1322, -inf
        %1327 = vmax.xlane.f32.xlu0 %v1326
        %v1328 = vpop.xlane.xlu0 %1327
        %v1329 = vsub.f32 %v1321, %v1325
        %v1330 = vsub.f32 %v1322, %v1328
        %v1331 = vmul.f32 %v1329, 1.442695
        %v1332 = vpow.pop %v1331
        %v1333 = vmul.f32 %v1330, 1.442695
        %v1334 = vpow.pop %v1333
        %v1335 = vsel %vm786, %v1332, 0.0
        %1336 = vadd.xlane.f32.xlu0 %v1335
        %v1337 = vpop.xlane.xlu0 %1336
        %v1338 = vsel %vm786, %v1334, 0.0
        %1339 = vadd.xlane.f32.xlu0 %v1338
        %v1340 = vpop.xlane.xlu0 %1339
        %v1341 = vrcp.pop %v1337
        %v1342 = vrcp.pop %v1340
        %v1343 = vmul.f32 %v1332, %v1341
        %v1344 = vmul.f32 %v1334, %v1342
        %v1345 = vpack.c.bf16 %v1343, %v1343
        %v1346 = vpack.c.bf16 %v1344, %v1344
        %v1348 = vsel %vm786, %v1345, 0
        %v1351 = vsel %vm922, %v1227, 0
        %1353 = vmatprep.subr.bf16.mxu0 0
        %1354 = vmatpush1.bf16.msra.mxu0 %v1351
        %1355 = vmatprep.subr.bf16.mxu0 0
        %1356 = vmatpush1.bf16.msra.mxu0 0
        %1357 = vmatprep.subr.bf16.mxu0 0
        %1358 = vmatpush1.bf16.msra.mxu0 0
        %1359 = vmatprep.subr.bf16.mxu0 0
        %1360 = vmatpush1.bf16.msra.mxu0 0
        %1361 = vmatprep.subr.bf16.mxu0 0
        %1362 = vmatpush1.bf16.msra.mxu0 0
        %1363 = vmatprep.subr.bf16.mxu0 0
        %1364 = vmatpush1.bf16.msra.mxu0 0
        %1365 = vmatprep.subr.bf16.mxu0 0
        %1366 = vmatpush1.bf16.msra.mxu0 0
        %1367 = vmatprep.subr.bf16.mxu0 0
        %1368 = vmatpush1.bf16.msra.mxu0 0
        %1369 = vmatprep.subr.bf16.mxu0 0
        %1370 = vmatpush1.bf16.msra.mxu0 0
        %1371 = vmatprep.subr.bf16.mxu0 0
        %1372 = vmatpush1.bf16.msra.mxu0 0
        %1373 = vmatprep.subr.bf16.mxu0 0
        %1374 = vmatpush1.bf16.msra.mxu0 0
        %1375 = vmatprep.subr.bf16.mxu0 0
        %1376 = vmatpush1.bf16.msra.mxu0 0
        %1377 = vmatprep.subr.bf16.mxu0 0
        %1378 = vmatpush1.bf16.msra.mxu0 0
        %1379 = vmatprep.subr.bf16.mxu0 0
        %1380 = vmatpush1.bf16.msra.mxu0 0
        %1381 = vmatprep.subr.bf16.mxu0 0
        %1382 = vmatpush1.bf16.msra.mxu0 0
        %1383 = vmatprep.subr.bf16.mxu0 0
        %1384 = vmatpush1.bf16.msra.mxu0 0
        %1385 = vmatprep.mubr.bf16.mxu0 0
        %1386 = vmatmul.mubr.bf16.gmra.mrb[0].mxu0 %v1348
        %v1387 = vpop.f32.mrb[0].mxu0
        %v1388 = vadd.f32 0.0, %v1387
        %v1389 = vpop.f32.mrb[0].mxu0
        %v1390 = vpop.f32.mrb[0].mxu0
        %v1391 = vpop.f32.mrb[0].mxu0
        %1392 = vdwg.mxu0
        %v1394 = vsel %vm786, %v1346, 0
        %v1397 = vsel %vm922, %v1228, 0
        %1399 = vmatprep.subr.bf16.mxu0 0
        %1400 = vmatpush1.bf16.msra.mxu0 %v1397
        %1401 = vmatprep.subr.bf16.mxu0 0
        %1402 = vmatpush1.bf16.msra.mxu0 0
        %1403 = vmatprep.subr.bf16.mxu0 0
        %1404 = vmatpush1.bf16.msra.mxu0 0
        %1405 = vmatprep.subr.bf16.mxu0 0
        %1406 = vmatpush1.bf16.msra.mxu0 0
        %1407 = vmatprep.subr.bf16.mxu0 0
        %1408 = vmatpush1.bf16.msra.mxu0 0
        %1409 = vmatprep.subr.bf16.mxu0 0
        %1410 = vmatpush1.bf16.msra.mxu0 0
        %1411 = vmatprep.subr.bf16.mxu0 0
        %1412 = vmatpush1.bf16.msra.mxu0 0
        %1413 = vmatprep.subr.bf16.mxu0 0
        %1414 = vmatpush1.bf16.msra.mxu0 0
        %1415 = vmatprep.subr.bf16.mxu0 0
        %1416 = vmatpush1.bf16.msra.mxu0 0
        %1417 = vmatprep.subr.bf16.mxu0 0
        %1418 = vmatpush1.bf16.msra.mxu0 0
        %1419 = vmatprep.subr.bf16.mxu0 0
        %1420 = vmatpush1.bf16.msra.mxu0 0
        %1421 = vmatprep.subr.bf16.mxu0 0
        %1422 = vmatpush1.bf16.msra.mxu0 0
        %1423 = vmatprep.subr.bf16.mxu0 0
        %1424 = vmatpush1.bf16.msra.mxu0 0
        %1425 = vmatprep.subr.bf16.mxu0 0
        %1426 = vmatpush1.bf16.msra.mxu0 0
        %1427 = vmatprep.subr.bf16.mxu0 0
        %1428 = vmatpush1.bf16.msra.mxu0 0
        %1429 = vmatprep.subr.bf16.mxu0 0
        %1430 = vmatpush1.bf16.msra.mxu0 0
        %1431 = vmatprep.mubr.bf16.mxu0 0
        %1432 = vmatmul.mubr.bf16.gmra.mrb[0].mxu0 %v1394
        %v1433 = vpop.f32.mrb[0].mxu0
        %v1434 = vadd.f32 0.0, %v1433
        %v1435 = vpop.f32.mrb[0].mxu0
        %v1436 = vpop.f32.mrb[0].mxu0
        %v1437 = vpop.f32.mrb[0].mxu0
        %1438 = vdwg.mxu0
        %v1439 = vpack.c.bf16 %v1434, %v1388
        %s1440 = scalar_lea.vmem %s485, 32
        %v1441 = vld [vmem:[%s1440] sm:$0xf]
        %v1442 = vld [vmem:[%s1440 + $0x4] sm:$0xf]
        %v1443 = vld [vmem:[%s1440 + $0x8] sm:$0xf]
        %v1444 = vld [vmem:[%s1440 + $0xc] sm:$0xf]
        %s1445 = scalar_lea.vmem %s489, 2
        %v1446 = vld [vmem:[%s1445] sm:$0x1]
        %v1448 = vlaneseq
        %v1449 = vshrl.u32 %v1448, 7
        %v1450 = vsub.s32 0, %v1449
        %v1451 = vrot.slane %v1446, %v1450
        %v1457 = vunpack.c.l.b16 %v1441
        %v1458 = vunpack.c.l.b16 %v1442
        %v1459 = vunpack.c.l.b16 %v1443
        %v1460 = vunpack.c.l.b16 %v1444
        %v1461 = vpack.c.b16 %v1458, %v1457
        %v1462 = vpack.c.b16 %v1460, %v1459
        %1465 = vmatprep.subr.bf16.mxu0 0
        %1466 = vmatpush1.bf16.msra.mxu0 %v1461
        %1467 = vmatprep.subr.bf16.mxu0 0
        %1468 = vmatpush1.bf16.msra.mxu0 %v1462
        %1469 = vmatprep.subr.bf16.mxu0 0
        %1470 = vmatpush1.bf16.msra.mxu0 0
        %1471 = vmatprep.subr.bf16.mxu0 0
        %1472 = vmatpush1.bf16.msra.mxu0 0
        %1473 = vmatprep.subr.bf16.mxu0 0
        %1474 = vmatpush1.bf16.msra.mxu0 0
        %1475 = vmatprep.subr.bf16.mxu0 0
        %1476 = vmatpush1.bf16.msra.mxu0 0
        %1477 = vmatprep.subr.bf16.mxu0 0
        %1478 = vmatpush1.bf16.msra.mxu0 0
        %1479 = vmatprep.subr.bf16.mxu0 0
        %1480 = vmatpush1.bf16.msra.mxu0 0
        %1481 = vmatprep.subr.bf16.mxu0 0
        %1482 = vmatpush1.bf16.msra.mxu0 0
        %1483 = vmatprep.subr.bf16.mxu0 0
        %1484 = vmatpush1.bf16.msra.mxu0 0
        %1485 = vmatprep.subr.bf16.mxu0 0
        %1486 = vmatpush1.bf16.msra.mxu0 0
        %1487 = vmatprep.subr.bf16.mxu0 0
        %1488 = vmatpush1.bf16.msra.mxu0 0
        %1489 = vmatprep.subr.bf16.mxu0 0
        %1490 = vmatpush1.bf16.msra.mxu0 0
        %1491 = vmatprep.subr.bf16.mxu0 0
        %1492 = vmatpush1.bf16.msra.mxu0 0
        %1493 = vmatprep.subr.bf16.mxu0 0
        %1494 = vmatpush1.bf16.msra.mxu0 0
        %1495 = vmatprep.subr.bf16.mxu0 0
        %1496 = vmatpush1.bf16.msra.mxu0 0
        %1497 = vmatprep.mubr.bf16.mxu0 0
        %1498 = vmatmul.mubr.bf16.gmra.mrb[0].mxu0 %v593
        %v1499 = vpop.f32.mrb[0].mxu0
        %v1500 = vadd.f32 %v1451, %v1499
        %v1501 = vpop.f32.mrb[0].mxu0
        %v1502 = vpop.f32.mrb[0].mxu0
        %v1503 = vadd.f32 %v1451, %v1502
        %v1504 = vpop.f32.mrb[0].mxu0
        %1505 = vdwg.mxu0
        %v1506 = vpack.c.bf16 %v1503, %v1500
        %v1508 = vunpack.c.l.b16 %v1506
        %v1509 = vunpack.c.h.b16 %v1506
        %v1510 = vpack.c.b16 %v1508, %v1508
        %v1511 = vpack.c.b16 %v1509, %v1509
        %s1512 = scalar_lea.vmem %s485, 96
        %v1513 = vld [vmem:[%s1512] sm:$0xf]
        %v1514 = vld [vmem:[%s1512 + $0x4] sm:$0xf]
        %v1515 = vld [vmem:[%s1512 + $0x8] sm:$0xf]
        %v1516 = vld [vmem:[%s1512 + $0xc] sm:$0xf]
        %s1517 = scalar_lea.vmem %s489, 6
        %v1518 = vld [vmem:[%s1517] sm:$0x1]
        %v1520 = vlaneseq
        %v1521 = vshrl.u32 %v1520, 7
        %v1522 = vsub.s32 0, %v1521
        %v1523 = vrot.slane %v1518, %v1522
        %v1529 = vunpack.c.l.b16 %v1513
        %v1530 = vunpack.c.l.b16 %v1514
        %v1531 = vunpack.c.l.b16 %v1515
        %v1532 = vunpack.c.l.b16 %v1516
        %v1533 = vpack.c.b16 %v1530, %v1529
        %v1534 = vpack.c.b16 %v1532, %v1531
        %1537 = vmatprep.subr.bf16.mxu0 0
        %1538 = vmatpush1.bf16.msra.mxu0 %v1533
        %1539 = vmatprep.subr.bf16.mxu0 0
        %1540 = vmatpush1.bf16.msra.mxu0 %v1534
        %1541 = vmatprep.subr.bf16.mxu0 0
        %1542 = vmatpush1.bf16.msra.mxu0 0
        %1543 = vmatprep.subr.bf16.mxu0 0
        %1544 = vmatpush1.bf16.msra.mxu0 0
        %1545 = vmatprep.subr.bf16.mxu0 0
        %1546 = vmatpush1.bf16.msra.mxu0 0
        %1547 = vmatprep.subr.bf16.mxu0 0
        %1548 = vmatpush1.bf16.msra.mxu0 0
        %1549 = vmatprep.subr.bf16.mxu0 0
        %1550 = vmatpush1.bf16.msra.mxu0 0
        %1551 = vmatprep.subr.bf16.mxu0 0
        %1552 = vmatpush1.bf16.msra.mxu0 0
        %1553 = vmatprep.subr.bf16.mxu0 0
        %1554 = vmatpush1.bf16.msra.mxu0 0
        %1555 = vmatprep.subr.bf16.mxu0 0
        %1556 = vmatpush1.bf16.msra.mxu0 0
        %1557 = vmatprep.subr.bf16.mxu0 0
        %1558 = vmatpush1.bf16.msra.mxu0 0
        %1559 = vmatprep.subr.bf16.mxu0 0
        %1560 = vmatpush1.bf16.msra.mxu0 0
        %1561 = vmatprep.subr.bf16.mxu0 0
        %1562 = vmatpush1.bf16.msra.mxu0 0
        %1563 = vmatprep.subr.bf16.mxu0 0
        %1564 = vmatpush1.bf16.msra.mxu0 0
        %1565 = vmatprep.subr.bf16.mxu0 0
        %1566 = vmatpush1.bf16.msra.mxu0 0
        %1567 = vmatprep.subr.bf16.mxu0 0
        %1568 = vmatpush1.bf16.msra.mxu0 0
        %1569 = vmatprep.mubr.bf16.mxu0 0
        %1570 = vmatmul.mubr.bf16.gmra.mrb[0].mxu0 %v593
        %v1571 = vpop.f32.mrb[0].mxu0
        %v1572 = vadd.f32 %v1523, %v1571
        %v1573 = vpop.f32.mrb[0].mxu0
        %v1574 = vpop.f32.mrb[0].mxu0
        %v1575 = vadd.f32 %v1523, %v1574
        %v1576 = vpop.f32.mrb[0].mxu0
        %1577 = vdwg.mxu0
        %v1578 = vpack.c.bf16 %v1575, %v1572
        %v1580 = vunpack.c.l.b16 %v1578
        %v1581 = vunpack.c.h.b16 %v1578
        %v1582 = vpack.c.b16 %v1580, %v1580
        %v1583 = vpack.c.b16 %v1581, %v1581
        %s1584 = scalar_lea.vmem %s485, 160
        %v1585 = vld [vmem:[%s1584] sm:$0xf]
        %v1586 = vld [vmem:[%s1584 + $0x4] sm:$0xf]
        %v1587 = vld [vmem:[%s1584 + $0x8] sm:$0xf]
        %v1588 = vld [vmem:[%s1584 + $0xc] sm:$0xf]
        %s1589 = scalar_lea.vmem %s489, 10
        %v1590 = vld [vmem:[%s1589] sm:$0x1]
        %v1592 = vlaneseq
        %v1593 = vshrl.u32 %v1592, 7
        %v1594 = vsub.s32 0, %v1593
        %v1595 = vrot.slane %v1590, %v1594
        %v1601 = vunpack.c.l.b16 %v1585
        %v1602 = vunpack.c.l.b16 %v1586
        %v1603 = vunpack.c.l.b16 %v1587
        %v1604 = vunpack.c.l.b16 %v1588
        %v1605 = vpack.c.b16 %v1602, %v1601
        %v1606 = vpack.c.b16 %v1604, %v1603
        %1609 = vmatprep.subr.bf16.mxu0 0
        %1610 = vmatpush1.bf16.msra.mxu0 %v1605
        %1611 = vmatprep.subr.bf16.mxu0 0
        %1612 = vmatpush1.bf16.msra.mxu0 %v1606
        %1613 = vmatprep.subr.bf16.mxu0 0
        %1614 = vmatpush1.bf16.msra.mxu0 0
        %1615 = vmatprep.subr.bf16.mxu0 0
        %1616 = vmatpush1.bf16.msra.mxu0 0
        %1617 = vmatprep.subr.bf16.mxu0 0
        %1618 = vmatpush1.bf16.msra.mxu0 0
        %1619 = vmatprep.subr.bf16.mxu0 0
        %1620 = vmatpush1.bf16.msra.mxu0 0
        %1621 = vmatprep.subr.bf16.mxu0 0
        %1622 = vmatpush1.bf16.msra.mxu0 0
        %1623 = vmatprep.subr.bf16.mxu0 0
        %1624 = vmatpush1.bf16.msra.mxu0 0
        %1625 = vmatprep.subr.bf16.mxu0 0
        %1626 = vmatpush1.bf16.msra.mxu0 0
        %1627 = vmatprep.subr.bf16.mxu0 0
        %1628 = vmatpush1.bf16.msra.mxu0 0
        %1629 = vmatprep.subr.bf16.mxu0 0
        %1630 = vmatpush1.bf16.msra.mxu0 0
        %1631 = vmatprep.subr.bf16.mxu0 0
        %1632 = vmatpush1.bf16.msra.mxu0 0
        %1633 = vmatprep.subr.bf16.mxu0 0
        %1634 = vmatpush1.bf16.msra.mxu0 0
        %1635 = vmatprep.subr.bf16.mxu0 0
        %1636 = vmatpush1.bf16.msra.mxu0 0
        %1637 = vmatprep.subr.bf16.mxu0 0
        %1638 = vmatpush1.bf16.msra.mxu0 0
        %1639 = vmatprep.subr.bf16.mxu0 0
        %1640 = vmatpush1.bf16.msra.mxu0 0
        %1641 = vmatprep.mubr.bf16.mxu0 0
        %1642 = vmatmul.mubr.bf16.gmra.mrb[0].mxu0 %v593
        %v1643 = vpop.f32.mrb[0].mxu0
        %v1644 = vadd.f32 %v1595, %v1643
        %v1645 = vpop.f32.mrb[0].mxu0
        %v1646 = vpop.f32.mrb[0].mxu0
        %v1647 = vadd.f32 %v1595, %v1646
        %v1648 = vpop.f32.mrb[0].mxu0
        %1649 = vdwg.mxu0
        %v1650 = vpack.c.bf16 %v1647, %v1644
        %v1652 = vunpack.c.l.b16 %v1650
        %v1653 = vunpack.c.h.b16 %v1650
        %v1654 = vpack.c.b16 %v1652, %v1652
        %v1655 = vpack.c.b16 %v1653, %v1653
        %v1657 = vsel %vm786, %v1510, 0
        %v1660 = vsel %vm786, %v1582, 0
        %1662 = vmatprep.subr.bf16.mxu0 0
        %1663 = vmatpush1.bf16.xpose.msra.mxu0 %v1660
        %1664 = vmatprep.subr.bf16.mxu0 0
        %1665 = vmatpush1.bf16.xpose.msra.mxu0 0
        %1666 = vmatprep.subr.bf16.mxu0 0
        %1667 = vmatpush1.bf16.xpose.msra.mxu0 0
        %1668 = vmatprep.subr.bf16.mxu0 0
        %1669 = vmatpush1.bf16.xpose.msra.mxu0 0
        %1670 = vmatprep.subr.bf16.mxu0 0
        %1671 = vmatpush1.bf16.xpose.msra.mxu0 0
        %1672 = vmatprep.subr.bf16.mxu0 0
        %1673 = vmatpush1.bf16.xpose.msra.mxu0 0
        %1674 = vmatprep.subr.bf16.mxu0 0
        %1675 = vmatpush1.bf16.xpose.msra.mxu0 0
        %1676 = vmatprep.subr.bf16.mxu0 0
        %1677 = vmatpush1.bf16.xpose.msra.mxu0 0
        %1678 = vmatprep.subr.bf16.mxu0 0
        %1679 = vmatpush1.bf16.xpose.msra.mxu0 0
        %1680 = vmatprep.subr.bf16.mxu0 0
        %1681 = vmatpush1.bf16.xpose.msra.mxu0 0
        %1682 = vmatprep.subr.bf16.mxu0 0
        %1683 = vmatpush1.bf16.xpose.msra.mxu0 0
        %1684 = vmatprep.subr.bf16.mxu0 0
        %1685 = vmatpush1.bf16.xpose.msra.mxu0 0
        %1686 = vmatprep.subr.bf16.mxu0 0
        %1687 = vmatpush1.bf16.xpose.msra.mxu0 0
        %1688 = vmatprep.subr.bf16.mxu0 0
        %1689 = vmatpush1.bf16.xpose.msra.mxu0 0
        %1690 = vmatprep.subr.bf16.mxu0 0
        %1691 = vmatpush1.bf16.xpose.msra.mxu0 0
        %1692 = vmatprep.subr.bf16.mxu0 0
        %1693 = vmatpush1.bf16.xpose.msra.mxu0 0
        %1694 = vmatprep.mubr.bf16.mxu0 0
        %1695 = vmatmul.mubr.bf16.gmra.mrb[0].mxu0 %v1657
        %v1696 = vpop.f32.mrb[0].mxu0
        %v1697 = vadd.f32 0.0, %v1696
        %v1698 = vpop.f32.mrb[0].mxu0
        %v1699 = vpop.f32.mrb[0].mxu0
        %v1700 = vpop.f32.mrb[0].mxu0
        %1701 = vdwg.mxu0
        %v1703 = vsel %vm786, %v1511, 0
        %v1706 = vsel %vm786, %v1583, 0
        %1708 = vmatprep.subr.bf16.mxu0 0
        %1709 = vmatpush1.bf16.xpose.msra.mxu0 %v1706
        %1710 = vmatprep.subr.bf16.mxu0 0
        %1711 = vmatpush1.bf16.xpose.msra.mxu0 0
        %1712 = vmatprep.subr.bf16.mxu0 0
        %1713 = vmatpush1.bf16.xpose.msra.mxu0 0
        %1714 = vmatprep.subr.bf16.mxu0 0
        %1715 = vmatpush1.bf16.xpose.msra.mxu0 0
        %1716 = vmatprep.subr.bf16.mxu0 0
        %1717 = vmatpush1.bf16.xpose.msra.mxu0 0
        %1718 = vmatprep.subr.bf16.mxu0 0
        %1719 = vmatpush1.bf16.xpose.msra.mxu0 0
        %1720 = vmatprep.subr.bf16.mxu0 0
        %1721 = vmatpush1.bf16.xpose.msra.mxu0 0
        %1722 = vmatprep.subr.bf16.mxu0 0
        %1723 = vmatpush1.bf16.xpose.msra.mxu0 0
        %1724 = vmatprep.subr.bf16.mxu0 0
        %1725 = vmatpush1.bf16.xpose.msra.mxu0 0
        %1726 = vmatprep.subr.bf16.mxu0 0
        %1727 = vmatpush1.bf16.xpose.msra.mxu0 0
        %1728 = vmatprep.subr.bf16.mxu0 0
        %1729 = vmatpush1.bf16.xpose.msra.mxu0 0
        %1730 = vmatprep.subr.bf16.mxu0 0
        %1731 = vmatpush1.bf16.xpose.msra.mxu0 0
        %1732 = vmatprep.subr.bf16.mxu0 0
        %1733 = vmatpush1.bf16.xpose.msra.mxu0 0
        %1734 = vmatprep.subr.bf16.mxu0 0
        %1735 = vmatpush1.bf16.xpose.msra.mxu0 0
        %1736 = vmatprep.subr.bf16.mxu0 0
        %1737 = vmatpush1.bf16.xpose.msra.mxu0 0
        %1738 = vmatprep.subr.bf16.mxu0 0
        %1739 = vmatpush1.bf16.xpose.msra.mxu0 0
        %1740 = vmatprep.mubr.bf16.mxu0 0
        %1741 = vmatmul.mubr.bf16.gmra.mrb[0].mxu0 %v1703
        %v1742 = vpop.f32.mrb[0].mxu0
        %v1743 = vadd.f32 0.0, %v1742
        %v1744 = vpop.f32.mrb[0].mxu0
        %v1745 = vpop.f32.mrb[0].mxu0
        %v1746 = vpop.f32.mrb[0].mxu0
        %1747 = vdwg.mxu0
        %v1748 = vsel %vm891, %v1697, -1e+09
        %v1749 = vsel %vm892, %v1743, -1e+09
        %v1750 = vsel %vm786, %v1748, -inf
        %1751 = vmax.xlane.f32.xlu0 %v1750
        %v1752 = vpop.xlane.xlu0 %1751
        %v1753 = vsel %vm786, %v1749, -inf
        %1754 = vmax.xlane.f32.xlu0 %v1753
        %v1755 = vpop.xlane.xlu0 %1754
        %v1756 = vsub.f32 %v1748, %v1752
        %v1757 = vsub.f32 %v1749, %v1755
        %v1758 = vmul.f32 %v1756, 1.442695
        %v1759 = vpow.pop %v1758
        %v1760 = vmul.f32 %v1757, 1.442695
        %v1761 = vpow.pop %v1760
        %v1762 = vsel %vm786, %v1759, 0.0
        %1763 = vadd.xlane.f32.xlu0 %v1762
        %v1764 = vpop.xlane.xlu0 %1763
        %v1765 = vsel %vm786, %v1761, 0.0
        %1766 = vadd.xlane.f32.xlu0 %v1765
        %v1767 = vpop.xlane.xlu0 %1766
        %v1768 = vrcp.pop %v1764
        %v1769 = vrcp.pop %v1767
        %v1770 = vmul.f32 %v1759, %v1768
        %v1771 = vmul.f32 %v1761, %v1769
        %v1772 = vpack.c.bf16 %v1770, %v1770
        %v1773 = vpack.c.bf16 %v1771, %v1771
        %v1775 = vsel %vm786, %v1772, 0
        %v1778 = vsel %vm922, %v1654, 0
        %1780 = vmatprep.subr.bf16.mxu0 0
        %1781 = vmatpush1.bf16.msra.mxu0 %v1778
        %1782 = vmatprep.subr.bf16.mxu0 0
        %1783 = vmatpush1.bf16.msra.mxu0 0
        %1784 = vmatprep.subr.bf16.mxu0 0
        %1785 = vmatpush1.bf16.msra.mxu0 0
        %1786 = vmatprep.subr.bf16.mxu0 0
        %1787 = vmatpush1.bf16.msra.mxu0 0
        %1788 = vmatprep.subr.bf16.mxu0 0
        %1789 = vmatpush1.bf16.msra.mxu0 0
        %1790 = vmatprep.subr.bf16.mxu0 0
        %1791 = vmatpush1.bf16.msra.mxu0 0
        %1792 = vmatprep.subr.bf16.mxu0 0
        %1793 = vmatpush1.bf16.msra.mxu0 0
        %1794 = vmatprep.subr.bf16.mxu0 0
        %1795 = vmatpush1.bf16.msra.mxu0 0
        %1796 = vmatprep.subr.bf16.mxu0 0
        %1797 = vmatpush1.bf16.msra.mxu0 0
        %1798 = vmatprep.subr.bf16.mxu0 0
        %1799 = vmatpush1.bf16.msra.mxu0 0
        %1800 = vmatprep.subr.bf16.mxu0 0
        %1801 = vmatpush1.bf16.msra.mxu0 0
        %1802 = vmatprep.subr.bf16.mxu0 0
        %1803 = vmatpush1.bf16.msra.mxu0 0
        %1804 = vmatprep.subr.bf16.mxu0 0
        %1805 = vmatpush1.bf16.msra.mxu0 0
        %1806 = vmatprep.subr.bf16.mxu0 0
        %1807 = vmatpush1.bf16.msra.mxu0 0
        %1808 = vmatprep.subr.bf16.mxu0 0
        %1809 = vmatpush1.bf16.msra.mxu0 0
        %1810 = vmatprep.subr.bf16.mxu0 0
        %1811 = vmatpush1.bf16.msra.mxu0 0
        %1812 = vmatprep.mubr.bf16.mxu0 0
        %1813 = vmatmul.mubr.bf16.gmra.mrb[0].mxu0 %v1775
        %v1814 = vpop.f32.mrb[0].mxu0
        %v1815 = vadd.f32 0.0, %v1814
        %v1816 = vpop.f32.mrb[0].mxu0
        %v1817 = vpop.f32.mrb[0].mxu0
        %v1818 = vpop.f32.mrb[0].mxu0
        %1819 = vdwg.mxu0
        %v1821 = vsel %vm786, %v1773, 0
        %v1824 = vsel %vm922, %v1655, 0
        %1826 = vmatprep.subr.bf16.mxu0 0
        %1827 = vmatpush1.bf16.msra.mxu0 %v1824
        %1828 = vmatprep.subr.bf16.mxu0 0
        %1829 = vmatpush1.bf16.msra.mxu0 0
        %1830 = vmatprep.subr.bf16.mxu0 0
        %1831 = vmatpush1.bf16.msra.mxu0 0
        %1832 = vmatprep.subr.bf16.mxu0 0
        %1833 = vmatpush1.bf16.msra.mxu0 0
        %1834 = vmatprep.subr.bf16.mxu0 0
        %1835 = vmatpush1.bf16.msra.mxu0 0
        %1836 = vmatprep.subr.bf16.mxu0 0
        %1837 = vmatpush1.bf16.msra.mxu0 0
        %1838 = vmatprep.subr.bf16.mxu0 0
        %1839 = vmatpush1.bf16.msra.mxu0 0
        %1840 = vmatprep.subr.bf16.mxu0 0
        %1841 = vmatpush1.bf16.msra.mxu0 0
        %1842 = vmatprep.subr.bf16.mxu0 0
        %1843 = vmatpush1.bf16.msra.mxu0 0
        %1844 = vmatprep.subr.bf16.mxu0 0
        %1845 = vmatpush1.bf16.msra.mxu0 0
        %1846 = vmatprep.subr.bf16.mxu0 0
        %1847 = vmatpush1.bf16.msra.mxu0 0
        %1848 = vmatprep.subr.bf16.mxu0 0
        %1849 = vmatpush1.bf16.msra.mxu0 0
        %1850 = vmatprep.subr.bf16.mxu0 0
        %1851 = vmatpush1.bf16.msra.mxu0 0
        %1852 = vmatprep.subr.bf16.mxu0 0
        %1853 = vmatpush1.bf16.msra.mxu0 0
        %1854 = vmatprep.subr.bf16.mxu0 0
        %1855 = vmatpush1.bf16.msra.mxu0 0
        %1856 = vmatprep.subr.bf16.mxu0 0
        %1857 = vmatpush1.bf16.msra.mxu0 0
        %1858 = vmatprep.mubr.bf16.mxu0 0
        %1859 = vmatmul.mubr.bf16.gmra.mrb[0].mxu0 %v1821
        %v1860 = vpop.f32.mrb[0].mxu0
        %v1861 = vadd.f32 0.0, %v1860
        %v1862 = vpop.f32.mrb[0].mxu0
        %v1863 = vpop.f32.mrb[0].mxu0
        %v1864 = vpop.f32.mrb[0].mxu0
        %1865 = vdwg.mxu0
        %v1866 = vpack.c.bf16 %v1861, %v1815
        %s1867 = scalar_lea.vmem %s485, 48
        %v1868 = vld [vmem:[%s1867] sm:$0xf]
        %v1869 = vld [vmem:[%s1867 + $0x4] sm:$0xf]
        %v1870 = vld [vmem:[%s1867 + $0x8] sm:$0xf]
        %v1871 = vld [vmem:[%s1867 + $0xc] sm:$0xf]
        %s1872 = scalar_lea.vmem %s489, 3
        %v1873 = vld [vmem:[%s1872] sm:$0x1]
        %v1875 = vlaneseq
        %v1876 = vshrl.u32 %v1875, 7
        %v1877 = vsub.s32 0, %v1876
        %v1878 = vrot.slane %v1873, %v1877
        %v1884 = vunpack.c.l.b16 %v1868
        %v1885 = vunpack.c.l.b16 %v1869
        %v1886 = vunpack.c.l.b16 %v1870
        %v1887 = vunpack.c.l.b16 %v1871
        %v1888 = vpack.c.b16 %v1885, %v1884
        %v1889 = vpack.c.b16 %v1887, %v1886
        %1892 = vmatprep.subr.bf16.mxu0 0
        %1893 = vmatpush1.bf16.msra.mxu0 %v1888
        %1894 = vmatprep.subr.bf16.mxu0 0
        %1895 = vmatpush1.bf16.msra.mxu0 %v1889
        %1896 = vmatprep.subr.bf16.mxu0 0
        %1897 = vmatpush1.bf16.msra.mxu0 0
        %1898 = vmatprep.subr.bf16.mxu0 0
        %1899 = vmatpush1.bf16.msra.mxu0 0
        %1900 = vmatprep.subr.bf16.mxu0 0
        %1901 = vmatpush1.bf16.msra.mxu0 0
        %1902 = vmatprep.subr.bf16.mxu0 0
        %1903 = vmatpush1.bf16.msra.mxu0 0
        %1904 = vmatprep.subr.bf16.mxu0 0
        %1905 = vmatpush1.bf16.msra.mxu0 0
        %1906 = vmatprep.subr.bf16.mxu0 0
        %1907 = vmatpush1.bf16.msra.mxu0 0
        %1908 = vmatprep.subr.bf16.mxu0 0
        %1909 = vmatpush1.bf16.msra.mxu0 0
        %1910 = vmatprep.subr.bf16.mxu0 0
        %1911 = vmatpush1.bf16.msra.mxu0 0
        %1912 = vmatprep.subr.bf16.mxu0 0
        %1913 = vmatpush1.bf16.msra.mxu0 0
        %1914 = vmatprep.subr.bf16.mxu0 0
        %1915 = vmatpush1.bf16.msra.mxu0 0
        %1916 = vmatprep.subr.bf16.mxu0 0
        %1917 = vmatpush1.bf16.msra.mxu0 0
        %1918 = vmatprep.subr.bf16.mxu0 0
        %1919 = vmatpush1.bf16.msra.mxu0 0
        %1920 = vmatprep.subr.bf16.mxu0 0
        %1921 = vmatpush1.bf16.msra.mxu0 0
        %1922 = vmatprep.subr.bf16.mxu0 0
        %1923 = vmatpush1.bf16.msra.mxu0 0
        %1924 = vmatprep.mubr.bf16.mxu0 0
        %1925 = vmatmul.mubr.bf16.gmra.mrb[0].mxu0 %v593
        %v1926 = vpop.f32.mrb[0].mxu0
        %v1927 = vadd.f32 %v1878, %v1926
        %v1928 = vpop.f32.mrb[0].mxu0
        %v1929 = vpop.f32.mrb[0].mxu0
        %v1930 = vadd.f32 %v1878, %v1929
        %v1931 = vpop.f32.mrb[0].mxu0
        %1932 = vdwg.mxu0
        %v1933 = vpack.c.bf16 %v1930, %v1927
        %v1935 = vunpack.c.l.b16 %v1933
        %v1936 = vunpack.c.h.b16 %v1933
        %v1937 = vpack.c.b16 %v1935, %v1935
        %v1938 = vpack.c.b16 %v1936, %v1936
        %s1939 = scalar_lea.vmem %s485, 112
        %v1940 = vld [vmem:[%s1939] sm:$0xf]
        %v1941 = vld [vmem:[%s1939 + $0x4] sm:$0xf]
        %v1942 = vld [vmem:[%s1939 + $0x8] sm:$0xf]
        %v1943 = vld [vmem:[%s1939 + $0xc] sm:$0xf]
        %s1944 = scalar_lea.vmem %s489, 7
        %v1945 = vld [vmem:[%s1944] sm:$0x1]
        %v1947 = vlaneseq
        %v1948 = vshrl.u32 %v1947, 7
        %v1949 = vsub.s32 0, %v1948
        %v1950 = vrot.slane %v1945, %v1949
        %v1956 = vunpack.c.l.b16 %v1940
        %v1957 = vunpack.c.l.b16 %v1941
        %v1958 = vunpack.c.l.b16 %v1942
        %v1959 = vunpack.c.l.b16 %v1943
        %v1960 = vpack.c.b16 %v1957, %v1956
        %v1961 = vpack.c.b16 %v1959, %v1958
        %1964 = vmatprep.subr.bf16.mxu0 0
        %1965 = vmatpush1.bf16.msra.mxu0 %v1960
        %1966 = vmatprep.subr.bf16.mxu0 0
        %1967 = vmatpush1.bf16.msra.mxu0 %v1961
        %1968 = vmatprep.subr.bf16.mxu0 0
        %1969 = vmatpush1.bf16.msra.mxu0 0
        %1970 = vmatprep.subr.bf16.mxu0 0
        %1971 = vmatpush1.bf16.msra.mxu0 0
        %1972 = vmatprep.subr.bf16.mxu0 0
        %1973 = vmatpush1.bf16.msra.mxu0 0
        %1974 = vmatprep.subr.bf16.mxu0 0
        %1975 = vmatpush1.bf16.msra.mxu0 0
        %1976 = vmatprep.subr.bf16.mxu0 0
        %1977 = vmatpush1.bf16.msra.mxu0 0
        %1978 = vmatprep.subr.bf16.mxu0 0
        %1979 = vmatpush1.bf16.msra.mxu0 0
        %1980 = vmatprep.subr.bf16.mxu0 0
        %1981 = vmatpush1.bf16.msra.mxu0 0
        %1982 = vmatprep.subr.bf16.mxu0 0
        %1983 = vmatpush1.bf16.msra.mxu0 0
        %1984 = vmatprep.subr.bf16.mxu0 0
        %1985 = vmatpush1.bf16.msra.mxu0 0
        %1986 = vmatprep.subr.bf16.mxu0 0
        %1987 = vmatpush1.bf16.msra.mxu0 0
        %1988 = vmatprep.subr.bf16.mxu0 0
        %1989 = vmatpush1.bf16.msra.mxu0 0
        %1990 = vmatprep.subr.bf16.mxu0 0
        %1991 = vmatpush1.bf16.msra.mxu0 0
        %1992 = vmatprep.subr.bf16.mxu0 0
        %1993 = vmatpush1.bf16.msra.mxu0 0
        %1994 = vmatprep.subr.bf16.mxu0 0
        %1995 = vmatpush1.bf16.msra.mxu0 0
        %1996 = vmatprep.mubr.bf16.mxu0 0
        %1997 = vmatmul.mubr.bf16.gmra.mrb[0].mxu0 %v593
        %v1998 = vpop.f32.mrb[0].mxu0
        %v1999 = vadd.f32 %v1950, %v1998
        %v2000 = vpop.f32.mrb[0].mxu0
        %v2001 = vpop.f32.mrb[0].mxu0
        %v2002 = vadd.f32 %v1950, %v2001
        %v2003 = vpop.f32.mrb[0].mxu0
        %2004 = vdwg.mxu0
        %v2005 = vpack.c.bf16 %v2002, %v1999
        %v2007 = vunpack.c.l.b16 %v2005
        %v2008 = vunpack.c.h.b16 %v2005
        %v2009 = vpack.c.b16 %v2007, %v2007
        %v2010 = vpack.c.b16 %v2008, %v2008
        %s2011 = scalar_lea.vmem %s485, 176
        %v2012 = vld [vmem:[%s2011] sm:$0xf]
        %v2013 = vld [vmem:[%s2011 + $0x4] sm:$0xf]
        %v2014 = vld [vmem:[%s2011 + $0x8] sm:$0xf]
        %v2015 = vld [vmem:[%s2011 + $0xc] sm:$0xf]
        %s2016 = scalar_lea.vmem %s489, 11
        %v2017 = vld [vmem:[%s2016] sm:$0x1]
        %v2019 = vlaneseq
        %v2020 = vshrl.u32 %v2019, 7
        %v2021 = vsub.s32 0, %v2020
        %v2022 = vrot.slane %v2017, %v2021
        %v2028 = vunpack.c.l.b16 %v2012
        %v2029 = vunpack.c.l.b16 %v2013
        %v2030 = vunpack.c.l.b16 %v2014
        %v2031 = vunpack.c.l.b16 %v2015
        %v2032 = vpack.c.b16 %v2029, %v2028
        %v2033 = vpack.c.b16 %v2031, %v2030
        %2036 = vmatprep.subr.bf16.mxu0 0
        %2037 = vmatpush1.bf16.msra.mxu0 %v2032
        %2038 = vmatprep.subr.bf16.mxu0 0
        %2039 = vmatpush1.bf16.msra.mxu0 %v2033
        %2040 = vmatprep.subr.bf16.mxu0 0
        %2041 = vmatpush1.bf16.msra.mxu0 0
        %2042 = vmatprep.subr.bf16.mxu0 0
        %2043 = vmatpush1.bf16.msra.mxu0 0
        %2044 = vmatprep.subr.bf16.mxu0 0
        %2045 = vmatpush1.bf16.msra.mxu0 0
        %2046 = vmatprep.subr.bf16.mxu0 0
        %2047 = vmatpush1.bf16.msra.mxu0 0
        %2048 = vmatprep.subr.bf16.mxu0 0
        %2049 = vmatpush1.bf16.msra.mxu0 0
        %2050 = vmatprep.subr.bf16.mxu0 0
        %2051 = vmatpush1.bf16.msra.mxu0 0
        %2052 = vmatprep.subr.bf16.mxu0 0
        %2053 = vmatpush1.bf16.msra.mxu0 0
        %2054 = vmatprep.subr.bf16.mxu0 0
        %2055 = vmatpush1.bf16.msra.mxu0 0
        %2056 = vmatprep.subr.bf16.mxu0 0
        %2057 = vmatpush1.bf16.msra.mxu0 0
        %2058 = vmatprep.subr.bf16.mxu0 0
        %2059 = vmatpush1.bf16.msra.mxu0 0
        %2060 = vmatprep.subr.bf16.mxu0 0
        %2061 = vmatpush1.bf16.msra.mxu0 0
        %2062 = vmatprep.subr.bf16.mxu0 0
        %2063 = vmatpush1.bf16.msra.mxu0 0
        %2064 = vmatprep.subr.bf16.mxu0 0
        %2065 = vmatpush1.bf16.msra.mxu0 0
        %2066 = vmatprep.subr.bf16.mxu0 0
        %2067 = vmatpush1.bf16.msra.mxu0 0
        %2068 = vmatprep.mubr.bf16.mxu0 0
        %2069 = vmatmul.mubr.bf16.gmra.mrb[0].mxu0 %v593
        %v2070 = vpop.f32.mrb[0].mxu0
        %v2071 = vadd.f32 %v2022, %v2070
        %v2072 = vpop.f32.mrb[0].mxu0
        %v2073 = vpop.f32.mrb[0].mxu0
        %v2074 = vadd.f32 %v2022, %v2073
        %v2075 = vpop.f32.mrb[0].mxu0
        %2076 = vdwg.mxu0
        %v2077 = vpack.c.bf16 %v2074, %v2071
        %v2079 = vunpack.c.l.b16 %v2077
        %v2080 = vunpack.c.h.b16 %v2077
        %v2081 = vpack.c.b16 %v2079, %v2079
        %v2082 = vpack.c.b16 %v2080, %v2080
        %v2084 = vsel %vm786, %v1937, 0
        %v2087 = vsel %vm786, %v2009, 0
        %2089 = vmatprep.subr.bf16.mxu0 0
        %2090 = vmatpush1.bf16.xpose.msra.mxu0 %v2087
        %2091 = vmatprep.subr.bf16.mxu0 0
        %2092 = vmatpush1.bf16.xpose.msra.mxu0 0
        %2093 = vmatprep.subr.bf16.mxu0 0
        %2094 = vmatpush1.bf16.xpose.msra.mxu0 0
        %2095 = vmatprep.subr.bf16.mxu0 0
        %2096 = vmatpush1.bf16.xpose.msra.mxu0 0
        %2097 = vmatprep.subr.bf16.mxu0 0
        %2098 = vmatpush1.bf16.xpose.msra.mxu0 0
        %2099 = vmatprep.subr.bf16.mxu0 0
        %2100 = vmatpush1.bf16.xpose.msra.mxu0 0
        %2101 = vmatprep.subr.bf16.mxu0 0
        %2102 = vmatpush1.bf16.xpose.msra.mxu0 0
        %2103 = vmatprep.subr.bf16.mxu0 0
        %2104 = vmatpush1.bf16.xpose.msra.mxu0 0
        %2105 = vmatprep.subr.bf16.mxu0 0
        %2106 = vmatpush1.bf16.xpose.msra.mxu0 0
        %2107 = vmatprep.subr.bf16.mxu0 0
        %2108 = vmatpush1.bf16.xpose.msra.mxu0 0
        %2109 = vmatprep.subr.bf16.mxu0 0
        %2110 = vmatpush1.bf16.xpose.msra.mxu0 0
        %2111 = vmatprep.subr.bf16.mxu0 0
        %2112 = vmatpush1.bf16.xpose.msra.mxu0 0
        %2113 = vmatprep.subr.bf16.mxu0 0
        %2114 = vmatpush1.bf16.xpose.msra.mxu0 0
        %2115 = vmatprep.subr.bf16.mxu0 0
        %2116 = vmatpush1.bf16.xpose.msra.mxu0 0
        %2117 = vmatprep.subr.bf16.mxu0 0
        %2118 = vmatpush1.bf16.xpose.msra.mxu0 0
        %2119 = vmatprep.subr.bf16.mxu0 0
        %2120 = vmatpush1.bf16.xpose.msra.mxu0 0
        %2121 = vmatprep.mubr.bf16.mxu0 0
        %2122 = vmatmul.mubr.bf16.gmra.mrb[0].mxu0 %v2084
        %v2123 = vpop.f32.mrb[0].mxu0
        %v2124 = vadd.f32 0.0, %v2123
        %v2125 = vpop.f32.mrb[0].mxu0
        %v2126 = vpop.f32.mrb[0].mxu0
        %v2127 = vpop.f32.mrb[0].mxu0
        %2128 = vdwg.mxu0
        %v2130 = vsel %vm786, %v1938, 0
        %v2133 = vsel %vm786, %v2010, 0
        %2135 = vmatprep.subr.bf16.mxu0 0
        %2136 = vmatpush1.bf16.xpose.msra.mxu0 %v2133
        %2137 = vmatprep.subr.bf16.mxu0 0
        %2138 = vmatpush1.bf16.xpose.msra.mxu0 0
        %2139 = vmatprep.subr.bf16.mxu0 0
        %2140 = vmatpush1.bf16.xpose.msra.mxu0 0
        %2141 = vmatprep.subr.bf16.mxu0 0
        %2142 = vmatpush1.bf16.xpose.msra.mxu0 0
        %2143 = vmatprep.subr.bf16.mxu0 0
        %2144 = vmatpush1.bf16.xpose.msra.mxu0 0
        %2145 = vmatprep.subr.bf16.mxu0 0
        %2146 = vmatpush1.bf16.xpose.msra.mxu0 0
        %2147 = vmatprep.subr.bf16.mxu0 0
        %2148 = vmatpush1.bf16.xpose.msra.mxu0 0
        %2149 = vmatprep.subr.bf16.mxu0 0
        %2150 = vmatpush1.bf16.xpose.msra.mxu0 0
        %2151 = vmatprep.subr.bf16.mxu0 0
        %2152 = vmatpush1.bf16.xpose.msra.mxu0 0
        %2153 = vmatprep.subr.bf16.mxu0 0
        %2154 = vmatpush1.bf16.xpose.msra.mxu0 0
        %2155 = vmatprep.subr.bf16.mxu0 0
        %2156 = vmatpush1.bf16.xpose.msra.mxu0 0
        %2157 = vmatprep.subr.bf16.mxu0 0
        %2158 = vmatpush1.bf16.xpose.msra.mxu0 0
        %2159 = vmatprep.subr.bf16.mxu0 0
        %2160 = vmatpush1.bf16.xpose.msra.mxu0 0
        %2161 = vmatprep.subr.bf16.mxu0 0
        %2162 = vmatpush1.bf16.xpose.msra.mxu0 0
        %2163 = vmatprep.subr.bf16.mxu0 0
        %2164 = vmatpush1.bf16.xpose.msra.mxu0 0
        %2165 = vmatprep.subr.bf16.mxu0 0
        %2166 = vmatpush1.bf16.xpose.msra.mxu0 0
        %2167 = vmatprep.mubr.bf16.mxu0 0
        %2168 = vmatmul.mubr.bf16.gmra.mrb[0].mxu0 %v2130
        %v2169 = vpop.f32.mrb[0].mxu0
        %v2170 = vadd.f32 0.0, %v2169
        %v2171 = vpop.f32.mrb[0].mxu0
        %v2172 = vpop.f32.mrb[0].mxu0
        %v2173 = vpop.f32.mrb[0].mxu0
        %2174 = vdwg.mxu0
        %v2175 = vsel %vm891, %v2124, -1e+09
        %v2176 = vsel %vm892, %v2170, -1e+09
        %v2177 = vsel %vm786, %v2175, -inf
        %2178 = vmax.xlane.f32.xlu0 %v2177
        %v2179 = vpop.xlane.xlu0 %2178
        %v2180 = vsel %vm786, %v2176, -inf
        %2181 = vmax.xlane.f32.xlu0 %v2180
        %v2182 = vpop.xlane.xlu0 %2181
        %v2183 = vsub.f32 %v2175, %v2179
        %v2184 = vsub.f32 %v2176, %v2182
        %v2185 = vmul.f32 %v2183, 1.442695
        %v2186 = vpow.pop %v2185
        %v2187 = vmul.f32 %v2184, 1.442695
        %v2188 = vpow.pop %v2187
        %v2189 = vsel %vm786, %v2186, 0.0
        %2190 = vadd.xlane.f32.xlu0 %v2189
        %v2191 = vpop.xlane.xlu0 %2190
        %v2192 = vsel %vm786, %v2188, 0.0
        %2193 = vadd.xlane.f32.xlu0 %v2192
        %v2194 = vpop.xlane.xlu0 %2193
        %v2195 = vrcp.pop %v2191
        %v2196 = vrcp.pop %v2194
        %v2197 = vmul.f32 %v2186, %v2195
        %v2198 = vmul.f32 %v2188, %v2196
        %v2199 = vpack.c.bf16 %v2197, %v2197
        %v2200 = vpack.c.bf16 %v2198, %v2198
        %v2202 = vsel %vm786, %v2199, 0
        %v2205 = vsel %vm922, %v2081, 0
        %2207 = vmatprep.subr.bf16.mxu0 0
        %2208 = vmatpush1.bf16.msra.mxu0 %v2205
        %2209 = vmatprep.subr.bf16.mxu0 0
        %2210 = vmatpush1.bf16.msra.mxu0 0
        %2211 = vmatprep.subr.bf16.mxu0 0
        %2212 = vmatpush1.bf16.msra.mxu0 0
        %2213 = vmatprep.subr.bf16.mxu0 0
        %2214 = vmatpush1.bf16.msra.mxu0 0
        %2215 = vmatprep.subr.bf16.mxu0 0
        %2216 = vmatpush1.bf16.msra.mxu0 0
        %2217 = vmatprep.subr.bf16.mxu0 0
        %2218 = vmatpush1.bf16.msra.mxu0 0
        %2219 = vmatprep.subr.bf16.mxu0 0
        %2220 = vmatpush1.bf16.msra.mxu0 0
        %2221 = vmatprep.subr.bf16.mxu0 0
        %2222 = vmatpush1.bf16.msra.mxu0 0
        %2223 = vmatprep.subr.bf16.mxu0 0
        %2224 = vmatpush1.bf16.msra.mxu0 0
        %2225 = vmatprep.subr.bf16.mxu0 0
        %2226 = vmatpush1.bf16.msra.mxu0 0
        %2227 = vmatprep.subr.bf16.mxu0 0
        %2228 = vmatpush1.bf16.msra.mxu0 0
        %2229 = vmatprep.subr.bf16.mxu0 0
        %2230 = vmatpush1.bf16.msra.mxu0 0
        %2231 = vmatprep.subr.bf16.mxu0 0
        %2232 = vmatpush1.bf16.msra.mxu0 0
        %2233 = vmatprep.subr.bf16.mxu0 0
        %2234 = vmatpush1.bf16.msra.mxu0 0
        %2235 = vmatprep.subr.bf16.mxu0 0
        %2236 = vmatpush1.bf16.msra.mxu0 0
        %2237 = vmatprep.subr.bf16.mxu0 0
        %2238 = vmatpush1.bf16.msra.mxu0 0
        %2239 = vmatprep.mubr.bf16.mxu0 0
        %2240 = vmatmul.mubr.bf16.gmra.mrb[0].mxu0 %v2202
        %v2241 = vpop.f32.mrb[0].mxu0
        %v2242 = vadd.f32 0.0, %v2241
        %v2243 = vpop.f32.mrb[0].mxu0
        %v2244 = vpop.f32.mrb[0].mxu0
        %v2245 = vpop.f32.mrb[0].mxu0
        %2246 = vdwg.mxu0
        %v2248 = vsel %vm786, %v2200, 0
        %v2251 = vsel %vm922, %v2082, 0
        %2253 = vmatprep.subr.bf16.mxu0 0
        %2254 = vmatpush1.bf16.msra.mxu0 %v2251
        %2255 = vmatprep.subr.bf16.mxu0 0
        %2256 = vmatpush1.bf16.msra.mxu0 0
        %2257 = vmatprep.subr.bf16.mxu0 0
        %2258 = vmatpush1.bf16.msra.mxu0 0
        %2259 = vmatprep.subr.bf16.mxu0 0
        %2260 = vmatpush1.bf16.msra.mxu0 0
        %2261 = vmatprep.subr.bf16.mxu0 0
        %2262 = vmatpush1.bf16.msra.mxu0 0
        %2263 = vmatprep.subr.bf16.mxu0 0
        %2264 = vmatpush1.bf16.msra.mxu0 0
        %2265 = vmatprep.subr.bf16.mxu0 0
        %2266 = vmatpush1.bf16.msra.mxu0 0
        %2267 = vmatprep.subr.bf16.mxu0 0
        %2268 = vmatpush1.bf16.msra.mxu0 0
        %2269 = vmatprep.subr.bf16.mxu0 0
        %2270 = vmatpush1.bf16.msra.mxu0 0
        %2271 = vmatprep.subr.bf16.mxu0 0
        %2272 = vmatpush1.bf16.msra.mxu0 0
        %2273 = vmatprep.subr.bf16.mxu0 0
        %2274 = vmatpush1.bf16.msra.mxu0 0
        %2275 = vmatprep.subr.bf16.mxu0 0
        %2276 = vmatpush1.bf16.msra.mxu0 0
        %2277 = vmatprep.subr.bf16.mxu0 0
        %2278 = vmatpush1.bf16.msra.mxu0 0
        %2279 = vmatprep.subr.bf16.mxu0 0
        %2280 = vmatpush1.bf16.msra.mxu0 0
        %2281 = vmatprep.subr.bf16.mxu0 0
        %2282 = vmatpush1.bf16.msra.mxu0 0
        %2283 = vmatprep.subr.bf16.mxu0 0
        %2284 = vmatpush1.bf16.msra.mxu0 0
        %2285 = vmatprep.mubr.bf16.mxu0 0
        %2286 = vmatmul.mubr.bf16.gmra.mrb[0].mxu0 %v2248
        %v2287 = vpop.f32.mrb[0].mxu0
        %v2288 = vadd.f32 0.0, %v2287
        %v2289 = vpop.f32.mrb[0].mxu0
        %v2290 = vpop.f32.mrb[0].mxu0
        %v2291 = vpop.f32.mrb[0].mxu0
        %2292 = vdwg.mxu0
        %v2293 = vpack.c.bf16 %v2288, %v2242
        %2295 = vrot.lane.b32.xlu0 %v1439, 8
        %v2296 = vpop.permute.xlu0 %2295
        %2298 = vrot.lane.b32.xlu0 %v1866, 16
        %v2299 = vpop.permute.xlu0 %2298
        %2301 = vrot.lane.b32.xlu0 %v2293, 24
        %v2302 = vpop.permute.xlu0 %2301
        %v2305 = vsel %vm786, %v1012, %v2296
        %vm2306 = vcmask 130048
        %v2308 = vsel %vm2306, %v2305, %v2299
        %vm2309 = vcmask 195584
        %v2311 = vsel %vm2309, %v2308, %v2302
        %v2312 = vld [vmem:[%s494] sm:$0xf]
        %v2313 = vld [vmem:[%s494 + $0x4] sm:$0xf]
        %v2314 = vld [vmem:[%s494 + $0x8] sm:$0xf]
        %v2315 = vld [vmem:[%s494 + $0xc] sm:$0xf]
        %v2316 = vlaneseq
        %v2317 = vshrl.u32 %v2316, 7
        %v2318 = vsub.s32 2, %v2317
        %v2319 = vrot.slane %v525, %v2318
        %v2324 = vunpack.c.l.b16 %v2312
        %v2325 = vunpack.c.l.b16 %v2313
        %v2326 = vunpack.c.l.b16 %v2314
        %v2327 = vunpack.c.l.b16 %v2315
        %v2328 = vpack.c.b16 %v2325, %v2324
        %v2329 = vpack.c.b16 %v2327, %v2326
        %v2332 = vsel %vm528, %v2311, 0
        %2334 = vmatprep.subr.bf16.mxu0 0
        %2335 = vmatpush1.bf16.msra.mxu0 %v2328
        %2336 = vmatprep.subr.bf16.mxu0 0
        %2337 = vmatpush1.bf16.msra.mxu0 %v2329
        %2338 = vmatprep.subr.bf16.mxu0 0
        %2339 = vmatpush1.bf16.msra.mxu0 0
        %2340 = vmatprep.subr.bf16.mxu0 0
        %2341 = vmatpush1.bf16.msra.mxu0 0
        %2342 = vmatprep.subr.bf16.mxu0 0
        %2343 = vmatpush1.bf16.msra.mxu0 0
        %2344 = vmatprep.subr.bf16.mxu0 0
        %2345 = vmatpush1.bf16.msra.mxu0 0
        %2346 = vmatprep.subr.bf16.mxu0 0
        %2347 = vmatpush1.bf16.msra.mxu0 0
        %2348 = vmatprep.subr.bf16.mxu0 0
        %2349 = vmatpush1.bf16.msra.mxu0 0
        %2350 = vmatprep.subr.bf16.mxu0 0
        %2351 = vmatpush1.bf16.msra.mxu0 0
        %2352 = vmatprep.subr.bf16.mxu0 0
        %2353 = vmatpush1.bf16.msra.mxu0 0
        %2354 = vmatprep.subr.bf16.mxu0 0
        %2355 = vmatpush1.bf16.msra.mxu0 0
        %2356 = vmatprep.subr.bf16.mxu0 0
        %2357 = vmatpush1.bf16.msra.mxu0 0
        %2358 = vmatprep.subr.bf16.mxu0 0
        %2359 = vmatpush1.bf16.msra.mxu0 0
        %2360 = vmatprep.subr.bf16.mxu0 0
        %2361 = vmatpush1.bf16.msra.mxu0 0
        %2362 = vmatprep.subr.bf16.mxu0 0
        %2363 = vmatpush1.bf16.msra.mxu0 0
        %2364 = vmatprep.subr.bf16.mxu0 0
        %2365 = vmatpush1.bf16.msra.mxu0 0
        %2366 = vmatprep.mubr.bf16.mxu0 0
        %2367 = vmatmul.mubr.bf16.gmra.mrb[0].mxu0 %v2332
        %v2368 = vpop.f32.mrb[0].mxu0
        %v2369 = vadd.f32 %v2319, %v2368
        %v2370 = vpop.f32.mrb[0].mxu0
        %v2371 = vpop.f32.mrb[0].mxu0
        %v2372 = vadd.f32 %v2319, %v2371
        %v2373 = vpop.f32.mrb[0].mxu0
        %2374 = vdwg.mxu0
        %v2375 = vadd.f32 %v2369, %v523
        %v2376 = vadd.f32 %v2372, %v524
        %v2377 = vsel %vm528, %v2375, 0.0
        %2378 = vadd.xlane.f32.xlu0 %v2377
        %v2379 = vpop.xlane.xlu0 %2378
        %v2380 = vsel %vm528, %v2376, 0.0
        %2381 = vadd.xlane.f32.xlu0 %v2380
        %v2382 = vpop.xlane.xlu0 %2381
        %v2383 = vmul.f32 %v2379, %v535
        %v2384 = vmul.f32 %v2382, %v535
        %v2385 = vsub.f32 %v2375, %v2383
        %v2386 = vsub.f32 %v2376, %v2384
        %v2387 = vmul.f32 %v2385, %v2385
        %v2388 = vmul.f32 %v2386, %v2386
        %v2389 = vsel %vm528, %v2387, 0.0
        %2390 = vadd.xlane.f32.xlu0 %v2389
        %v2391 = vpop.xlane.xlu0 %2390
        %v2392 = vsel %vm528, %v2388, 0.0
        %2393 = vadd.xlane.f32.xlu0 %v2392
        %v2394 = vpop.xlane.xlu0 %2393
        %v2395 = vmul.f32 %v2391, %v535
        %v2396 = vmul.f32 %v2394, %v535
        %v2397 = vadd.f32 %v2395, 1e-06
        %v2398 = vadd.f32 %v2396, 1e-06
        %v2399 = vrsqrt.pop %v2397
        %v2400 = vrsqrt.pop %v2398
        %v2401 = vmul.f32 %v2385, %v2399
        %v2402 = vmul.f32 %v2386, %v2400
        %v2403 = vlaneseq
        %v2404 = vshrl.u32 %v2403, 7
        %v2405 = vsub.s32 3, %v2404
        %v2406 = vrot.slane %v525, %v2405
        %v2407 = vmul.f32 %v2401, %v2406
        %v2408 = vmul.f32 %v2402, %v2406
        %v2409 = vlaneseq
        %v2410 = vshrl.u32 %v2409, 7
        %v2411 = vsub.s32 4, %v2410
        %v2412 = vrot.slane %v525, %v2411
        %v2413 = vadd.f32 %v2407, %v2412
        %v2414 = vadd.f32 %v2408, %v2412
        %v2415 = vpack.c.bf16 %v2414, %v2413
        %v2416 = vld [vmem:[%s499] sm:$0xf]
        %v2417 = vld [vmem:[%s499 + $0x4] sm:$0xf]
        %v2418 = vld [vmem:[%s499 + $0x8] sm:$0xf]
        %v2419 = vld [vmem:[%s499 + $0xc] sm:$0xf]
        %v2420 = vld [vmem:[%s511] sm:$0x1]
        %v2422 = vlaneseq
        %v2423 = vshrl.u32 %v2422, 7
        %v2424 = vsub.s32 0, %v2423
        %v2425 = vrot.slane %v2420, %v2424
        %v2431 = vunpack.c.l.b16 %v2416
        %v2432 = vunpack.c.l.b16 %v2417
        %v2433 = vunpack.c.l.b16 %v2418
        %v2434 = vunpack.c.l.b16 %v2419
        %v2435 = vpack.c.b16 %v2432, %v2431
        %v2436 = vpack.c.b16 %v2434, %v2433
        %v2440 = vsel %vm528, %v2415, 0
        %2442 = vmatprep.subr.bf16.mxu0 0
        %2443 = vmatpush1.bf16.msra.mxu0 %v2435
        %2444 = vmatprep.subr.bf16.mxu0 0
        %2445 = vmatpush1.bf16.msra.mxu0 %v2436
        %2446 = vmatprep.subr.bf16.mxu0 0
        %2447 = vmatpush1.bf16.msra.mxu0 0
        %2448 = vmatprep.subr.bf16.mxu0 0
        %2449 = vmatpush1.bf16.msra.mxu0 0
        %2450 = vmatprep.subr.bf16.mxu0 0
        %2451 = vmatpush1.bf16.msra.mxu0 0
        %2452 = vmatprep.subr.bf16.mxu0 0
        %2453 = vmatpush1.bf16.msra.mxu0 0
        %2454 = vmatprep.subr.bf16.mxu0 0
        %2455 = vmatpush1.bf16.msra.mxu0 0
        %2456 = vmatprep.subr.bf16.mxu0 0
        %2457 = vmatpush1.bf16.msra.mxu0 0
        %2458 = vmatprep.subr.bf16.mxu0 0
        %2459 = vmatpush1.bf16.msra.mxu0 0
        %2460 = vmatprep.subr.bf16.mxu0 0
        %2461 = vmatpush1.bf16.msra.mxu0 0
        %2462 = vmatprep.subr.bf16.mxu0 0
        %2463 = vmatpush1.bf16.msra.mxu0 0
        %2464 = vmatprep.subr.bf16.mxu0 0
        %2465 = vmatpush1.bf16.msra.mxu0 0
        %2466 = vmatprep.subr.bf16.mxu0 0
        %2467 = vmatpush1.bf16.msra.mxu0 0
        %2468 = vmatprep.subr.bf16.mxu0 0
        %2469 = vmatpush1.bf16.msra.mxu0 0
        %2470 = vmatprep.subr.bf16.mxu0 0
        %2471 = vmatpush1.bf16.msra.mxu0 0
        %2472 = vmatprep.subr.bf16.mxu0 0
        %2473 = vmatpush1.bf16.msra.mxu0 0
        %2474 = vmatprep.mubr.bf16.mxu0 0
        %2475 = vmatmul.mubr.bf16.gmra.mrb[0].mxu0 %v2440
        %v2476 = vpop.f32.mrb[0].mxu0
        %v2477 = vadd.f32 %v2425, %v2476
        %v2478 = vpop.f32.mrb[0].mxu0
        %v2479 = vpop.f32.mrb[0].mxu0
        %v2480 = vadd.f32 %v2425, %v2479
        %v2481 = vpop.f32.mrb[0].mxu0
        %2482 = vdwg.mxu0
        %v2483 = vmax.f32 %v2477, 0.0
        %v2484 = vmax.f32 %v2480, 0.0
        %v2485 = vpack.c.bf16 %v2484, %v2483
        %v2486 = vld [vmem:[%s504] sm:$0xf]
        %v2487 = vld [vmem:[%s504 + $0x4] sm:$0xf]
        %v2488 = vld [vmem:[%s504 + $0x8] sm:$0xf]
        %v2489 = vld [vmem:[%s504 + $0xc] sm:$0xf]
        %v2490 = vld [vmem:[%s504 + $0x10] sm:$0xf]
        %v2491 = vld [vmem:[%s504 + $0x14] sm:$0xf]
        %v2492 = vld [vmem:[%s504 + $0x18] sm:$0xf]
        %v2493 = vld [vmem:[%s504 + $0x1c] sm:$0xf]
        %v2494 = vlaneseq
        %v2495 = vshrl.u32 %v2494, 7
        %v2496 = vsub.s32 5, %v2495
        %v2497 = vrot.slane %v525, %v2496
        %v2506 = vunpack.c.l.b16 %v2486
        %v2507 = vunpack.c.l.b16 %v2487
        %v2508 = vunpack.c.l.b16 %v2488
        %v2509 = vunpack.c.l.b16 %v2489
        %v2510 = vunpack.c.l.b16 %v2490
        %v2511 = vunpack.c.l.b16 %v2491
        %v2512 = vunpack.c.l.b16 %v2492
        %v2513 = vunpack.c.l.b16 %v2493
        %v2514 = vpack.c.b16 %v2507, %v2506
        %v2515 = vpack.c.b16 %v2509, %v2508
        %v2516 = vpack.c.b16 %v2511, %v2510
        %v2517 = vpack.c.b16 %v2513, %v2512
        %vm2522 = vcmask 523264
        %v2524 = vsel %vm2522, %v2485, 0
        %2526 = vmatprep.subr.bf16.mxu0 0
        %2527 = vmatpush1.bf16.msra.mxu0 %v2514
        %2528 = vmatprep.subr.bf16.mxu0 0
        %2529 = vmatpush1.bf16.msra.mxu0 %v2515
        %2530 = vmatprep.subr.bf16.mxu0 0
        %2531 = vmatpush1.bf16.msra.mxu0 %v2516
        %2532 = vmatprep.subr.bf16.mxu0 0
        %2533 = vmatpush1.bf16.msra.mxu0 %v2517
        %2534 = vmatprep.subr.bf16.mxu0 0
        %2535 = vmatpush1.bf16.msra.mxu0 0
        %2536 = vmatprep.subr.bf16.mxu0 0
        %2537 = vmatpush1.bf16.msra.mxu0 0
        %2538 = vmatprep.subr.bf16.mxu0 0
        %2539 = vmatpush1.bf16.msra.mxu0 0
        %2540 = vmatprep.subr.bf16.mxu0 0
        %2541 = vmatpush1.bf16.msra.mxu0 0
        %2542 = vmatprep.subr.bf16.mxu0 0
        %2543 = vmatpush1.bf16.msra.mxu0 0
        %2544 = vmatprep.subr.bf16.mxu0 0
        %2545 = vmatpush1.bf16.msra.mxu0 0
        %2546 = vmatprep.subr.bf16.mxu0 0
        %2547 = vmatpush1.bf16.msra.mxu0 0
        %2548 = vmatprep.subr.bf16.mxu0 0
        %2549 = vmatpush1.bf16.msra.mxu0 0
        %2550 = vmatprep.subr.bf16.mxu0 0
        %2551 = vmatpush1.bf16.msra.mxu0 0
        %2552 = vmatprep.subr.bf16.mxu0 0
        %2553 = vmatpush1.bf16.msra.mxu0 0
        %2554 = vmatprep.subr.bf16.mxu0 0
        %2555 = vmatpush1.bf16.msra.mxu0 0
        %2556 = vmatprep.subr.bf16.mxu0 0
        %2557 = vmatpush1.bf16.msra.mxu0 0
        %2558 = vmatprep.mubr.bf16.mxu0 0
        %2559 = vmatmul.mubr.bf16.gmra.mrb[0].mxu0 %v2524
        %v2560 = vpop.f32.mrb[0].mxu0
        %v2561 = vadd.f32 %v2497, %v2560
        %v2562 = vpop.f32.mrb[0].mxu0
        %v2563 = vpop.f32.mrb[0].mxu0
        %v2564 = vadd.f32 %v2497, %v2563
        %v2565 = vpop.f32.mrb[0].mxu0
        %2566 = vdwg.mxu0
        %v2567 = vadd.f32 %v2561, %v2375
        %v2568 = vadd.f32 %v2564, %v2376
        %2569 = vst.msk [vmem:[#allocation2] sm:$0xff] %vm528, %v2567
        %2570 = vst.msk [vmem:[#allocation2 + $0x8] sm:$0xff] %vm528, %v2568
        %p2571 = scmp.eq.s32.totalorder %s27, 1
        // Predicated region
        $region65: #{tpu_custom_call.1} parent=59 // pred_check
          %p2572 = pneg %p2571
        $region66: #{tpu_custom_call.1} parent=59 // pred_check_branch
          %2574 = sbr.rel (%p2572) target = $region68
        $region67: #{tpu_custom_call.1} parent=59 // pred_region
          %v2575 = vld [vmem:[%s9] sm:$0x3]
          %v2576 = vsel %vm528, %v2567, 0.0
          %2577 = vadd.xlane.f32.xlu0 %v2576
          %v2578 = vpop.xlane.xlu0 %2577
          %v2579 = vsel %vm528, %v2568, 0.0
          %2580 = vadd.xlane.f32.xlu0 %v2579
          %v2581 = vpop.xlane.xlu0 %2580
          %v2582 = vmul.f32 %v2578, %v535
          %v2583 = vmul.f32 %v2581, %v535
          %v2584 = vsub.f32 %v2567, %v2582
          %v2585 = vsub.f32 %v2568, %v2583
          %v2586 = vmul.f32 %v2584, %v2584
          %v2587 = vmul.f32 %v2585, %v2585
          %v2588 = vsel %vm528, %v2586, 0.0
          %2589 = vadd.xlane.f32.xlu0 %v2588
          %v2590 = vpop.xlane.xlu0 %2589
          %v2591 = vsel %vm528, %v2587, 0.0
          %2592 = vadd.xlane.f32.xlu0 %v2591
          %v2593 = vpop.xlane.xlu0 %2592
          %v2594 = vmul.f32 %v2590, %v535
          %v2595 = vmul.f32 %v2593, %v535
          %v2596 = vadd.f32 %v2594, 1e-06
          %v2597 = vadd.f32 %v2595, 1e-06
          %v2598 = vrsqrt.pop %v2596
          %v2599 = vrsqrt.pop %v2597
          %v2600 = vmul.f32 %v2584, %v2598
          %v2601 = vmul.f32 %v2585, %v2599
          %v2602 = vlaneseq
          %v2603 = vshrl.u32 %v2602, 7
          %v2604 = vsub.s32 0, %v2603
          %v2605 = vrot.slane %v2575, %v2604
          %v2606 = vmul.f32 %v2600, %v2605
          %v2607 = vmul.f32 %v2601, %v2605
          %v2608 = vlaneseq
          %v2609 = vshrl.u32 %v2608, 7
          %v2610 = vsub.s32 1, %v2609
          %v2611 = vrot.slane %v2575, %v2610
          %v2612 = vadd.f32 %v2606, %v2611
          %v2613 = vadd.f32 %v2607, %v2611
          %v2614 = vpack.c.bf16 %v2612, %v2612
          %v2615 = vpack.c.bf16 %v2613, %v2613
          %vm2616 = vcmask 257024
          %2617 = vst.msk [vmem:[#allocation3] sm:$0xf] %vm2616, %v2614
          %2618 = vst.msk [vmem:[#allocation3 + $0x4] sm:$0xf] %vm2616, %v2615
        $region68: #{tpu_custom_call.1} parent=59 // pred_fallthru
          _
        // Predicated region
        $region69: #{tpu_custom_call.1} parent=59 // pred_check
          %p2619 = pneg %p307
        $region70: #{tpu_custom_call.1} parent=59 // pred_check_branch
          %2621 = sbr.rel (%p2619) target = $region72
        $region71: #{tpu_custom_call.1} parent=59 // pred_region
          %s2622 = smul.u32 2, %s26
          %s2624 = ssub.s32 128, 128
          %2625 = vsyncadd [#allocation4], %s2624
          %s2626 = smul.addr %s2622, 64
          %s2627 = scalar_lea.hbm %s10, %s2626
          %s2628 = sshll.u32 [#allocation3], 4
          %s2629 = int_to_ptr.vmem [resolvable:$true] %s2628
          %2634 = dma.vmem_to_hbm [thread:$0]  %s2629, 128, %s2627, [#allocation4], 64, 64, 4
        $region72: #{tpu_custom_call.1} parent=59 // pred_fallthru
          _
        // Predicated region
        $region73: #{tpu_custom_call.1} parent=59 // pred_check
          %p2635 = pneg %p307
        $region74: #{tpu_custom_call.1} parent=59 // pred_check_branch
          %2637 = sbr.rel (%p2635) target = $region76
        $region75: #{tpu_custom_call.1} parent=59 // pred_region
          %2638 = dma.done [#allocation4], 128
        $region76: #{tpu_custom_call.1} parent=59 // pred_fallthru
          _
      $region60: #{tpu_custom_call.1} parent=5 // pred_fallthru
        _
      %p2639 = scmp.le.s32.totalorder 2, %s17
      // Predicated region
      $region77: #{tpu_custom_call.1} parent=5 // pred_check
        %p2640 = pneg %p2639
      $region78: #{tpu_custom_call.1} parent=5 // pred_check_branch
        %2642 = sbr.rel (%p2640) target = $region80
      $region79: #{tpu_custom_call.1} parent=5 // pred_region
        %s2643 = ssub.s32 %s17, 2
      $region80: #{tpu_custom_call.1} parent=5 // pred_fallthru
        _
    $region6: #{tpu_custom_call.1} parent=1 // loop_footer
      %s21 = sadd.s32 1, %s17
    $region7: #{tpu_custom_call.1} parent=1 // loop_footer_branch
      %16 = sbr.rel target = $region3
    $region8: #{tpu_custom_call.1} parent=1 // loop_exit
      _
    %2644 = vsyncpa [#allocation4], 1
    %s2645 = scalar_lea.sflag [#allocation4], 1
    %2646 = vsyncpa %s2645, 1

</llo_original>
